<compile_context>
chip_gen: v6e
topology: v6e:2x2x1
jax: 0.10.0
libtpu: 0.0.40
codegen_flags: <defaults>
</compile_context>

<pallas_src>
import functools

import jax
import jax.numpy as jnp
from jax import lax
from jax.experimental import pallas as pl
from jax.experimental.pallas import tpu as pltpu


# ------------------------------------------------------------------ helpers

_TM_CAP = 8192  # rows per grid step; (8192, C<=128) f32 tiles are << VMEM


def _pick_tm(M):
    """Row tile for the flattened (M, C) activation kernels.

    Single grid step if M fits under the cap (best on 1-TC v5e/v6e: no
    per-step overhead); otherwise the largest multiple-of-8 divisor of M
    up to the cap (realistic FNO sizes then give >=2 steps, which lets the
    "parallel" grid axis feed both TensorCores on v7x).
    """
    if M <= _TM_CAP:
        return M
    best = None
    tm = 8
    while tm <= _TM_CAP:
        if M % tm == 0:
            best = tm
        tm += 8
    return best if best is not None else M


# ------------------------------------------------------------------ kernels

def _dense_kernel(x_ref, w_ref, b_ref, o_ref, *, relu):
    y = jnp.dot(x_ref[...], w_ref[...], preferred_element_type=jnp.float32)
    y = y + b_ref[...]
    if relu:
        y = jnp.maximum(y, 0.0)
    o_ref[...] = y.astype(o_ref.dtype)


def dense(x, w, b, relu=False):
    """(M, K) @ (K, N) + b, optional ReLU."""
    M, K = x.shape
    K2, N = w.shape
    assert K == K2
    tm = _pick_tm(M)
    return pl.pallas_call(
        functools.partial(_dense_kernel, relu=relu),
        out_shape=jax.ShapeDtypeStruct((M, N), jnp.float32),
        grid=(M // tm,),
        in_specs=[
            pl.BlockSpec((tm, K), lambda i: (i, 0)),
            pl.BlockSpec((K, N), lambda i: (0, 0)),
            pl.BlockSpec((1, N), lambda i: (0, 0)),
        ],
        out_specs=pl.BlockSpec((tm, N), lambda i: (i, 0)),
        compiler_params=pltpu.CompilerParams(dimension_semantics=("parallel",)),
    )(x, w, b.reshape(1, N))


def _wconv_res_bn_kernel(h_ref, w_ref, b_ref, x1_ref, sc_ref, sh_ref, o_ref, *, relu):
    # 1x1 conv (channel matmul) + bias, fused with residual add, eval-mode
    # BatchNorm affine, and optional ReLU -- single HBM pass, single launch.
    y = jnp.dot(h_ref[...], w_ref[...], preferred_element_type=jnp.float32)
    y = (y + b_ref[...] + x1_ref[...]) * sc_ref[...] + sh_ref[...]
    if relu:
        y = jnp.maximum(y, 0.0)
    o_ref[...] = y.astype(o_ref.dtype)


def wconv_res_bn(h, w, b, x1, scale, shift, relu=True):
    """Fused: (h @ w + b + x1) -> eval-mode BatchNorm -> optional ReLU."""
    M, C = h.shape
    tm = _pick_tm(M)
    return pl.pallas_call(
        functools.partial(_wconv_res_bn_kernel, relu=relu),
        out_shape=jax.ShapeDtypeStruct((M, C), jnp.float32),
        grid=(M // tm,),
        in_specs=[
            pl.BlockSpec((tm, C), lambda i: (i, 0)),
            pl.BlockSpec((C, C), lambda i: (0, 0)),
            pl.BlockSpec((1, C), lambda i: (0, 0)),
            pl.BlockSpec((tm, C), lambda i: (i, 0)),
            pl.BlockSpec((1, C), lambda i: (0, 0)),
            pl.BlockSpec((1, C), lambda i: (0, 0)),
        ],
        out_specs=pl.BlockSpec((tm, C), lambda i: (i, 0)),
        compiler_params=pltpu.CompilerParams(dimension_semantics=("parallel",)),
    )(h, w, b.reshape(1, C), x1, scale, shift)


def _tail_kernel(h_ref, w3_ref, b3_ref, x1_ref, sc_ref, sh_ref,
                 w1_ref, b1_ref, w2t_ref, b2_ref, o_ref):
    # Layer-3 1x1 conv + residual + BN (no ReLU), fused with fc1+ReLU+fc2.
    # The (tm, 128) fc1 intermediate lives only in VMEM.
    y = jnp.dot(h_ref[...], w3_ref[...], preferred_element_type=jnp.float32)
    y = (y + b3_ref[...] + x1_ref[...]) * sc_ref[...] + sh_ref[...]
    z = jnp.dot(y, w1_ref[...], preferred_element_type=jnp.float32) + b1_ref[...]
    z = jnp.maximum(z, 0.0)
    # fc2 computed transposed: (1,128) @ (128,tm) -> (1, tm).  The final store
    # is fully lane-dense (tm on the 128-lane axis) instead of a (tm, 1)
    # masked-column store.
    yt = jnp.dot(w2t_ref[...], z.T, preferred_element_type=jnp.float32) + b2_ref[...]
    o_ref[0] = yt.astype(o_ref.dtype)


def tail(h, w3, b3, x1, bn_scale, bn_shift, w1, b1, w2, b2):
    """Fused layer-3 wconv/residual/BN + fc1 + ReLU + fc2. Returns (M,) f32."""
    M, C = h.shape
    H1 = w1.shape[1]
    tm = _pick_tm(M)
    G = M // tm
    out = pl.pallas_call(
        _tail_kernel,
        out_shape=jax.ShapeDtypeStruct((G, 1, tm), jnp.float32),
        grid=(G,),
        in_specs=[
            pl.BlockSpec((tm, C), lambda i: (i, 0)),    # h
            pl.BlockSpec((C, C), lambda i: (0, 0)),     # w3
            pl.BlockSpec((1, C), lambda i: (0, 0)),     # b3
            pl.BlockSpec((tm, C), lambda i: (i, 0)),    # x1 (spectral conv3)
            pl.BlockSpec((1, C), lambda i: (0, 0)),     # bn3 scale
            pl.BlockSpec((1, C), lambda i: (0, 0)),     # bn3 shift
            pl.BlockSpec((C, H1), lambda i: (0, 0)),    # fc1 w
            pl.BlockSpec((1, H1), lambda i: (0, 0)),    # fc1 b
            pl.BlockSpec((1, H1), lambda i: (0, 0)),    # fc2 w (transposed)
            pl.BlockSpec((1, 1), lambda i: (0, 0)),     # fc2 b
        ],
        out_specs=pl.BlockSpec((1, 1, tm), lambda i: (i, 0, 0)),
        compiler_params=pltpu.CompilerParams(dimension_semantics=("parallel",)),
    )(h, w3, b3.reshape(1, C), x1, bn_scale, bn_shift,
      w1, b1.reshape(1, H1), w2.reshape(1, H1), b2.reshape(1, 1))
    return out.reshape(M)


def _modemix_kernel(a_ref, w_ref, o_ref):
    # a: (P, B, 2Ci), w: (P, 2Ci, 2Co): single batched dot_general over the
    # P = m1*m2 modes (one MXU stream) instead of P tiny unrolled matmuls.
    o_ref[0] = lax.dot_general(
        a_ref[0], w_ref[0],
        dimension_numbers=(((2,), (1,)), ((0,), (0,))),
        preferred_element_type=jnp.float32)


def complex_mode_mix_bands(a_low, a_high, w_blk):
    """Both bands of einsum('bixy,ioxy->boxy') (complex) in ONE pallas_call.

    a_low/a_high: (B, m1, m2, Ci) complex64
    w_blk:        (2, m1*m2, 2*Ci, 2*Co) float32 block-complex weights
                  (precomputed once at init).
    returns (o_low, o_high): each (B, m1, m2, Co) complex64
    """
    B, m1, m2, Ci = a_low.shape
    P = m1 * m2
    Co = w_blk.shape[-1] // 2

    a = jnp.stack([a_low, a_high], axis=0)                        # (2,B,m1,m2,Ci)
    a = jnp.transpose(a, (0, 2, 3, 1, 4)).reshape(2, P, B, Ci)
    a_blk = jnp.concatenate([jnp.real(a), jnp.imag(a)], axis=-1)  # (2,P,B,2Ci)

    out = pl.pallas_call(
        _modemix_kernel,
        out_shape=jax.ShapeDtypeStruct((2, P, B, 2 * Co), jnp.float32),
        grid=(2,),  # low band / high band -> 2 "parallel" steps (v7x megacore)
        in_specs=[
            pl.BlockSpec((1, P, B, 2 * Ci), lambda i: (i, 0, 0, 0)),
            pl.BlockSpec((1, P, 2 * Ci, 2 * Co), lambda i: (i, 0, 0, 0)),
        ],
        out_specs=pl.BlockSpec((1, P, B, 2 * Co), lambda i: (i, 0, 0, 0)),
        compiler_params=pltpu.CompilerParams(dimension_semantics=("parallel",)),
    )(a_blk, w_blk)

    o = lax.complex(out[..., :Co], out[..., Co:])                 # (2,P,B,Co)
    o = o.reshape(2, m1, m2, B, Co).transpose(0, 3, 1, 2, 4)      # (2,B,m1,m2,Co)
    return o[0], o[1]


# --------------------------------------------------------------- FNO layers

def _make_wblk(w1, w2):
    """Precompute block-complex weights for BOTH bands once at init.

    w1/w2: (Ci, Co, m1, m2, 2) with real/imag on the last axis.
    returns (2, m1*m2, 2Ci, 2Co) float32:  [[wr, wi], [-wi, wr]] per mode.
    """
    Ci, Co, m1, m2, _ = w1.shape
    P = m1 * m2
    w = jnp.stack([w1, w2], axis=0)                              # (2,Ci,Co,m1,m2,2)
    w = jnp.transpose(w, (0, 3, 4, 1, 2, 5)).reshape(2, P, Ci, Co, 2)
    wr, wi = w[..., 0], w[..., 1]
    return jnp.concatenate(
        [jnp.concatenate([wr, wi], axis=-1),
         jnp.concatenate([-wi, wr], axis=-1)], axis=-2)          # (2,P,2Ci,2Co)


def spectral_conv2d(x, w_blk, m1, m2):
    """SpectralConv2d.forward on channels-last x: (B, H, W, C)."""
    B, H, W, C = x.shape
    Co = w_blk.shape[-1] // 2
    # torch.rfft(x, 2, normalized=True, onesided=True) == rfft2(..., norm="ortho")
    # TODO(synk): FFT/iFFT have no Pallas equivalent; done with jnp.fft (XLA
    # glue, which also owns the FFT-adjacent layout shuffles).
    x_ft = jnp.fft.rfft2(x, axes=(1, 2), norm="ortho")           # (B,H,W//2+1,C)
    Wh = W // 2 + 1
    assert H >= 2 * m1 and Wh >= m2

    o_low, o_high = complex_mode_mix_bands(
        x_ft[:, :m1, :m2, :], x_ft[:, H - m1:, :m2, :], w_blk)

    # Assemble out_ft with pad/concat (no full-size zeros + scatter).
    mid = jnp.zeros((B, H - 2 * m1, m2, Co), dtype=x_ft.dtype)
    left = jnp.concatenate([o_low, mid, o_high], axis=1)         # (B,H,m2,Co)
    right = jnp.zeros((B, H, Wh - m2, Co), dtype=x_ft.dtype)
    out_ft = jnp.concatenate([left, right], axis=2)              # (B,H,Wh,Co)
    return jnp.fft.irfft2(out_ft, s=(H, W), axes=(1, 2), norm="ortho")


def init_params(key, width, modes1, modes2):
    ks = jax.random.split(key, 32)
    p = {}
    p["fc0_w"] = 0.1 * jax.random.normal(ks[0], (3, width), jnp.float32)
    p["fc0_b"] = 0.1 * jax.random.normal(ks[1], (width,), jnp.float32)
    scale = 1.0 / (width * width)
    eps = 1e-5
    for l in range(4):
        k0, k1, k2, k3 = ks[2 + 4 * l: 6 + 4 * l]
        w1 = scale * jax.random.uniform(
            k0, (width, width, modes1, modes2, 2), jnp.float32)
        w2 = scale * jax.random.uniform(
            k1, (width, width, modes1, modes2, 2), jnp.float32)
        # Block-complex form built ONCE here (not per forward).
        p[f"spec{l}_wblk"] = _make_wblk(w1, w2)
        # Conv1d(width, width, 1) -> plain channel matmul (in, out) + bias
        p[f"w{l}_w"] = 0.1 * jax.random.normal(k2, (width, width), jnp.float32)
        p[f"w{l}_b"] = 0.1 * jax.random.normal(k3, (width,), jnp.float32)
        # BatchNorm2d default init, eval mode: gamma=1, beta=0, mean=0, var=1
        gamma = jnp.ones((width,), jnp.float32)
        beta = jnp.zeros((width,), jnp.float32)
        mean = jnp.zeros((width,), jnp.float32)
        var = jnp.ones((width,), jnp.float32)
        sc = gamma / jnp.sqrt(var + eps)
        p[f"bn{l}_scale"] = sc.reshape(1, width)
        p[f"bn{l}_shift"] = (beta - mean * sc).reshape(1, width)
    p["fc1_w"] = 0.1 * jax.random.normal(ks[18], (width, 128), jnp.float32)
    p["fc1_b"] = 0.1 * jax.random.normal(ks[19], (128,), jnp.float32)
    p["fc2_w"] = 0.1 * jax.random.normal(ks[20], (128, 1), jnp.float32)
    p["fc2_b"] = 0.1 * jax.random.normal(ks[21], (1,), jnp.float32)
    return p


def simple_block2d(params, x, modes1, modes2, width):
    """x: (B, s, s, 3) float32 -> (B, s, s, 1) float32."""
    B, H, W, Cin = x.shape
    M = B * H * W

    # fc0: lift to `width` channels
    h = dense(x.reshape(M, Cin), params["fc0_w"], params["fc0_b"])
    h = h.reshape(B, H, W, width)

    # Fourier layers 0..2: spectral conv + fused (wconv + residual + BN + ReLU)
    for l in range(3):
        x1 = spectral_conv2d(h, params[f"spec{l}_wblk"], modes1, modes2)
        h = wconv_res_bn(h.reshape(M, width),
                         params[f"w{l}_w"], params[f"w{l}_b"],
                         x1.reshape(M, width),
                         params[f"bn{l}_scale"], params[f"bn{l}_shift"],
                         relu=True)
        h = h.reshape(B, H, W, width)

    # Fourier layer 3 fused with the projection head in a single tail kernel:
    # (h@w3 + b3 + x1) -> BN (no ReLU) -> fc1 -> ReLU -> fc2, lane-dense output.
    x1 = spectral_conv2d(h, params["spec3_wblk"], modes1, modes2)
    z = tail(h.reshape(M, width), params["w3_w"], params["w3_b"],
             x1.reshape(M, width),
             params["bn3_scale"], params["bn3_shift"],
             params["fc1_w"], params["fc1_b"],
             params["fc2_w"], params["fc2_b"])
    return z.reshape(B, H, W, 1)


# --------------------------------------------------------------------- main

if __name__ == "__main__":
    modes1, modes2, width = 4, 4, 16
    batch, s = 2, 16

    key = jax.random.PRNGKey(0)
    k_params, k_x = jax.random.split(key)
    params = init_params(k_params, width, modes1, modes2)
    x = jax.random.normal(k_x, (batch, s, s, 3), jnp.float32)

    fwd = jax.jit(functools.partial(
        simple_block2d, modes1=modes1, modes2=modes2, width=width))
    out = fwd(params, x)
    out = jax.block_until_ready(out)

    assert out.shape == (batch, s, s, 1), out.shape
    assert bool(jnp.all(jnp.isfinite(out)))
    print("KERNEL_OK")
</pallas_src>

<mosaic_0001>
module attributes {stable_mosaic.version = 11 : i64} {
  func.func @_dense_kernel(%arg0: i32, %arg1: memref<512x3xf32, #tpu.memory_space<vmem>>, %arg2: memref<3x16xf32, #tpu.memory_space<vmem>>, %arg3: memref<1x16xf32, #tpu.memory_space<vmem>>, %arg4: memref<512x16xf32, #tpu.memory_space<vmem>>) attributes {dimension_semantics = [#tpu.dimension_semantics<parallel>], iteration_bounds = array<i64: 1>, scalar_prefetch = 0 : i64, scratch_operands = 0 : i64, tpu.core_type = #tpu.core_type<tc>, window_params = [{transform_indices = @transform_0, window_bounds = array<i64: 512, 3>}, {pipeline_mode = #tpu.pipeline_mode<synchronous>, transform_indices = @transform_1, window_bounds = array<i64: 3, 16>}, {pipeline_mode = #tpu.pipeline_mode<synchronous>, transform_indices = @transform_2, window_bounds = array<i64: 1, 16>}, {transform_indices = @transform_3, window_bounds = array<i64: 512, 16>}]} {
    %c0 = arith.constant 0 : index
    %c0_0 = arith.constant 0 : index
    %0 = vector.load %arg1[%c0, %c0_0] : memref<512x3xf32, #tpu.memory_space<vmem>>, vector<512x3xf32>
    %c0_1 = arith.constant 0 : index
    %c0_2 = arith.constant 0 : index
    %1 = vector.load %arg2[%c0_1, %c0_2] : memref<3x16xf32, #tpu.memory_space<vmem>>, vector<3x16xf32>
    %cst = arith.constant dense<0.000000e+00> : vector<512x16xf32>
    %2 = tpu.matmul %0, %1, %cst {dimension_numbers = #tpu.dot_dimension_numbers<[1], [0], [0], [1], [0, 0, 1, 1], [], []>} : vector<512x3xf32>, vector<3x16xf32>, vector<512x16xf32> -> vector<512x16xf32>
    %c0_3 = arith.constant 0 : index
    %c0_4 = arith.constant 0 : index
    %3 = vector.load %arg3[%c0_3, %c0_4] : memref<1x16xf32, #tpu.memory_space<vmem>>, vector<1x16xf32>
    %4 = vector.broadcast %3 : vector<1x16xf32> to vector<512x16xf32>
    %5 = arith.addf %2, %4 : vector<512x16xf32>
    %c0_5 = arith.constant 0 : index
    %c0_6 = arith.constant 0 : index
    %6 = vector.load %arg4[%c0_5, %c0_6] : memref<512x16xf32, #tpu.memory_space<vmem>>, vector<512x16xf32>
    tpu.vector_store %arg4[%c0_5, %c0_6], %5 {strides = array<i32>} : memref<512x16xf32, #tpu.memory_space<vmem>>, vector<512x16xf32>,
    return
  }
  func.func @transform_0(%arg0: i32) -> (i32, i32) {
    %c0_i32 = arith.constant 0 : i32
    %c0_i32_0 = arith.constant 0 : i32
    return %arg0, %c0_i32 : i32, i32
  }
  func.func @transform_1(%arg0: i32) -> (i32, i32) {
    %c0_i32 = arith.constant 0 : i32
    %c0_i32_0 = arith.constant 0 : i32
    %c0_i32_1 = arith.constant 0 : i32
    return %c0_i32, %c0_i32_0 : i32, i32
  }
  func.func @transform_2(%arg0: i32) -> (i32, i32) {
    %c0_i32 = arith.constant 0 : i32
    %c0_i32_0 = arith.constant 0 : i32
    %c0_i32_1 = arith.constant 0 : i32
    return %c0_i32, %c0_i32_0 : i32, i32
  }
  func.func @transform_3(%arg0: i32) -> (i32, i32) {
    %c0_i32 = arith.constant 0 : i32
    %c0_i32_0 = arith.constant 0 : i32
    return %arg0, %c0_i32 : i32, i32
  }
}

module attributes {stable_mosaic.version = 11 : i64} {
  func.func @_modemix_kernel(%arg0: i32, %arg1: memref<1x16x2x32xf32, #tpu.memory_space<vmem>>, %arg2: memref<1x16x32x32xf32, #tpu.memory_space<vmem>>, %arg3: memref<1x16x2x32xf32, #tpu.memory_space<vmem>>) attributes {dimension_semantics = [#tpu.dimension_semantics<parallel>], iteration_bounds = array<i64: 2>, scalar_prefetch = 0 : i64, scratch_operands = 0 : i64, tpu.core_type = #tpu.core_type<tc>, window_params = [{transform_indices = @transform_0, window_bounds = array<i64: 1, 16, 2, 32>}, {transform_indices = @transform_1, window_bounds = array<i64: 1, 16, 32, 32>}, {transform_indices = @transform_2, window_bounds = array<i64: 1, 16, 2, 32>}]} {
    %c0 = arith.constant 0 : index
    %c0_0 = arith.constant 0 : index
    %c0_1 = arith.constant 0 : index
    %c0_2 = arith.constant 0 : index
    %0 = vector.load %arg1[%c0, %c0_0, %c0_1, %c0_2] : memref<1x16x2x32xf32, #tpu.memory_space<vmem>>, vector<1x16x2x32xf32>
    %1 = vector.shape_cast %0 : vector<1x16x2x32xf32> to vector<16x2x32xf32>
    %c0_3 = arith.constant 0 : index
    %c0_4 = arith.constant 0 : index
    %c0_5 = arith.constant 0 : index
    %c0_6 = arith.constant 0 : index
    %2 = vector.load %arg2[%c0_3, %c0_4, %c0_5, %c0_6] : memref<1x16x32x32xf32, #tpu.memory_space<vmem>>, vector<1x16x32x32xf32>
    %3 = vector.shape_cast %2 : vector<1x16x32x32xf32> to vector<16x32x32xf32>
    %cst = arith.constant dense<0.000000e+00> : vector<16x2x32xf32>
    %4 = tpu.matmul %1, %3, %cst {dimension_numbers = #tpu.dot_dimension_numbers<[2], [1], [1], [2], [0, 0, 0, 1, 1, 2], [0], [0]>} : vector<16x2x32xf32>, vector<16x32x32xf32>, vector<16x2x32xf32> -> vector<16x2x32xf32>
    %c0_7 = arith.constant 0 : index
    %c0_8 = arith.constant 0 : index
    %c0_9 = arith.constant 0 : index
    %c0_10 = arith.constant 0 : index
    %5 = vector.load %arg3[%c0_7, %c0_8, %c0_9, %c0_10] : memref<1x16x2x32xf32, #tpu.memory_space<vmem>>, vector<1x16x2x32xf32>
    %6 = vector.shape_cast %5 : vector<1x16x2x32xf32> to vector<16x2x32xf32>
    %7 = vector.shape_cast %4 : vector<16x2x32xf32> to vector<1x16x2x32xf32>
    tpu.vector_store %arg3[%c0_7, %c0_8, %c0_9, %c0_10], %7 {strides = array<i32>} : memref<1x16x2x32xf32, #tpu.memory_space<vmem>>, vector<1x16x2x32xf32>,
    return
  }
  func.func @transform_0(%arg0: i32) -> (i32, i32, i32, i32) {
    %c0_i32 = arith.constant 0 : i32
    %c0_i32_0 = arith.constant 0 : i32
    %c0_i32_1 = arith.constant 0 : i32
    %c0_i32_2 = arith.constant 0 : i32
    return %arg0, %c0_i32, %c0_i32_0, %c0_i32_1 : i32, i32, i32, i32
  }
  func.func @transform_1(%arg0: i32) -> (i32, i32, i32, i32) {
    %c0_i32 = arith.constant 0 : i32
    %c0_i32_0 = arith.constant 0 : i32
    %c0_i32_1 = arith.constant 0 : i32
    %c0_i32_2 = arith.constant 0 : i32
    return %arg0, %c0_i32, %c0_i32_0, %c0_i32_1 : i32, i32, i32, i32
  }
  func.func @transform_2(%arg0: i32) -> (i32, i32, i32, i32) {
    %c0_i32 = arith.constant 0 : i32
    %c0_i32_0 = arith.constant 0 : i32
    %c0_i32_1 = arith.constant 0 : i32
    %c0_i32_2 = arith.constant 0 : i32
    return %arg0, %c0_i32, %c0_i32_0, %c0_i32_1 : i32, i32, i32, i32
  }
}

module attributes {stable_mosaic.version = 11 : i64} {
  func.func @_wconv_res_bn_kernel(%arg0: i32, %arg1: memref<512x16xf32, #tpu.memory_space<vmem>>, %arg2: memref<16x16xf32, #tpu.memory_space<vmem>>, %arg3: memref<1x16xf32, #tpu.memory_space<vmem>>, %arg4: memref<512x16xf32, #tpu.memory_space<vmem>>, %arg5: memref<1x16xf32, #tpu.memory_space<vmem>>, %arg6: memref<1x16xf32, #tpu.memory_space<vmem>>, %arg7: memref<512x16xf32, #tpu.memory_space<vmem>>) attributes {dimension_semantics = [#tpu.dimension_semantics<parallel>], iteration_bounds = array<i64: 1>, scalar_prefetch = 0 : i64, scratch_operands = 0 : i64, tpu.core_type = #tpu.core_type<tc>, window_params = [{transform_indices = @transform_0, window_bounds = array<i64: 512, 16>}, {pipeline_mode = #tpu.pipeline_mode<synchronous>, transform_indices = @transform_1, window_bounds = array<i64: 16, 16>}, {pipeline_mode = #tpu.pipeline_mode<synchronous>, transform_indices = @transform_2, window_bounds = array<i64: 1, 16>}, {transform_indices = @transform_3, window_bounds = array<i64: 512, 16>}, {pipeline_mode = #tpu.pipeline_mode<synchronous>, transform_indices = @transform_4, window_bounds = array<i64: 1, 16>}, {pipeline_mode = #tpu.pipeline_mode<synchronous>, transform_indices = @transform_5, window_bounds = array<i64: 1, 16>}, {transform_indices = @transform_6, window_bounds = array<i64: 512, 16>}]} {
    %c0 = arith.constant 0 : index
    %c0_0 = arith.constant 0 : index
    %0 = vector.load %arg1[%c0, %c0_0] : memref<512x16xf32, #tpu.memory_space<vmem>>, vector<512x16xf32>
    %c0_1 = arith.constant 0 : index
    %c0_2 = arith.constant 0 : index
    %1 = vector.load %arg2[%c0_1, %c0_2] : memref<16x16xf32, #tpu.memory_space<vmem>>, vector<16x16xf32>
    %cst = arith.constant dense<0.000000e+00> : vector<512x16xf32>
    %2 = tpu.matmul %0, %1, %cst {dimension_numbers = #tpu.dot_dimension_numbers<[1], [0], [0], [1], [0, 0, 1, 1], [], []>} : vector<512x16xf32>, vector<16x16xf32>, vector<512x16xf32> -> vector<512x16xf32>
    %c0_3 = arith.constant 0 : index
    %c0_4 = arith.constant 0 : index
    %3 = vector.load %arg3[%c0_3, %c0_4] : memref<1x16xf32, #tpu.memory_space<vmem>>, vector<1x16xf32>
    %4 = vector.broadcast %3 : vector<1x16xf32> to vector<512x16xf32>
    %5 = arith.addf %2, %4 : vector<512x16xf32>
    %c0_5 = arith.constant 0 : index
    %c0_6 = arith.constant 0 : index
    %6 = vector.load %arg4[%c0_5, %c0_6] : memref<512x16xf32, #tpu.memory_space<vmem>>, vector<512x16xf32>
    %7 = arith.addf %5, %6 : vector<512x16xf32>
    %c0_7 = arith.constant 0 : index
    %c0_8 = arith.constant 0 : index
    %8 = vector.load %arg5[%c0_7, %c0_8] : memref<1x16xf32, #tpu.memory_space<vmem>>, vector<1x16xf32>
    %9 = vector.broadcast %8 : vector<1x16xf32> to vector<512x16xf32>
    %10 = arith.mulf %7, %9 : vector<512x16xf32>
    %c0_9 = arith.constant 0 : index
    %c0_10 = arith.constant 0 : index
    %11 = vector.load %arg6[%c0_9, %c0_10] : memref<1x16xf32, #tpu.memory_space<vmem>>, vector<1x16xf32>
    %12 = vector.broadcast %11 : vector<1x16xf32> to vector<512x16xf32>
    %13 = arith.addf %10, %12 : vector<512x16xf32>
    %cst_11 = arith.constant 0.000000e+00 : f32
    %14 = vector.broadcast %cst_11 : f32 to vector<512x16xf32>
    %15 = arith.maximumf %13, %14 : vector<512x16xf32>
    %c0_12 = arith.constant 0 : index
    %c0_13 = arith.constant 0 : index
    %16 = vector.load %arg7[%c0_12, %c0_13] : memref<512x16xf32, #tpu.memory_space<vmem>>, vector<512x16xf32>
    tpu.vector_store %arg7[%c0_12, %c0_13], %15 {strides = array<i32>} : memref<512x16xf32, #tpu.memory_space<vmem>>, vector<512x16xf32>,
    return
  }
  func.func @transform_0(%arg0: i32) -> (i32, i32) {
    %c0_i32 = arith.constant 0 : i32
    %c0_i32_0 = arith.constant 0 : i32
    return %arg0, %c0_i32 : i32, i32
  }
  func.func @transform_1(%arg0: i32) -> (i32, i32) {
    %c0_i32 = arith.constant 0 : i32
    %c0_i32_0 = arith.constant 0 : i32
    %c0_i32_1 = arith.constant 0 : i32
    return %c0_i32, %c0_i32_0 : i32, i32
  }
  func.func @transform_2(%arg0: i32) -> (i32, i32) {
    %c0_i32 = arith.constant 0 : i32
    %c0_i32_0 = arith.constant 0 : i32
    %c0_i32_1 = arith.constant 0 : i32
    return %c0_i32, %c0_i32_0 : i32, i32
  }
  func.func @transform_3(%arg0: i32) -> (i32, i32) {
    %c0_i32 = arith.constant 0 : i32
    %c0_i32_0 = arith.constant 0 : i32
    return %arg0, %c0_i32 : i32, i32
  }
  func.func @transform_4(%arg0: i32) -> (i32, i32) {
    %c0_i32 = arith.constant 0 : i32
    %c0_i32_0 = arith.constant 0 : i32
    %c0_i32_1 = arith.constant 0 : i32
    return %c0_i32, %c0_i32_0 : i32, i32
  }
  func.func @transform_5(%arg0: i32) -> (i32, i32) {
    %c0_i32 = arith.constant 0 : i32
    %c0_i32_0 = arith.constant 0 : i32
    %c0_i32_1 = arith.constant 0 : i32
    return %c0_i32, %c0_i32_0 : i32, i32
  }
  func.func @transform_6(%arg0: i32) -> (i32, i32) {
    %c0_i32 = arith.constant 0 : i32
    %c0_i32_0 = arith.constant 0 : i32
    return %arg0, %c0_i32 : i32, i32
  }
}

module attributes {stable_mosaic.version = 11 : i64} {
  func.func @_tail_kernel(%arg0: i32, %arg1: memref<512x16xf32, #tpu.memory_space<vmem>>, %arg2: memref<16x16xf32, #tpu.memory_space<vmem>>, %arg3: memref<1x16xf32, #tpu.memory_space<vmem>>, %arg4: memref<512x16xf32, #tpu.memory_space<vmem>>, %arg5: memref<1x16xf32, #tpu.memory_space<vmem>>, %arg6: memref<1x16xf32, #tpu.memory_space<vmem>>, %arg7: memref<16x128xf32, #tpu.memory_space<vmem>>, %arg8: memref<1x128xf32, #tpu.memory_space<vmem>>, %arg9: memref<1x128xf32, #tpu.memory_space<vmem>>, %arg10: memref<1x1xf32, #tpu.memory_space<vmem>>, %arg11: memref<1x1x512xf32, #tpu.memory_space<vmem>>) attributes {dimension_semantics = [#tpu.dimension_semantics<parallel>], iteration_bounds = array<i64: 1>, scalar_prefetch = 0 : i64, scratch_operands = 0 : i64, tpu.core_type = #tpu.core_type<tc>, window_params = [{transform_indices = @transform_0, window_bounds = array<i64: 512, 16>}, {pipeline_mode = #tpu.pipeline_mode<synchronous>, transform_indices = @transform_1, window_bounds = array<i64: 16, 16>}, {pipeline_mode = #tpu.pipeline_mode<synchronous>, transform_indices = @transform_2, window_bounds = array<i64: 1, 16>}, {transform_indices = @transform_3, window_bounds = array<i64: 512, 16>}, {pipeline_mode = #tpu.pipeline_mode<synchronous>, transform_indices = @transform_4, window_bounds = array<i64: 1, 16>}, {pipeline_mode = #tpu.pipeline_mode<synchronous>, transform_indices = @transform_5, window_bounds = array<i64: 1, 16>}, {pipeline_mode = #tpu.pipeline_mode<synchronous>, transform_indices = @transform_6, window_bounds = array<i64: 16, 128>}, {pipeline_mode = #tpu.pipeline_mode<synchronous>, transform_indices = @transform_7, window_bounds = array<i64: 1, 128>}, {pipeline_mode = #tpu.pipeline_mode<synchronous>, transform_indices = @transform_8, window_bounds = array<i64: 1, 128>}, {pipeline_mode = #tpu.pipeline_mode<synchronous>, transform_indices = @transform_9, window_bounds = array<i64: 1, 1>}, {transform_indices = @transform_10, window_bounds = array<i64: 1, 1, 512>}]} {
    %c0 = arith.constant 0 : index
    %c0_0 = arith.constant 0 : index
    %0 = vector.load %arg1[%c0, %c0_0] : memref<512x16xf32, #tpu.memory_space<vmem>>, vector<512x16xf32>
    %c0_1 = arith.constant 0 : index
    %c0_2 = arith.constant 0 : index
    %1 = vector.load %arg2[%c0_1, %c0_2] : memref<16x16xf32, #tpu.memory_space<vmem>>, vector<16x16xf32>
    %cst = arith.constant dense<0.000000e+00> : vector<512x16xf32>
    %2 = tpu.matmul %0, %1, %cst {dimension_numbers = #tpu.dot_dimension_numbers<[1], [0], [0], [1], [0, 0, 1, 1], [], []>} : vector<512x16xf32>, vector<16x16xf32>, vector<512x16xf32> -> vector<512x16xf32>
    %c0_3 = arith.constant 0 : index
    %c0_4 = arith.constant 0 : index
    %3 = vector.load %arg3[%c0_3, %c0_4] : memref<1x16xf32, #tpu.memory_space<vmem>>, vector<1x16xf32>
    %4 = vector.broadcast %3 : vector<1x16xf32> to vector<512x16xf32>
    %5 = arith.addf %2, %4 : vector<512x16xf32>
    %c0_5 = arith.constant 0 : index
    %c0_6 = arith.constant 0 : index
    %6 = vector.load %arg4[%c0_5, %c0_6] : memref<512x16xf32, #tpu.memory_space<vmem>>, vector<512x16xf32>
    %7 = arith.addf %5, %6 : vector<512x16xf32>
    %c0_7 = arith.constant 0 : index
    %c0_8 = arith.constant 0 : index
    %8 = vector.load %arg5[%c0_7, %c0_8] : memref<1x16xf32, #tpu.memory_space<vmem>>, vector<1x16xf32>
    %9 = vector.broadcast %8 : vector<1x16xf32> to vector<512x16xf32>
    %10 = arith.mulf %7, %9 : vector<512x16xf32>
    %c0_9 = arith.constant 0 : index
    %c0_10 = arith.constant 0 : index
    %11 = vector.load %arg6[%c0_9, %c0_10] : memref<1x16xf32, #tpu.memory_space<vmem>>, vector<1x16xf32>
    %12 = vector.broadcast %11 : vector<1x16xf32> to vector<512x16xf32>
    %13 = arith.addf %10, %12 : vector<512x16xf32>
    %c0_11 = arith.constant 0 : index
    %c0_12 = arith.constant 0 : index
    %14 = vector.load %arg7[%c0_11, %c0_12] : memref<16x128xf32, #tpu.memory_space<vmem>>, vector<16x128xf32>
    %cst_13 = arith.constant dense<0.000000e+00> : vector<512x128xf32>
    %15 = tpu.matmul %13, %14, %cst_13 {dimension_numbers = #tpu.dot_dimension_numbers<[1], [0], [0], [1], [0, 0, 1, 1], [], []>} : vector<512x16xf32>, vector<16x128xf32>, vector<512x128xf32> -> vector<512x128xf32>
    %c0_14 = arith.constant 0 : index
    %c0_15 = arith.constant 0 : index
    %16 = vector.load %arg8[%c0_14, %c0_15] : memref<1x128xf32, #tpu.memory_space<vmem>>, vector<1x128xf32>
    %17 = vector.broadcast %16 : vector<1x128xf32> to vector<512x128xf32>
    %18 = arith.addf %15, %17 : vector<512x128xf32>
    %cst_16 = arith.constant 0.000000e+00 : f32
    %19 = vector.broadcast %cst_16 : f32 to vector<512x128xf32>
    %20 = arith.maximumf %18, %19 : vector<512x128xf32>
    %c0_17 = arith.constant 0 : index
    %c0_18 = arith.constant 0 : index
    %21 = vector.load %arg9[%c0_17, %c0_18] : memref<1x128xf32, #tpu.memory_space<vmem>>, vector<1x128xf32>
    %22 = tpu.transpose %20, [1, 0] : vector<512x128xf32> -> vector<128x512xf32>
    %cst_19 = arith.constant dense<0.000000e+00> : vector<1x512xf32>
    %23 = tpu.matmul %21, %22, %cst_19 {dimension_numbers = #tpu.dot_dimension_numbers<[1], [0], [0], [1], [0, 0, 1, 1], [], []>} : vector<1x128xf32>, vector<128x512xf32>, vector<1x512xf32> -> vector<1x512xf32>
    %c0_20 = arith.constant 0 : index
    %c0_21 = arith.constant 0 : index
    %24 = vector.load %arg10[%c0_20, %c0_21] : memref<1x1xf32, #tpu.memory_space<vmem>>, vector<1x1xf32>
    %25 = vector.broadcast %24 : vector<1x1xf32> to vector<1x512xf32>
    %26 = arith.addf %23, %25 : vector<1x512xf32>
    %c0_22 = arith.constant 0 : index
    %c0_23 = arith.constant 0 : index
    %c0_24 = arith.constant 0 : index
    %27 = vector.load %arg11[%c0_22, %c0_23, %c0_24] : memref<1x1x512xf32, #tpu.memory_space<vmem>>, vector<1x1x512xf32>
    %28 = vector.shape_cast %27 : vector<1x1x512xf32> to vector<1x512xf32>
    %29 = vector.shape_cast %26 : vector<1x512xf32> to vector<1x1x512xf32>
    tpu.vector_store %arg11[%c0_22, %c0_23, %c0_24], %29 {strides = array<i32>} : memref<1x1x512xf32, #tpu.memory_space<vmem>>, vector<1x1x512xf32>,
    return
  }
  func.func @transform_0(%arg0: i32) -> (i32, i32) {
    %c0_i32 = arith.constant 0 : i32
    %c0_i32_0 = arith.constant 0 : i32
    return %arg0, %c0_i32 : i32, i32
  }
  func.func @transform_1(%arg0: i32) -> (i32, i32) {
    %c0_i32 = arith.constant 0 : i32
    %c0_i32_0 = arith.constant 0 : i32
    %c0_i32_1 = arith.constant 0 : i32
    return %c0_i32, %c0_i32_0 : i32, i32
  }
  func.func @transform_2(%arg0: i32) -> (i32, i32) {
    %c0_i32 = arith.constant 0 : i32
    %c0_i32_0 = arith.constant 0 : i32
    %c0_i32_1 = arith.constant 0 : i32
    return %c0_i32, %c0_i32_0 : i32, i32
  }
  func.func @transform_3(%arg0: i32) -> (i32, i32) {
    %c0_i32 = arith.constant 0 : i32
    %c0_i32_0 = arith.constant 0 : i32
    return %arg0, %c0_i32 : i32, i32
  }
  func.func @transform_4(%arg0: i32) -> (i32, i32) {
    %c0_i32 = arith.constant 0 : i32
    %c0_i32_0 = arith.constant 0 : i32
    %c0_i32_1 = arith.constant 0 : i32
    return %c0_i32, %c0_i32_0 : i32, i32
  }
  func.func @transform_5(%arg0: i32) -> (i32, i32) {
    %c0_i32 = arith.constant 0 : i32
    %c0_i32_0 = arith.constant 0 : i32
    %c0_i32_1 = arith.constant 0 : i32
    return %c0_i32, %c0_i32_0 : i32, i32
  }
  func.func @transform_6(%arg0: i32) -> (i32, i32) {
    %c0_i32 = arith.constant 0 : i32
    %c0_i32_0 = arith.constant 0 : i32
    %c0_i32_1 = arith.constant 0 : i32
    return %c0_i32, %c0_i32_0 : i32, i32
  }
  func.func @transform_7(%arg0: i32) -> (i32, i32) {
    %c0_i32 = arith.constant 0 : i32
    %c0_i32_0 = arith.constant 0 : i32
    %c0_i32_1 = arith.constant 0 : i32
    return %c0_i32, %c0_i32_0 : i32, i32
  }
  func.func @transform_8(%arg0: i32) -> (i32, i32) {
    %c0_i32 = arith.constant 0 : i32
    %c0_i32_0 = arith.constant 0 : i32
    %c0_i32_1 = arith.constant 0 : i32
    return %c0_i32, %c0_i32_0 : i32, i32
  }
  func.func @transform_9(%arg0: i32) -> (i32, i32) {
    %c0_i32 = arith.constant 0 : i32
    %c0_i32_0 = arith.constant 0 : i32
    %c0_i32_1 = arith.constant 0 : i32
    return %c0_i32, %c0_i32_0 : i32, i32
  }
  func.func @transform_10(%arg0: i32) -> (i32, i32, i32) {
    %c0_i32 = arith.constant 0 : i32
    %c0_i32_0 = arith.constant 0 : i32
    %c0_i32_1 = arith.constant 0 : i32
    return %arg0, %c0_i32, %c0_i32_0 : i32, i32, i32
  }
}

</mosaic_0001>

<llo_original>
// kernel: simple_block2d.9
$region0: #{simple_block2d.9}
  #allocation0 [shape = 'u32[]', space=smem, size = 0x4, offset = 0x4, fixed_abs, tag = 'smem constant byte address 0x4 - core index']
  #allocation1 [shape = 'u32[144,128]{1,0:T(1,128)}', space=vmem, size = 0x12000, scoped, tag = 'internal scratch']
  %s0 = inlined_call_operand.vmem [shape: f32[512,3], index: 0, kind: input, shape index: {}]
  %s1 = inlined_call_operand.vmem [shape: f32[3,16], index: 1, kind: input, shape index: {}]
  %s2 = inlined_call_operand.vmem [shape: f32[1,16], index: 2, kind: input, shape index: {}]
  %s3 = inlined_call_operand.vmem [shape: f32[512,16], index: 3, kind: output, shape index: {}]
  %s4 = sld [smem:[#allocation0]]
  $region22: #{simple_block2d.9} parent=0
    _
  %s6 = ssub.s32 1, %s4
  %s7 = scalar_select 0, %s6, %s4
  // Predicated region
  $region2: #{simple_block2d.9} parent=0 // pred_check
    _
  $region3: #{simple_block2d.9} parent=0 // pred_check_branch
    %9 = sbr.rel (0) target = $region5
  $region4: #{simple_block2d.9} parent=0 // pred_region
    _
  $region5: #{simple_block2d.9} parent=0 // pred_fallthru
    _
  // Predicated region
  $region6: #{simple_block2d.9} parent=0 // pred_check
    _
  $region7: #{simple_block2d.9} parent=0 // pred_check_branch
    %11 = sbr.rel (0) target = $region9
  $region8: #{simple_block2d.9} parent=0 // pred_region
    _
  $region9: #{simple_block2d.9} parent=0 // pred_fallthru
    _
  // Predicated region
  $region10: #{simple_block2d.9} parent=0 // pred_check
    _
  $region11: #{simple_block2d.9} parent=0 // pred_check_branch
    %13 = sbr.rel (0) target = $region13
  $region12: #{simple_block2d.9} parent=0 // pred_region
    _
  $region13: #{simple_block2d.9} parent=0 // pred_fallthru
    _
  %v14 = vld [vmem:[%s0] sm:$0xff]
  %v15 = vld [vmem:[%s0 + $0x8] sm:$0xff]
  %v16 = vld [vmem:[%s0 + $0x10] sm:$0xff]
  %v17 = vld [vmem:[%s0 + $0x18] sm:$0xff]
  %v18 = vld [vmem:[%s0 + $0x20] sm:$0xff]
  %v19 = vld [vmem:[%s0 + $0x28] sm:$0xff]
  %v20 = vld [vmem:[%s0 + $0x30] sm:$0xff]
  %v21 = vld [vmem:[%s0 + $0x38] sm:$0xff]
  %v22 = vld [vmem:[%s0 + $0x40] sm:$0xff]
  %v23 = vld [vmem:[%s0 + $0x48] sm:$0xff]
  %v24 = vld [vmem:[%s0 + $0x50] sm:$0xff]
  %v25 = vld [vmem:[%s0 + $0x58] sm:$0xff]
  %v26 = vld [vmem:[%s0 + $0x60] sm:$0xff]
  %v27 = vld [vmem:[%s0 + $0x68] sm:$0xff]
  %v28 = vld [vmem:[%s0 + $0x70] sm:$0xff]
  %v29 = vld [vmem:[%s0 + $0x78] sm:$0xff]
  %v30 = vld [vmem:[%s0 + $0x80] sm:$0xff]
  %v31 = vld [vmem:[%s0 + $0x88] sm:$0xff]
  %v32 = vld [vmem:[%s0 + $0x90] sm:$0xff]
  %v33 = vld [vmem:[%s0 + $0x98] sm:$0xff]
  %v34 = vld [vmem:[%s0 + $0xa0] sm:$0xff]
  %v35 = vld [vmem:[%s0 + $0xa8] sm:$0xff]
  %v36 = vld [vmem:[%s0 + $0xb0] sm:$0xff]
  %v37 = vld [vmem:[%s0 + $0xb8] sm:$0xff]
  %v38 = vld [vmem:[%s0 + $0xc0] sm:$0xff]
  %v39 = vld [vmem:[%s0 + $0xc8] sm:$0xff]
  %v40 = vld [vmem:[%s0 + $0xd0] sm:$0xff]
  %v41 = vld [vmem:[%s0 + $0xd8] sm:$0xff]
  %v42 = vld [vmem:[%s0 + $0xe0] sm:$0xff]
  %v43 = vld [vmem:[%s0 + $0xe8] sm:$0xff]
  %v44 = vld [vmem:[%s0 + $0xf0] sm:$0xff]
  %v45 = vld [vmem:[%s0 + $0xf8] sm:$0xff]
  %v46 = vld [vmem:[%s0 + $0x100] sm:$0xff]
  %v47 = vld [vmem:[%s0 + $0x108] sm:$0xff]
  %v48 = vld [vmem:[%s0 + $0x110] sm:$0xff]
  %v49 = vld [vmem:[%s0 + $0x118] sm:$0xff]
  %v50 = vld [vmem:[%s0 + $0x120] sm:$0xff]
  %v51 = vld [vmem:[%s0 + $0x128] sm:$0xff]
  %v52 = vld [vmem:[%s0 + $0x130] sm:$0xff]
  %v53 = vld [vmem:[%s0 + $0x138] sm:$0xff]
  %v54 = vld [vmem:[%s0 + $0x140] sm:$0xff]
  %v55 = vld [vmem:[%s0 + $0x148] sm:$0xff]
  %v56 = vld [vmem:[%s0 + $0x150] sm:$0xff]
  %v57 = vld [vmem:[%s0 + $0x158] sm:$0xff]
  %v58 = vld [vmem:[%s0 + $0x160] sm:$0xff]
  %v59 = vld [vmem:[%s0 + $0x168] sm:$0xff]
  %v60 = vld [vmem:[%s0 + $0x170] sm:$0xff]
  %v61 = vld [vmem:[%s0 + $0x178] sm:$0xff]
  %v62 = vld [vmem:[%s0 + $0x180] sm:$0xff]
  %v63 = vld [vmem:[%s0 + $0x188] sm:$0xff]
  %v64 = vld [vmem:[%s0 + $0x190] sm:$0xff]
  %v65 = vld [vmem:[%s0 + $0x198] sm:$0xff]
  %v66 = vld [vmem:[%s0 + $0x1a0] sm:$0xff]
  %v67 = vld [vmem:[%s0 + $0x1a8] sm:$0xff]
  %v68 = vld [vmem:[%s0 + $0x1b0] sm:$0xff]
  %v69 = vld [vmem:[%s0 + $0x1b8] sm:$0xff]
  %v70 = vld [vmem:[%s0 + $0x1c0] sm:$0xff]
  %v71 = vld [vmem:[%s0 + $0x1c8] sm:$0xff]
  %v72 = vld [vmem:[%s0 + $0x1d0] sm:$0xff]
  %v73 = vld [vmem:[%s0 + $0x1d8] sm:$0xff]
  %v74 = vld [vmem:[%s0 + $0x1e0] sm:$0xff]
  %v75 = vld [vmem:[%s0 + $0x1e8] sm:$0xff]
  %v76 = vld [vmem:[%s0 + $0x1f0] sm:$0xff]
  %v77 = vld [vmem:[%s0 + $0x1f8] sm:$0xff]
  %v78 = vld [vmem:[%s1] sm:$0x7]
  %v79 = vld [vmem:[%s2] sm:$0x1]
  %v81 = vlaneseq
  %v82 = vshrl.u32 %v81, 7
  %v83 = vsub.s32 0, %v82
  %v84 = vrot.slane %v79, %v83
  %vm86 = vcmask 23552
  %v88 = vsel %vm86, %v14, 0
  %v91 = vsel %vm86, %v15, 0
  %v94 = vsel %vm86, %v16, 0
  %v97 = vsel %vm86, %v17, 0
  %v100 = vsel %vm86, %v18, 0
  %v103 = vsel %vm86, %v19, 0
  %v106 = vsel %vm86, %v20, 0
  %v109 = vsel %vm86, %v21, 0
  %v112 = vsel %vm86, %v22, 0
  %v115 = vsel %vm86, %v23, 0
  %v118 = vsel %vm86, %v24, 0
  %v121 = vsel %vm86, %v25, 0
  %v124 = vsel %vm86, %v26, 0
  %v127 = vsel %vm86, %v27, 0
  %v130 = vsel %vm86, %v28, 0
  %v133 = vsel %vm86, %v29, 0
  %v136 = vsel %vm86, %v30, 0
  %v139 = vsel %vm86, %v31, 0
  %v142 = vsel %vm86, %v32, 0
  %v145 = vsel %vm86, %v33, 0
  %v148 = vsel %vm86, %v34, 0
  %v151 = vsel %vm86, %v35, 0
  %v154 = vsel %vm86, %v36, 0
  %v157 = vsel %vm86, %v37, 0
  %v160 = vsel %vm86, %v38, 0
  %v163 = vsel %vm86, %v39, 0
  %v166 = vsel %vm86, %v40, 0
  %v169 = vsel %vm86, %v41, 0
  %v172 = vsel %vm86, %v42, 0
  %v175 = vsel %vm86, %v43, 0
  %v178 = vsel %vm86, %v44, 0
  %v181 = vsel %vm86, %v45, 0
  %v184 = vsel %vm86, %v46, 0
  %v187 = vsel %vm86, %v47, 0
  %v190 = vsel %vm86, %v48, 0
  %v193 = vsel %vm86, %v49, 0
  %v196 = vsel %vm86, %v50, 0
  %v199 = vsel %vm86, %v51, 0
  %v202 = vsel %vm86, %v52, 0
  %v205 = vsel %vm86, %v53, 0
  %v208 = vsel %vm86, %v54, 0
  %v211 = vsel %vm86, %v55, 0
  %v214 = vsel %vm86, %v56, 0
  %v217 = vsel %vm86, %v57, 0
  %v220 = vsel %vm86, %v58, 0
  %v223 = vsel %vm86, %v59, 0
  %v226 = vsel %vm86, %v60, 0
  %v229 = vsel %vm86, %v61, 0
  %v232 = vsel %vm86, %v62, 0
  %v235 = vsel %vm86, %v63, 0
  %v238 = vsel %vm86, %v64, 0
  %v241 = vsel %vm86, %v65, 0
  %v244 = vsel %vm86, %v66, 0
  %v247 = vsel %vm86, %v67, 0
  %v250 = vsel %vm86, %v68, 0
  %v253 = vsel %vm86, %v69, 0
  %v256 = vsel %vm86, %v70, 0
  %v259 = vsel %vm86, %v71, 0
  %v262 = vsel %vm86, %v72, 0
  %v265 = vsel %vm86, %v73, 0
  %v268 = vsel %vm86, %v74, 0
  %v271 = vsel %vm86, %v75, 0
  %v274 = vsel %vm86, %v76, 0
  %v277 = vsel %vm86, %v77, 0
  %vm279 = vcmask 1042432
  %v281 = vsel %vm279, %v78, 0
  %283 = vmatprep.subr.mxu0 0.0
  %284 = vmatpush1.msra.mxu0 0.0
  %285 = vmatprep.subr.mxu0 0.0
  %286 = vmatpush1.msra.mxu0 0.0
  %287 = vmatprep.subr.mxu0 0.0
  %288 = vmatpush1.msra.mxu0 0.0
  %289 = vmatprep.subr.mxu0 0.0
  %290 = vmatpush1.msra.mxu0 0.0
  %291 = vmatprep.subr.mxu0 0.0
  %292 = vmatpush1.msra.mxu0 0.0
  %293 = vmatprep.subr.mxu0 0.0
  %294 = vmatpush1.msra.mxu0 0.0
  %295 = vmatprep.subr.mxu0 0.0
  %296 = vmatpush1.msra.mxu0 0.0
  %297 = vmatprep.subr.mxu0 0.0
  %298 = vmatpush1.msra.mxu0 0.0
  %299 = vmatprep.subr.mxu0 0.0
  %300 = vmatpush1.msra.mxu0 0.0
  %301 = vmatprep.subr.mxu0 0.0
  %302 = vmatpush1.msra.mxu0 0.0
  %303 = vmatprep.subr.mxu0 0.0
  %304 = vmatpush1.msra.mxu0 0.0
  %305 = vmatprep.subr.mxu0 0.0
  %306 = vmatpush1.msra.mxu0 0.0
  %307 = vmatprep.subr.mxu0 0.0
  %308 = vmatpush1.msra.mxu0 0.0
  %309 = vmatprep.subr.mxu0 0.0
  %310 = vmatpush1.msra.mxu0 0.0
  %311 = vmatprep.subr.mxu0 0.0
  %312 = vmatpush1.msra.mxu0 0.0
  %313 = vmatprep.subr.mxu0 0.0
  %314 = vmatpush1.msra.mxu0 %v281
  %315 = vmatprep.subr.mxu0 0.0
  %316 = vmatpush2.msra.mxu0 0.0
  %317 = vmatprep.subr.mxu0 0.0
  %318 = vmatpush2.msra.mxu0 0.0
  %319 = vmatprep.subr.mxu0 0.0
  %320 = vmatpush2.msra.mxu0 0.0
  %321 = vmatprep.subr.mxu0 0.0
  %322 = vmatpush2.msra.mxu0 0.0
  %323 = vmatprep.subr.mxu0 0.0
  %324 = vmatpush2.msra.mxu0 0.0
  %325 = vmatprep.subr.mxu0 0.0
  %326 = vmatpush2.msra.mxu0 0.0
  %327 = vmatprep.subr.mxu0 0.0
  %328 = vmatpush2.msra.mxu0 0.0
  %329 = vmatprep.subr.mxu0 0.0
  %330 = vmatpush2.msra.mxu0 0.0
  %331 = vmatprep.subr.mxu0 0.0
  %332 = vmatpush2.msra.mxu0 0.0
  %333 = vmatprep.subr.mxu0 0.0
  %334 = vmatpush2.msra.mxu0 0.0
  %335 = vmatprep.subr.mxu0 0.0
  %336 = vmatpush2.msra.mxu0 0.0
  %337 = vmatprep.subr.mxu0 0.0
  %338 = vmatpush2.msra.mxu0 0.0
  %339 = vmatprep.subr.mxu0 0.0
  %340 = vmatpush2.msra.mxu0 0.0
  %341 = vmatprep.subr.mxu0 0.0
  %342 = vmatpush2.msra.mxu0 0.0
  %343 = vmatprep.subr.mxu0 0.0
  %344 = vmatpush2.msra.mxu0 0.0
  %345 = vmatprep.subr.mxu0 0.0
  %346 = vmatpush2.msra.mxu0 0.0
  %347 = vmatprep.mubr.f32.mxu0 0.0
  %348 = vmatmul.mubr.f32.gmra.mxu0 %v88
  %v349 = vpop.f32.mrf.mxu0
  %v350 = vadd.f32 %v84, %v349
  %v351 = vpop.f32.mrf.mxu0
  %352 = vmatprep.mubr.f32.mxu0 0.0
  %353 = vmatmul.mubr.f32.gmra.mxu0 %v91
  %v354 = vpop.f32.mrf.mxu0
  %v355 = vadd.f32 %v84, %v354
  %v356 = vpop.f32.mrf.mxu0
  %357 = vmatprep.mubr.f32.mxu0 0.0
  %358 = vmatmul.mubr.f32.gmra.mxu0 %v94
  %v359 = vpop.f32.mrf.mxu0
  %v360 = vadd.f32 %v84, %v359
  %v361 = vpop.f32.mrf.mxu0
  %362 = vmatprep.mubr.f32.mxu0 0.0
  %363 = vmatmul.mubr.f32.gmra.mxu0 %v97
  %v364 = vpop.f32.mrf.mxu0
  %v365 = vadd.f32 %v84, %v364
  %v366 = vpop.f32.mrf.mxu0
  %367 = vmatprep.mubr.f32.mxu0 0.0
  %368 = vmatmul.mubr.f32.gmra.mxu0 %v100
  %v369 = vpop.f32.mrf.mxu0
  %v370 = vadd.f32 %v84, %v369
  %v371 = vpop.f32.mrf.mxu0
  %372 = vmatprep.mubr.f32.mxu0 0.0
  %373 = vmatmul.mubr.f32.gmra.mxu0 %v103
  %v374 = vpop.f32.mrf.mxu0
  %v375 = vadd.f32 %v84, %v374
  %v376 = vpop.f32.mrf.mxu0
  %377 = vmatprep.mubr.f32.mxu0 0.0
  %378 = vmatmul.mubr.f32.gmra.mxu0 %v106
  %v379 = vpop.f32.mrf.mxu0
  %v380 = vadd.f32 %v84, %v379
  %v381 = vpop.f32.mrf.mxu0
  %382 = vmatprep.mubr.f32.mxu0 0.0
  %383 = vmatmul.mubr.f32.gmra.mxu0 %v109
  %v384 = vpop.f32.mrf.mxu0
  %v385 = vadd.f32 %v84, %v384
  %v386 = vpop.f32.mrf.mxu0
  %387 = vmatprep.mubr.f32.mxu0 0.0
  %388 = vmatmul.mubr.f32.gmra.mxu0 %v112
  %v389 = vpop.f32.mrf.mxu0
  %v390 = vadd.f32 %v84, %v389
  %v391 = vpop.f32.mrf.mxu0
  %392 = vmatprep.mubr.f32.mxu0 0.0
  %393 = vmatmul.mubr.f32.gmra.mxu0 %v115
  %v394 = vpop.f32.mrf.mxu0
  %v395 = vadd.f32 %v84, %v394
  %v396 = vpop.f32.mrf.mxu0
  %397 = vmatprep.mubr.f32.mxu0 0.0
  %398 = vmatmul.mubr.f32.gmra.mxu0 %v118
  %v399 = vpop.f32.mrf.mxu0
  %v400 = vadd.f32 %v84, %v399
  %v401 = vpop.f32.mrf.mxu0
  %402 = vmatprep.mubr.f32.mxu0 0.0
  %403 = vmatmul.mubr.f32.gmra.mxu0 %v121
  %v404 = vpop.f32.mrf.mxu0
  %v405 = vadd.f32 %v84, %v404
  %v406 = vpop.f32.mrf.mxu0
  %407 = vmatprep.mubr.f32.mxu0 0.0
  %408 = vmatmul.mubr.f32.gmra.mxu0 %v124
  %v409 = vpop.f32.mrf.mxu0
  %v410 = vadd.f32 %v84, %v409
  %v411 = vpop.f32.mrf.mxu0
  %412 = vmatprep.mubr.f32.mxu0 0.0
  %413 = vmatmul.mubr.f32.gmra.mxu0 %v127
  %v414 = vpop.f32.mrf.mxu0
  %v415 = vadd.f32 %v84, %v414
  %v416 = vpop.f32.mrf.mxu0
  %417 = vmatprep.mubr.f32.mxu0 0.0
  %418 = vmatmul.mubr.f32.gmra.mxu0 %v130
  %v419 = vpop.f32.mrf.mxu0
  %v420 = vadd.f32 %v84, %v419
  %v421 = vpop.f32.mrf.mxu0
  %422 = vmatprep.mubr.f32.mxu0 0.0
  %423 = vmatmul.mubr.f32.gmra.mxu0 %v133
  %v424 = vpop.f32.mrf.mxu0
  %v425 = vadd.f32 %v84, %v424
  %v426 = vpop.f32.mrf.mxu0
  %427 = vmatprep.mubr.f32.mxu0 0.0
  %428 = vmatmul.mubr.f32.gmra.mxu0 %v136
  %v429 = vpop.f32.mrf.mxu0
  %v430 = vadd.f32 %v84, %v429
  %v431 = vpop.f32.mrf.mxu0
  %432 = vmatprep.mubr.f32.mxu0 0.0
  %433 = vmatmul.mubr.f32.gmra.mxu0 %v139
  %v434 = vpop.f32.mrf.mxu0
  %v435 = vadd.f32 %v84, %v434
  %v436 = vpop.f32.mrf.mxu0
  %437 = vmatprep.mubr.f32.mxu0 0.0
  %438 = vmatmul.mubr.f32.gmra.mxu0 %v142
  %v439 = vpop.f32.mrf.mxu0
  %v440 = vadd.f32 %v84, %v439
  %v441 = vpop.f32.mrf.mxu0
  %442 = vmatprep.mubr.f32.mxu0 0.0
  %443 = vmatmul.mubr.f32.gmra.mxu0 %v145
  %v444 = vpop.f32.mrf.mxu0
  %v445 = vadd.f32 %v84, %v444
  %v446 = vpop.f32.mrf.mxu0
  %447 = vmatprep.mubr.f32.mxu0 0.0
  %448 = vmatmul.mubr.f32.gmra.mxu0 %v148
  %v449 = vpop.f32.mrf.mxu0
  %v450 = vadd.f32 %v84, %v449
  %v451 = vpop.f32.mrf.mxu0
  %452 = vmatprep.mubr.f32.mxu0 0.0
  %453 = vmatmul.mubr.f32.gmra.mxu0 %v151
  %v454 = vpop.f32.mrf.mxu0
  %v455 = vadd.f32 %v84, %v454
  %v456 = vpop.f32.mrf.mxu0
  %457 = vmatprep.mubr.f32.mxu0 0.0
  %458 = vmatmul.mubr.f32.gmra.mxu0 %v154
  %v459 = vpop.f32.mrf.mxu0
  %v460 = vadd.f32 %v84, %v459
  %v461 = vpop.f32.mrf.mxu0
  %462 = vmatprep.mubr.f32.mxu0 0.0
  %463 = vmatmul.mubr.f32.gmra.mxu0 %v157
  %v464 = vpop.f32.mrf.mxu0
  %v465 = vadd.f32 %v84, %v464
  %v466 = vpop.f32.mrf.mxu0
  %467 = vmatprep.mubr.f32.mxu0 0.0
  %468 = vmatmul.mubr.f32.gmra.mxu0 %v160
  %v469 = vpop.f32.mrf.mxu0
  %v470 = vadd.f32 %v84, %v469
  %v471 = vpop.f32.mrf.mxu0
  %472 = vmatprep.mubr.f32.mxu0 0.0
  %473 = vmatmul.mubr.f32.gmra.mxu0 %v163
  %v474 = vpop.f32.mrf.mxu0
  %v475 = vadd.f32 %v84, %v474
  %v476 = vpop.f32.mrf.mxu0
  %477 = vmatprep.mubr.f32.mxu0 0.0
  %478 = vmatmul.mubr.f32.gmra.mxu0 %v166
  %v479 = vpop.f32.mrf.mxu0
  %v480 = vadd.f32 %v84, %v479
  %v481 = vpop.f32.mrf.mxu0
  %482 = vmatprep.mubr.f32.mxu0 0.0
  %483 = vmatmul.mubr.f32.gmra.mxu0 %v169
  %v484 = vpop.f32.mrf.mxu0
  %v485 = vadd.f32 %v84, %v484
  %v486 = vpop.f32.mrf.mxu0
  %487 = vmatprep.mubr.f32.mxu0 0.0
  %488 = vmatmul.mubr.f32.gmra.mxu0 %v172
  %v489 = vpop.f32.mrf.mxu0
  %v490 = vadd.f32 %v84, %v489
  %v491 = vpop.f32.mrf.mxu0
  %492 = vmatprep.mubr.f32.mxu0 0.0
  %493 = vmatmul.mubr.f32.gmra.mxu0 %v175
  %v494 = vpop.f32.mrf.mxu0
  %v495 = vadd.f32 %v84, %v494
  %v496 = vpop.f32.mrf.mxu0
  %497 = vmatprep.mubr.f32.mxu0 0.0
  %498 = vmatmul.mubr.f32.gmra.mxu0 %v178
  %v499 = vpop.f32.mrf.mxu0
  %v500 = vadd.f32 %v84, %v499
  %v501 = vpop.f32.mrf.mxu0
  %502 = vmatprep.mubr.f32.mxu0 0.0
  %503 = vmatmul.mubr.f32.gmra.mxu0 %v181
  %v504 = vpop.f32.mrf.mxu0
  %v505 = vadd.f32 %v84, %v504
  %v506 = vpop.f32.mrf.mxu0
  %507 = vmatprep.mubr.f32.mxu0 0.0
  %508 = vmatmul.mubr.f32.gmra.mxu0 %v184
  %v509 = vpop.f32.mrf.mxu0
  %v510 = vadd.f32 %v84, %v509
  %v511 = vpop.f32.mrf.mxu0
  %512 = vmatprep.mubr.f32.mxu0 0.0
  %513 = vmatmul.mubr.f32.gmra.mxu0 %v187
  %v514 = vpop.f32.mrf.mxu0
  %v515 = vadd.f32 %v84, %v514
  %v516 = vpop.f32.mrf.mxu0
  %517 = vmatprep.mubr.f32.mxu0 0.0
  %518 = vmatmul.mubr.f32.gmra.mxu0 %v190
  %v519 = vpop.f32.mrf.mxu0
  %v520 = vadd.f32 %v84, %v519
  %v521 = vpop.f32.mrf.mxu0
  %522 = vmatprep.mubr.f32.mxu0 0.0
  %523 = vmatmul.mubr.f32.gmra.mxu0 %v193
  %v524 = vpop.f32.mrf.mxu0
  %v525 = vadd.f32 %v84, %v524
  %v526 = vpop.f32.mrf.mxu0
  %527 = vmatprep.mubr.f32.mxu0 0.0
  %528 = vmatmul.mubr.f32.gmra.mxu0 %v196
  %v529 = vpop.f32.mrf.mxu0
  %v530 = vadd.f32 %v84, %v529
  %v531 = vpop.f32.mrf.mxu0
  %532 = vmatprep.mubr.f32.mxu0 0.0
  %533 = vmatmul.mubr.f32.gmra.mxu0 %v199
  %v534 = vpop.f32.mrf.mxu0
  %v535 = vadd.f32 %v84, %v534
  %v536 = vpop.f32.mrf.mxu0
  %537 = vmatprep.mubr.f32.mxu0 0.0
  %538 = vmatmul.mubr.f32.gmra.mxu0 %v202
  %v539 = vpop.f32.mrf.mxu0
  %v540 = vadd.f32 %v84, %v539
  %v541 = vpop.f32.mrf.mxu0
  %542 = vmatprep.mubr.f32.mxu0 0.0
  %543 = vmatmul.mubr.f32.gmra.mxu0 %v205
  %v544 = vpop.f32.mrf.mxu0
  %v545 = vadd.f32 %v84, %v544
  %v546 = vpop.f32.mrf.mxu0
  %547 = vmatprep.mubr.f32.mxu0 0.0
  %548 = vmatmul.mubr.f32.gmra.mxu0 %v208
  %v549 = vpop.f32.mrf.mxu0
  %v550 = vadd.f32 %v84, %v549
  %v551 = vpop.f32.mrf.mxu0
  %552 = vmatprep.mubr.f32.mxu0 0.0
  %553 = vmatmul.mubr.f32.gmra.mxu0 %v211
  %v554 = vpop.f32.mrf.mxu0
  %v555 = vadd.f32 %v84, %v554
  %v556 = vpop.f32.mrf.mxu0
  %557 = vmatprep.mubr.f32.mxu0 0.0
  %558 = vmatmul.mubr.f32.gmra.mxu0 %v214
  %v559 = vpop.f32.mrf.mxu0
  %v560 = vadd.f32 %v84, %v559
  %v561 = vpop.f32.mrf.mxu0
  %562 = vmatprep.mubr.f32.mxu0 0.0
  %563 = vmatmul.mubr.f32.gmra.mxu0 %v217
  %v564 = vpop.f32.mrf.mxu0
  %v565 = vadd.f32 %v84, %v564
  %v566 = vpop.f32.mrf.mxu0
  %567 = vmatprep.mubr.f32.mxu0 0.0
  %568 = vmatmul.mubr.f32.gmra.mxu0 %v220
  %v569 = vpop.f32.mrf.mxu0
  %v570 = vadd.f32 %v84, %v569
  %v571 = vpop.f32.mrf.mxu0
  %572 = vmatprep.mubr.f32.mxu0 0.0
  %573 = vmatmul.mubr.f32.gmra.mxu0 %v223
  %v574 = vpop.f32.mrf.mxu0
  %v575 = vadd.f32 %v84, %v574
  %v576 = vpop.f32.mrf.mxu0
  %577 = vmatprep.mubr.f32.mxu0 0.0
  %578 = vmatmul.mubr.f32.gmra.mxu0 %v226
  %v579 = vpop.f32.mrf.mxu0
  %v580 = vadd.f32 %v84, %v579
  %v581 = vpop.f32.mrf.mxu0
  %582 = vmatprep.mubr.f32.mxu0 0.0
  %583 = vmatmul.mubr.f32.gmra.mxu0 %v229
  %v584 = vpop.f32.mrf.mxu0
  %v585 = vadd.f32 %v84, %v584
  %v586 = vpop.f32.mrf.mxu0
  %587 = vmatprep.mubr.f32.mxu0 0.0
  %588 = vmatmul.mubr.f32.gmra.mxu0 %v232
  %v589 = vpop.f32.mrf.mxu0
  %v590 = vadd.f32 %v84, %v589
  %v591 = vpop.f32.mrf.mxu0
  %592 = vmatprep.mubr.f32.mxu0 0.0
  %593 = vmatmul.mubr.f32.gmra.mxu0 %v235
  %v594 = vpop.f32.mrf.mxu0
  %v595 = vadd.f32 %v84, %v594
  %v596 = vpop.f32.mrf.mxu0
  %597 = vmatprep.mubr.f32.mxu0 0.0
  %598 = vmatmul.mubr.f32.gmra.mxu0 %v238
  %v599 = vpop.f32.mrf.mxu0
  %v600 = vadd.f32 %v84, %v599
  %v601 = vpop.f32.mrf.mxu0
  %602 = vmatprep.mubr.f32.mxu0 0.0
  %603 = vmatmul.mubr.f32.gmra.mxu0 %v241
  %v604 = vpop.f32.mrf.mxu0
  %v605 = vadd.f32 %v84, %v604
  %v606 = vpop.f32.mrf.mxu0
  %607 = vmatprep.mubr.f32.mxu0 0.0
  %608 = vmatmul.mubr.f32.gmra.mxu0 %v244
  %v609 = vpop.f32.mrf.mxu0
  %v610 = vadd.f32 %v84, %v609
  %v611 = vpop.f32.mrf.mxu0
  %612 = vmatprep.mubr.f32.mxu0 0.0
  %613 = vmatmul.mubr.f32.gmra.mxu0 %v247
  %v614 = vpop.f32.mrf.mxu0
  %v615 = vadd.f32 %v84, %v614
  %v616 = vpop.f32.mrf.mxu0
  %617 = vmatprep.mubr.f32.mxu0 0.0
  %618 = vmatmul.mubr.f32.gmra.mxu0 %v250
  %v619 = vpop.f32.mrf.mxu0
  %v620 = vadd.f32 %v84, %v619
  %v621 = vpop.f32.mrf.mxu0
  %622 = vmatprep.mubr.f32.mxu0 0.0
  %623 = vmatmul.mubr.f32.gmra.mxu0 %v253
  %v624 = vpop.f32.mrf.mxu0
  %v625 = vadd.f32 %v84, %v624
  %v626 = vpop.f32.mrf.mxu0
  %627 = vmatprep.mubr.f32.mxu0 0.0
  %628 = vmatmul.mubr.f32.gmra.mxu0 %v256
  %v629 = vpop.f32.mrf.mxu0
  %v630 = vadd.f32 %v84, %v629
  %v631 = vpop.f32.mrf.mxu0
  %632 = vmatprep.mubr.f32.mxu0 0.0
  %633 = vmatmul.mubr.f32.gmra.mxu0 %v259
  %v634 = vpop.f32.mrf.mxu0
  %v635 = vadd.f32 %v84, %v634
  %v636 = vpop.f32.mrf.mxu0
  %637 = vmatprep.mubr.f32.mxu0 0.0
  %638 = vmatmul.mubr.f32.gmra.mxu0 %v262
  %v639 = vpop.f32.mrf.mxu0
  %v640 = vadd.f32 %v84, %v639
  %v641 = vpop.f32.mrf.mxu0
  %642 = vmatprep.mubr.f32.mxu0 0.0
  %643 = vmatmul.mubr.f32.gmra.mxu0 %v265
  %v644 = vpop.f32.mrf.mxu0
  %v645 = vadd.f32 %v84, %v644
  %v646 = vpop.f32.mrf.mxu0
  %647 = vmatprep.mubr.f32.mxu0 0.0
  %648 = vmatmul.mubr.f32.gmra.mxu0 %v268
  %v649 = vpop.f32.mrf.mxu0
  %v650 = vadd.f32 %v84, %v649
  %v651 = vpop.f32.mrf.mxu0
  %652 = vmatprep.mubr.f32.mxu0 0.0
  %653 = vmatmul.mubr.f32.gmra.mxu0 %v271
  %v654 = vpop.f32.mrf.mxu0
  %v655 = vadd.f32 %v84, %v654
  %v656 = vpop.f32.mrf.mxu0
  %657 = vmatprep.mubr.f32.mxu0 0.0
  %658 = vmatmul.mubr.f32.gmra.mxu0 %v274
  %v659 = vpop.f32.mrf.mxu0
  %v660 = vadd.f32 %v84, %v659
  %v661 = vpop.f32.mrf.mxu0
  %662 = vmatprep.mubr.f32.mxu0 0.0
  %663 = vmatmul.mubr.f32.gmra.mxu0 %v277
  %v664 = vpop.f32.mrf.mxu0
  %v665 = vadd.f32 %v84, %v664
  %v666 = vpop.f32.mrf.mxu0
  %667 = vdwg.mxu0
  %vm668 = vcmask 130048
  %669 = vst.msk [vmem:[%s3] sm:$0xff] %vm668, %v350
  %670 = vst.msk [vmem:[%s3 + $0x8] sm:$0xff] %vm668, %v355
  %671 = vst.msk [vmem:[%s3 + $0x10] sm:$0xff] %vm668, %v360
  %672 = vst.msk [vmem:[%s3 + $0x18] sm:$0xff] %vm668, %v365
  %673 = vst.msk [vmem:[%s3 + $0x20] sm:$0xff] %vm668, %v370
  %674 = vst.msk [vmem:[%s3 + $0x28] sm:$0xff] %vm668, %v375
  %675 = vst.msk [vmem:[%s3 + $0x30] sm:$0xff] %vm668, %v380
  %676 = vst.msk [vmem:[%s3 + $0x38] sm:$0xff] %vm668, %v385
  %677 = vst.msk [vmem:[%s3 + $0x40] sm:$0xff] %vm668, %v390
  %678 = vst.msk [vmem:[%s3 + $0x48] sm:$0xff] %vm668, %v395
  %679 = vst.msk [vmem:[%s3 + $0x50] sm:$0xff] %vm668, %v400
  %680 = vst.msk [vmem:[%s3 + $0x58] sm:$0xff] %vm668, %v405
  %681 = vst.msk [vmem:[%s3 + $0x60] sm:$0xff] %vm668, %v410
  %682 = vst.msk [vmem:[%s3 + $0x68] sm:$0xff] %vm668, %v415
  %683 = vst.msk [vmem:[%s3 + $0x70] sm:$0xff] %vm668, %v420
  %684 = vst.msk [vmem:[%s3 + $0x78] sm:$0xff] %vm668, %v425
  %685 = vst.msk [vmem:[%s3 + $0x80] sm:$0xff] %vm668, %v430
  %686 = vst.msk [vmem:[%s3 + $0x88] sm:$0xff] %vm668, %v435
  %687 = vst.msk [vmem:[%s3 + $0x90] sm:$0xff] %vm668, %v440
  %688 = vst.msk [vmem:[%s3 + $0x98] sm:$0xff] %vm668, %v445
  %689 = vst.msk [vmem:[%s3 + $0xa0] sm:$0xff] %vm668, %v450
  %690 = vst.msk [vmem:[%s3 + $0xa8] sm:$0xff] %vm668, %v455
  %691 = vst.msk [vmem:[%s3 + $0xb0] sm:$0xff] %vm668, %v460
  %692 = vst.msk [vmem:[%s3 + $0xb8] sm:$0xff] %vm668, %v465
  %693 = vst.msk [vmem:[%s3 + $0xc0] sm:$0xff] %vm668, %v470
  %694 = vst.msk [vmem:[%s3 + $0xc8] sm:$0xff] %vm668, %v475
  %695 = vst.msk [vmem:[%s3 + $0xd0] sm:$0xff] %vm668, %v480
  %696 = vst.msk [vmem:[%s3 + $0xd8] sm:$0xff] %vm668, %v485
  %697 = vst.msk [vmem:[%s3 + $0xe0] sm:$0xff] %vm668, %v490
  %698 = vst.msk [vmem:[%s3 + $0xe8] sm:$0xff] %vm668, %v495
  %699 = vst.msk [vmem:[%s3 + $0xf0] sm:$0xff] %vm668, %v500
  %700 = vst.msk [vmem:[%s3 + $0xf8] sm:$0xff] %vm668, %v505
  %701 = vst.msk [vmem:[%s3 + $0x100] sm:$0xff] %vm668, %v510
  %702 = vst.msk [vmem:[%s3 + $0x108] sm:$0xff] %vm668, %v515
  %703 = vst.msk [vmem:[%s3 + $0x110] sm:$0xff] %vm668, %v520
  %704 = vst.msk [vmem:[%s3 + $0x118] sm:$0xff] %vm668, %v525
  %705 = vst.msk [vmem:[%s3 + $0x120] sm:$0xff] %vm668, %v530
  %706 = vst.msk [vmem:[%s3 + $0x128] sm:$0xff] %vm668, %v535
  %707 = vst.msk [vmem:[%s3 + $0x130] sm:$0xff] %vm668, %v540
  %708 = vst.msk [vmem:[%s3 + $0x138] sm:$0xff] %vm668, %v545
  %709 = vst.msk [vmem:[%s3 + $0x140] sm:$0xff] %vm668, %v550
  %710 = vst.msk [vmem:[%s3 + $0x148] sm:$0xff] %vm668, %v555
  %711 = vst.msk [vmem:[%s3 + $0x150] sm:$0xff] %vm668, %v560
  %712 = vst.msk [vmem:[%s3 + $0x158] sm:$0xff] %vm668, %v565
  %713 = vst.msk [vmem:[%s3 + $0x160] sm:$0xff] %vm668, %v570
  %714 = vst.msk [vmem:[%s3 + $0x168] sm:$0xff] %vm668, %v575
  %715 = vst.msk [vmem:[%s3 + $0x170] sm:$0xff] %vm668, %v580
  %716 = vst.msk [vmem:[%s3 + $0x178] sm:$0xff] %vm668, %v585
  %717 = vst.msk [vmem:[%s3 + $0x180] sm:$0xff] %vm668, %v590
  %718 = vst.msk [vmem:[%s3 + $0x188] sm:$0xff] %vm668, %v595
  %719 = vst.msk [vmem:[%s3 + $0x190] sm:$0xff] %vm668, %v600
  %720 = vst.msk [vmem:[%s3 + $0x198] sm:$0xff] %vm668, %v605
  %721 = vst.msk [vmem:[%s3 + $0x1a0] sm:$0xff] %vm668, %v610
  %722 = vst.msk [vmem:[%s3 + $0x1a8] sm:$0xff] %vm668, %v615
  %723 = vst.msk [vmem:[%s3 + $0x1b0] sm:$0xff] %vm668, %v620
  %724 = vst.msk [vmem:[%s3 + $0x1b8] sm:$0xff] %vm668, %v625
  %725 = vst.msk [vmem:[%s3 + $0x1c0] sm:$0xff] %vm668, %v630
  %726 = vst.msk [vmem:[%s3 + $0x1c8] sm:$0xff] %vm668, %v635
  %727 = vst.msk [vmem:[%s3 + $0x1d0] sm:$0xff] %vm668, %v640
  %728 = vst.msk [vmem:[%s3 + $0x1d8] sm:$0xff] %vm668, %v645
  %729 = vst.msk [vmem:[%s3 + $0x1e0] sm:$0xff] %vm668, %v650
  %730 = vst.msk [vmem:[%s3 + $0x1e8] sm:$0xff] %vm668, %v655
  %731 = vst.msk [vmem:[%s3 + $0x1f0] sm:$0xff] %vm668, %v660
  %732 = vst.msk [vmem:[%s3 + $0x1f8] sm:$0xff] %vm668, %v665
  // Predicated region
  $region14: #{simple_block2d.9} parent=0 // pred_check
    _
  $region15: #{simple_block2d.9} parent=0 // pred_check_branch
    %734 = sbr.rel (0) target = $region17
  $region16: #{simple_block2d.9} parent=0 // pred_region
    _
  $region17: #{simple_block2d.9} parent=0 // pred_fallthru
    _
  // Predicated region
  $region18: #{simple_block2d.9} parent=0 // pred_check
    _
  $region19: #{simple_block2d.9} parent=0 // pred_check_branch
    %736 = sbr.rel (0) target = $region21
  $region20: #{simple_block2d.9} parent=0 // pred_region
    _
  $region21: #{simple_block2d.9} parent=0 // pred_fallthru
    _

// kernel: simple_block2d.10
$region0: #{simple_block2d.10}
  #allocation0 [shape = 'u32[]', space=smem, size = 0x4, offset = 0x4, fixed_abs, tag = 'smem constant byte address 0x4 - core index']
  #allocation1 [shape = 'u32[144,128]{1,0:T(1,128)}', space=vmem, size = 0x12000, scoped, tag = 'internal scratch']
  %s0 = inlined_call_operand.vmem [shape: f32[2,16,2,32], index: 0, kind: input, shape index: {}]
  %s1 = inlined_call_operand.vmem [shape: f32[2,16,32,32], index: 1, kind: input, shape index: {}]
  %s2 = inlined_call_operand.vmem [shape: f32[2,16,2,32], index: 2, kind: output, shape index: {}]
  %s3 = sld [smem:[#allocation0]]
  $region41: #{simple_block2d.10} parent=0
    _
  %s5 = ssub.s32 1, %s3
  %s6 = scalar_select 0, %s5, %s3
  loop: start=0, step=1, limit=4
  $region2: #{simple_block2d.10} parent=0 // loop_pre_header
    _
  $region3: #{simple_block2d.10} parent=0 // loop_header
    %s8 = sphi 0, %s12
    %p9 = scmp.ge.s32.totalorder %s8, 4
    %s18 = sphi 0, %s20
    %s21 = sphi 0, %s18
    %s22 = sphi 0, %s21
    %s38 = sphi 0, %s22
    %s44 = sphi 0, %s46
    %s47 = sphi 0, %s44
    %s48 = sphi 0, %s47
    %s64 = sphi 0, %s48
    %s70 = sphi 0, %s72
    %s73 = sphi 0, %s70
    %s74 = sphi 0, %s73
    %s90 = sphi 0, %s74
  $region4: #{simple_block2d.10} parent=0 // loop_header_branch
    %11 = sbr.rel (%p9) target = $region8
  $region5: #{simple_block2d.10} parent=0 // loop_body
    %s13 = ssub.s32 %s8, 1
    %s14 = ssub.s32 %s8, 2
    %s15 = sadd.s32 %s8, 1
    %s16 = ssub.s32 %s8, %s15
    %p17 = scmp.eq.s32.totalorder %s16, 0
    %s19 = sadd.s32 %s18, 1
    %s20 = scalar_select %p17, %s18, %s19
    %p23 = pneg %p17
    %p24 = scmp.eq.s32.totalorder %s8, 1
    %p25 = por %p23, %p24
    %p26 = scmp.ne.s32.totalorder %s18, %s21
    %p27 = scmp.eq.s32.totalorder %s8, 0
    %p28 = por %p26, %p27
    %p29 = scmp.ne.s32.totalorder %s18, %s21
    %p30 = scmp.eq.s32.totalorder %s13, 1
    %p31 = por %p29, %p30
    %p32 = scmp.ne.s32.totalorder %s21, %s22
    %p33 = scmp.eq.s32.totalorder %s13, 0
    %p34 = por %p32, %p33
    %p35 = scmp.ne.s32.totalorder %s21, %s22
    %p36 = scmp.eq.s32.totalorder %s14, 1
    %p37 = por %p35, %p36
    %p39 = scmp.ne.s32.totalorder %s22, %s38
    %p40 = scmp.eq.s32.totalorder %s14, 0
    %p41 = por %p39, %p40
    %s42 = ssub.s32 %s8, %s15
    %p43 = scmp.eq.s32.totalorder %s42, 0
    %s45 = sadd.s32 %s44, 1
    %s46 = scalar_select %p43, %s44, %s45
    %p49 = pneg %p43
    %p50 = scmp.eq.s32.totalorder %s8, 1
    %p51 = por %p49, %p50
    %p52 = scmp.ne.s32.totalorder %s44, %s47
    %p53 = scmp.eq.s32.totalorder %s8, 0
    %p54 = por %p52, %p53
    %p55 = scmp.ne.s32.totalorder %s44, %s47
    %p56 = scmp.eq.s32.totalorder %s13, 1
    %p57 = por %p55, %p56
    %p58 = scmp.ne.s32.totalorder %s47, %s48
    %p59 = scmp.eq.s32.totalorder %s13, 0
    %p60 = por %p58, %p59
    %p61 = scmp.ne.s32.totalorder %s47, %s48
    %p62 = scmp.eq.s32.totalorder %s14, 1
    %p63 = por %p61, %p62
    %p65 = scmp.ne.s32.totalorder %s48, %s64
    %p66 = scmp.eq.s32.totalorder %s14, 0
    %p67 = por %p65, %p66
    %s68 = ssub.s32 %s8, %s15
    %p69 = scmp.eq.s32.totalorder %s68, 0
    %s71 = sadd.s32 %s70, 1
    %s72 = scalar_select %p69, %s70, %s71
    %p75 = pneg %p69
    %p76 = scmp.eq.s32.totalorder %s8, 1
    %p77 = por %p75, %p76
    %p78 = scmp.ne.s32.totalorder %s70, %s73
    %p79 = scmp.eq.s32.totalorder %s8, 0
    %p80 = por %p78, %p79
    %p81 = scmp.ne.s32.totalorder %s70, %s73
    %p82 = scmp.eq.s32.totalorder %s13, 1
    %p83 = por %p81, %p82
    %p84 = scmp.ne.s32.totalorder %s73, %s74
    %p85 = scmp.eq.s32.totalorder %s13, 0
    %p86 = por %p84, %p85
    %p87 = scmp.ne.s32.totalorder %s73, %s74
    %p88 = scmp.eq.s32.totalorder %s14, 1
    %p89 = por %p87, %p88
    %p91 = scmp.ne.s32.totalorder %s74, %s90
    %p92 = scmp.eq.s32.totalorder %s14, 0
    %p93 = por %p91, %p92
    %p94 = scmp.le.s32.totalorder 1, %s8
    %p95 = scmp.lt.s32.totalorder %s8, 3
    %p96 = pnand %p94, %p95
    %p97 = pneg %p96
    // Predicated region
    $region9: #{simple_block2d.10} parent=5 // pred_check
      _
    $region10: #{simple_block2d.10} parent=5 // pred_check_branch
      %99 = sbr.rel (%p96) target = $region12
    $region11: #{simple_block2d.10} parent=5 // pred_region
      %s100 = ssub.s32 %s8, 1
    $region12: #{simple_block2d.10} parent=5 // pred_fallthru
      _
    %p101 = scmp.lt.s32.totalorder %s8, 2
    // Predicated region
    $region13: #{simple_block2d.10} parent=5 // pred_check
      %p102 = pneg %p101
    $region14: #{simple_block2d.10} parent=5 // pred_check_branch
      %104 = sbr.rel (%p102) target = $region16
    $region15: #{simple_block2d.10} parent=5 // pred_region
      // Predicated region
      $region17: #{simple_block2d.10} parent=15 // pred_check
        %p105 = pneg %p28
      $region18: #{simple_block2d.10} parent=15 // pred_check_branch
        %107 = sbr.rel (%p105) target = $region20
      $region19: #{simple_block2d.10} parent=15 // pred_region
        %p108 = scmp.lt.s32.totalorder %s8, 1
        %s109 = scalar_select %p108, %s8, 1
        %s110 = smul.addr %s109, 16
        %s111 = smul.addr %s110, 2
        %s112 = scalar_lea.vmem %s0, %s111
      $region20: #{simple_block2d.10} parent=15 // pred_fallthru
        _
      // Predicated region
      $region21: #{simple_block2d.10} parent=15 // pred_check
        %p113 = pneg %p54
      $region22: #{simple_block2d.10} parent=15 // pred_check_branch
        %115 = sbr.rel (%p113) target = $region24
      $region23: #{simple_block2d.10} parent=15 // pred_region
        %p116 = scmp.lt.s32.totalorder %s8, 1
        %s117 = scalar_select %p116, %s8, 1
        %s118 = smul.addr %s117, 64
        %s119 = smul.addr %s118, 8
        %s120 = scalar_lea.vmem %s1, %s119
      $region24: #{simple_block2d.10} parent=15 // pred_fallthru
        _
    $region16: #{simple_block2d.10} parent=5 // pred_fallthru
      _
    %p121 = scmp.le.s32.totalorder 1, %s8
    %p122 = scmp.lt.s32.totalorder %s8, 3
    %p123 = pnand %p121, %p122
    %p124 = pneg %p123
    // Predicated region
    $region25: #{simple_block2d.10} parent=5 // pred_check
      _
    $region26: #{simple_block2d.10} parent=5 // pred_check_branch
      %126 = sbr.rel (%p123) target = $region28
    $region27: #{simple_block2d.10} parent=5 // pred_region
      %s127 = ssub.s32 %s8, 1
      %p128 = scmp.lt.s32.totalorder %s13, 1
      %s129 = scalar_select %p128, %s13, 1
      %s130 = smul.addr %s129, 16
      %s131 = smul.addr %s130, 2
      %s132 = scalar_lea.vmem %s0, %s131
      %p133 = pneg %p34
      %p134 = pneg %p31
      %p135 = scmp.lt.s32.totalorder %s13, 1
      %s136 = scalar_select %p135, %s13, 1
      %s137 = smul.addr %s136, 64
      %s138 = smul.addr %s137, 8
      %s139 = scalar_lea.vmem %s1, %s138
      %p140 = pneg %p60
      %p141 = pneg %p57
      %p142 = pneg %p86
      %p143 = pneg %p83
      %p144 = scmp.lt.s32.totalorder %s13, 1
      %s145 = scalar_select %p144, %s13, 1
      %s146 = smul.addr %s145, 16
      %s147 = smul.addr %s146, 2
      %s148 = scalar_lea.vmem %s2, %s147
      %p149 = scmp.lt.s32.totalorder %s13, 1
      %s150 = scalar_select %p149, %s13, 1
      %s151 = smul.addr %s150, 16
      %s152 = smul.addr %s151, 2
      %s153 = scalar_lea.vmem %s0, %s152
      %p154 = scmp.lt.s32.totalorder %s13, 1
      %s155 = scalar_select %p154, %s13, 1
      %s156 = smul.addr %s155, 64
      %s157 = smul.addr %s156, 8
      %s158 = scalar_lea.vmem %s1, %s157
      %p159 = scmp.lt.s32.totalorder %s13, 1
      %s160 = scalar_select %p159, %s13, 1
      %s161 = smul.addr %s160, 16
      %s162 = smul.addr %s161, 2
      %s163 = scalar_lea.vmem %s2, %s162
      %v164 = vld [vmem:[%s153] sm:$0x3]
      %v165 = vld [vmem:[%s153 + $0x2] sm:$0x3]
      %v166 = vld [vmem:[%s153 + $0x4] sm:$0x3]
      %v167 = vld [vmem:[%s153 + $0x6] sm:$0x3]
      %v168 = vld [vmem:[%s153 + $0x8] sm:$0x3]
      %v169 = vld [vmem:[%s153 + $0xa] sm:$0x3]
      %v170 = vld [vmem:[%s153 + $0xc] sm:$0x3]
      %v171 = vld [vmem:[%s153 + $0xe] sm:$0x3]
      %v172 = vld [vmem:[%s153 + $0x10] sm:$0x3]
      %v173 = vld [vmem:[%s153 + $0x12] sm:$0x3]
      %v174 = vld [vmem:[%s153 + $0x14] sm:$0x3]
      %v175 = vld [vmem:[%s153 + $0x16] sm:$0x3]
      %v176 = vld [vmem:[%s153 + $0x18] sm:$0x3]
      %v177 = vld [vmem:[%s153 + $0x1a] sm:$0x3]
      %v178 = vld [vmem:[%s153 + $0x1c] sm:$0x3]
      %v179 = vld [vmem:[%s153 + $0x1e] sm:$0x3]
      %v180 = vld [vmem:[%s158] sm:$0xff]
      %v181 = vld [vmem:[%s158 + $0x8] sm:$0xff]
      %v182 = vld [vmem:[%s158 + $0x10] sm:$0xff]
      %v183 = vld [vmem:[%s158 + $0x18] sm:$0xff]
      %v184 = vld [vmem:[%s158 + $0x20] sm:$0xff]
      %v185 = vld [vmem:[%s158 + $0x28] sm:$0xff]
      %v186 = vld [vmem:[%s158 + $0x30] sm:$0xff]
      %v187 = vld [vmem:[%s158 + $0x38] sm:$0xff]
      %v188 = vld [vmem:[%s158 + $0x40] sm:$0xff]
      %v189 = vld [vmem:[%s158 + $0x48] sm:$0xff]
      %v190 = vld [vmem:[%s158 + $0x50] sm:$0xff]
      %v191 = vld [vmem:[%s158 + $0x58] sm:$0xff]
      %v192 = vld [vmem:[%s158 + $0x60] sm:$0xff]
      %v193 = vld [vmem:[%s158 + $0x68] sm:$0xff]
      %v194 = vld [vmem:[%s158 + $0x70] sm:$0xff]
      %v195 = vld [vmem:[%s158 + $0x78] sm:$0xff]
      %v196 = vld [vmem:[%s158 + $0x80] sm:$0xff]
      %v197 = vld [vmem:[%s158 + $0x88] sm:$0xff]
      %v198 = vld [vmem:[%s158 + $0x90] sm:$0xff]
      %v199 = vld [vmem:[%s158 + $0x98] sm:$0xff]
      %v200 = vld [vmem:[%s158 + $0xa0] sm:$0xff]
      %v201 = vld [vmem:[%s158 + $0xa8] sm:$0xff]
      %v202 = vld [vmem:[%s158 + $0xb0] sm:$0xff]
      %v203 = vld [vmem:[%s158 + $0xb8] sm:$0xff]
      %v204 = vld [vmem:[%s158 + $0xc0] sm:$0xff]
      %v205 = vld [vmem:[%s158 + $0xc8] sm:$0xff]
      %v206 = vld [vmem:[%s158 + $0xd0] sm:$0xff]
      %v207 = vld [vmem:[%s158 + $0xd8] sm:$0xff]
      %v208 = vld [vmem:[%s158 + $0xe0] sm:$0xff]
      %v209 = vld [vmem:[%s158 + $0xe8] sm:$0xff]
      %v210 = vld [vmem:[%s158 + $0xf0] sm:$0xff]
      %v211 = vld [vmem:[%s158 + $0xf8] sm:$0xff]
      %v212 = vld [vmem:[%s158 + $0x100] sm:$0xff]
      %v213 = vld [vmem:[%s158 + $0x108] sm:$0xff]
      %v214 = vld [vmem:[%s158 + $0x110] sm:$0xff]
      %v215 = vld [vmem:[%s158 + $0x118] sm:$0xff]
      %v216 = vld [vmem:[%s158 + $0x120] sm:$0xff]
      %v217 = vld [vmem:[%s158 + $0x128] sm:$0xff]
      %v218 = vld [vmem:[%s158 + $0x130] sm:$0xff]
      %v219 = vld [vmem:[%s158 + $0x138] sm:$0xff]
      %v220 = vld [vmem:[%s158 + $0x140] sm:$0xff]
      %v221 = vld [vmem:[%s158 + $0x148] sm:$0xff]
      %v222 = vld [vmem:[%s158 + $0x150] sm:$0xff]
      %v223 = vld [vmem:[%s158 + $0x158] sm:$0xff]
      %v224 = vld [vmem:[%s158 + $0x160] sm:$0xff]
      %v225 = vld [vmem:[%s158 + $0x168] sm:$0xff]
      %v226 = vld [vmem:[%s158 + $0x170] sm:$0xff]
      %v227 = vld [vmem:[%s158 + $0x178] sm:$0xff]
      %v228 = vld [vmem:[%s158 + $0x180] sm:$0xff]
      %v229 = vld [vmem:[%s158 + $0x188] sm:$0xff]
      %v230 = vld [vmem:[%s158 + $0x190] sm:$0xff]
      %v231 = vld [vmem:[%s158 + $0x198] sm:$0xff]
      %v232 = vld [vmem:[%s158 + $0x1a0] sm:$0xff]
      %v233 = vld [vmem:[%s158 + $0x1a8] sm:$0xff]
      %v234 = vld [vmem:[%s158 + $0x1b0] sm:$0xff]
      %v235 = vld [vmem:[%s158 + $0x1b8] sm:$0xff]
      %v236 = vld [vmem:[%s158 + $0x1c0] sm:$0xff]
      %v237 = vld [vmem:[%s158 + $0x1c8] sm:$0xff]
      %v238 = vld [vmem:[%s158 + $0x1d0] sm:$0xff]
      %v239 = vld [vmem:[%s158 + $0x1d8] sm:$0xff]
      %v240 = vld [vmem:[%s158 + $0x1e0] sm:$0xff]
      %v241 = vld [vmem:[%s158 + $0x1e8] sm:$0xff]
      %v242 = vld [vmem:[%s158 + $0x1f0] sm:$0xff]
      %v243 = vld [vmem:[%s158 + $0x1f8] sm:$0xff]
      %vm244 = vcmask 261120
      %v246 = vsel %vm244, %v164, 0
      %248 = vmatprep.subr.mxu0 0.0
      %249 = vmatpush1.msra.mxu0 0.0
      %250 = vmatprep.subr.mxu0 0.0
      %251 = vmatpush1.msra.mxu0 0.0
      %252 = vmatprep.subr.mxu0 0.0
      %253 = vmatpush1.msra.mxu0 0.0
      %254 = vmatprep.subr.mxu0 0.0
      %255 = vmatpush1.msra.mxu0 0.0
      %256 = vmatprep.subr.mxu0 0.0
      %257 = vmatpush1.msra.mxu0 0.0
      %258 = vmatprep.subr.mxu0 0.0
      %259 = vmatpush1.msra.mxu0 0.0
      %260 = vmatprep.subr.mxu0 0.0
      %261 = vmatpush1.msra.mxu0 0.0
      %262 = vmatprep.subr.mxu0 0.0
      %263 = vmatpush1.msra.mxu0 0.0
      %264 = vmatprep.subr.mxu0 0.0
      %265 = vmatpush1.msra.mxu0 0.0
      %266 = vmatprep.subr.mxu0 0.0
      %267 = vmatpush1.msra.mxu0 0.0
      %268 = vmatprep.subr.mxu0 0.0
      %269 = vmatpush1.msra.mxu0 0.0
      %270 = vmatprep.subr.mxu0 0.0
      %271 = vmatpush1.msra.mxu0 0.0
      %272 = vmatprep.subr.mxu0 0.0
      %273 = vmatpush1.msra.mxu0 %v183
      %274 = vmatprep.subr.mxu0 0.0
      %275 = vmatpush1.msra.mxu0 %v182
      %276 = vmatprep.subr.mxu0 0.0
      %277 = vmatpush1.msra.mxu0 %v181
      %278 = vmatprep.subr.mxu0 0.0
      %279 = vmatpush1.msra.mxu0 %v180
      %280 = vmatprep.subr.mxu0 0.0
      %281 = vmatpush2.msra.mxu0 0.0
      %282 = vmatprep.subr.mxu0 0.0
      %283 = vmatpush2.msra.mxu0 0.0
      %284 = vmatprep.subr.mxu0 0.0
      %285 = vmatpush2.msra.mxu0 0.0
      %286 = vmatprep.subr.mxu0 0.0
      %287 = vmatpush2.msra.mxu0 0.0
      %288 = vmatprep.subr.mxu0 0.0
      %289 = vmatpush2.msra.mxu0 0.0
      %290 = vmatprep.subr.mxu0 0.0
      %291 = vmatpush2.msra.mxu0 0.0
      %292 = vmatprep.subr.mxu0 0.0
      %293 = vmatpush2.msra.mxu0 0.0
      %294 = vmatprep.subr.mxu0 0.0
      %295 = vmatpush2.msra.mxu0 0.0
      %296 = vmatprep.subr.mxu0 0.0
      %297 = vmatpush2.msra.mxu0 0.0
      %298 = vmatprep.subr.mxu0 0.0
      %299 = vmatpush2.msra.mxu0 0.0
      %300 = vmatprep.subr.mxu0 0.0
      %301 = vmatpush2.msra.mxu0 0.0
      %302 = vmatprep.subr.mxu0 0.0
      %303 = vmatpush2.msra.mxu0 0.0
      %304 = vmatprep.subr.mxu0 0.0
      %305 = vmatpush2.msra.mxu0 0.0
      %306 = vmatprep.subr.mxu0 0.0
      %307 = vmatpush2.msra.mxu0 0.0
      %308 = vmatprep.subr.mxu0 0.0
      %309 = vmatpush2.msra.mxu0 0.0
      %310 = vmatprep.subr.mxu0 0.0
      %311 = vmatpush2.msra.mxu0 0.0
      %312 = vmatprep.mubr.f32.mxu0 0.0
      %313 = vmatmul.mubr.f32.gmra.mxu0 %v246
      %v314 = vpop.f32.mrf.mxu0
      %v315 = vadd.f32 0.0, %v314
      %v316 = vpop.f32.mrf.mxu0
      %317 = vdwg.mxu0
      %v319 = vsel %vm244, %v165, 0
      %321 = vmatprep.subr.mxu0 0.0
      %322 = vmatpush1.msra.mxu0 0.0
      %323 = vmatprep.subr.mxu0 0.0
      %324 = vmatpush1.msra.mxu0 0.0
      %325 = vmatprep.subr.mxu0 0.0
      %326 = vmatpush1.msra.mxu0 0.0
      %327 = vmatprep.subr.mxu0 0.0
      %328 = vmatpush1.msra.mxu0 0.0
      %329 = vmatprep.subr.mxu0 0.0
      %330 = vmatpush1.msra.mxu0 0.0
      %331 = vmatprep.subr.mxu0 0.0
      %332 = vmatpush1.msra.mxu0 0.0
      %333 = vmatprep.subr.mxu0 0.0
      %334 = vmatpush1.msra.mxu0 0.0
      %335 = vmatprep.subr.mxu0 0.0
      %336 = vmatpush1.msra.mxu0 0.0
      %337 = vmatprep.subr.mxu0 0.0
      %338 = vmatpush1.msra.mxu0 0.0
      %339 = vmatprep.subr.mxu0 0.0
      %340 = vmatpush1.msra.mxu0 0.0
      %341 = vmatprep.subr.mxu0 0.0
      %342 = vmatpush1.msra.mxu0 0.0
      %343 = vmatprep.subr.mxu0 0.0
      %344 = vmatpush1.msra.mxu0 0.0
      %345 = vmatprep.subr.mxu0 0.0
      %346 = vmatpush1.msra.mxu0 %v187
      %347 = vmatprep.subr.mxu0 0.0
      %348 = vmatpush1.msra.mxu0 %v186
      %349 = vmatprep.subr.mxu0 0.0
      %350 = vmatpush1.msra.mxu0 %v185
      %351 = vmatprep.subr.mxu0 0.0
      %352 = vmatpush1.msra.mxu0 %v184
      %353 = vmatprep.subr.mxu0 0.0
      %354 = vmatpush2.msra.mxu0 0.0
      %355 = vmatprep.subr.mxu0 0.0
      %356 = vmatpush2.msra.mxu0 0.0
      %357 = vmatprep.subr.mxu0 0.0
      %358 = vmatpush2.msra.mxu0 0.0
      %359 = vmatprep.subr.mxu0 0.0
      %360 = vmatpush2.msra.mxu0 0.0
      %361 = vmatprep.subr.mxu0 0.0
      %362 = vmatpush2.msra.mxu0 0.0
      %363 = vmatprep.subr.mxu0 0.0
      %364 = vmatpush2.msra.mxu0 0.0
      %365 = vmatprep.subr.mxu0 0.0
      %366 = vmatpush2.msra.mxu0 0.0
      %367 = vmatprep.subr.mxu0 0.0
      %368 = vmatpush2.msra.mxu0 0.0
      %369 = vmatprep.subr.mxu0 0.0
      %370 = vmatpush2.msra.mxu0 0.0
      %371 = vmatprep.subr.mxu0 0.0
      %372 = vmatpush2.msra.mxu0 0.0
      %373 = vmatprep.subr.mxu0 0.0
      %374 = vmatpush2.msra.mxu0 0.0
      %375 = vmatprep.subr.mxu0 0.0
      %376 = vmatpush2.msra.mxu0 0.0
      %377 = vmatprep.subr.mxu0 0.0
      %378 = vmatpush2.msra.mxu0 0.0
      %379 = vmatprep.subr.mxu0 0.0
      %380 = vmatpush2.msra.mxu0 0.0
      %381 = vmatprep.subr.mxu0 0.0
      %382 = vmatpush2.msra.mxu0 0.0
      %383 = vmatprep.subr.mxu0 0.0
      %384 = vmatpush2.msra.mxu0 0.0
      %385 = vmatprep.mubr.f32.mxu0 0.0
      %386 = vmatmul.mubr.f32.gmra.mxu0 %v319
      %v387 = vpop.f32.mrf.mxu0
      %v388 = vadd.f32 0.0, %v387
      %v389 = vpop.f32.mrf.mxu0
      %390 = vdwg.mxu0
      %v392 = vsel %vm244, %v166, 0
      %394 = vmatprep.subr.mxu0 0.0
      %395 = vmatpush1.msra.mxu0 0.0
      %396 = vmatprep.subr.mxu0 0.0
      %397 = vmatpush1.msra.mxu0 0.0
      %398 = vmatprep.subr.mxu0 0.0
      %399 = vmatpush1.msra.mxu0 0.0
      %400 = vmatprep.subr.mxu0 0.0
      %401 = vmatpush1.msra.mxu0 0.0
      %402 = vmatprep.subr.mxu0 0.0
      %403 = vmatpush1.msra.mxu0 0.0
      %404 = vmatprep.subr.mxu0 0.0
      %405 = vmatpush1.msra.mxu0 0.0
      %406 = vmatprep.subr.mxu0 0.0
      %407 = vmatpush1.msra.mxu0 0.0
      %408 = vmatprep.subr.mxu0 0.0
      %409 = vmatpush1.msra.mxu0 0.0
      %410 = vmatprep.subr.mxu0 0.0
      %411 = vmatpush1.msra.mxu0 0.0
      %412 = vmatprep.subr.mxu0 0.0
      %413 = vmatpush1.msra.mxu0 0.0
      %414 = vmatprep.subr.mxu0 0.0
      %415 = vmatpush1.msra.mxu0 0.0
      %416 = vmatprep.subr.mxu0 0.0
      %417 = vmatpush1.msra.mxu0 0.0
      %418 = vmatprep.subr.mxu0 0.0
      %419 = vmatpush1.msra.mxu0 %v191
      %420 = vmatprep.subr.mxu0 0.0
      %421 = vmatpush1.msra.mxu0 %v190
      %422 = vmatprep.subr.mxu0 0.0
      %423 = vmatpush1.msra.mxu0 %v189
      %424 = vmatprep.subr.mxu0 0.0
      %425 = vmatpush1.msra.mxu0 %v188
      %426 = vmatprep.subr.mxu0 0.0
      %427 = vmatpush2.msra.mxu0 0.0
      %428 = vmatprep.subr.mxu0 0.0
      %429 = vmatpush2.msra.mxu0 0.0
      %430 = vmatprep.subr.mxu0 0.0
      %431 = vmatpush2.msra.mxu0 0.0
      %432 = vmatprep.subr.mxu0 0.0
      %433 = vmatpush2.msra.mxu0 0.0
      %434 = vmatprep.subr.mxu0 0.0
      %435 = vmatpush2.msra.mxu0 0.0
      %436 = vmatprep.subr.mxu0 0.0
      %437 = vmatpush2.msra.mxu0 0.0
      %438 = vmatprep.subr.mxu0 0.0
      %439 = vmatpush2.msra.mxu0 0.0
      %440 = vmatprep.subr.mxu0 0.0
      %441 = vmatpush2.msra.mxu0 0.0
      %442 = vmatprep.subr.mxu0 0.0
      %443 = vmatpush2.msra.mxu0 0.0
      %444 = vmatprep.subr.mxu0 0.0
      %445 = vmatpush2.msra.mxu0 0.0
      %446 = vmatprep.subr.mxu0 0.0
      %447 = vmatpush2.msra.mxu0 0.0
      %448 = vmatprep.subr.mxu0 0.0
      %449 = vmatpush2.msra.mxu0 0.0
      %450 = vmatprep.subr.mxu0 0.0
      %451 = vmatpush2.msra.mxu0 0.0
      %452 = vmatprep.subr.mxu0 0.0
      %453 = vmatpush2.msra.mxu0 0.0
      %454 = vmatprep.subr.mxu0 0.0
      %455 = vmatpush2.msra.mxu0 0.0
      %456 = vmatprep.subr.mxu0 0.0
      %457 = vmatpush2.msra.mxu0 0.0
      %458 = vmatprep.mubr.f32.mxu0 0.0
      %459 = vmatmul.mubr.f32.gmra.mxu0 %v392
      %v460 = vpop.f32.mrf.mxu0
      %v461 = vadd.f32 0.0, %v460
      %v462 = vpop.f32.mrf.mxu0
      %463 = vdwg.mxu0
      %v465 = vsel %vm244, %v167, 0
      %467 = vmatprep.subr.mxu0 0.0
      %468 = vmatpush1.msra.mxu0 0.0
      %469 = vmatprep.subr.mxu0 0.0
      %470 = vmatpush1.msra.mxu0 0.0
      %471 = vmatprep.subr.mxu0 0.0
      %472 = vmatpush1.msra.mxu0 0.0
      %473 = vmatprep.subr.mxu0 0.0
      %474 = vmatpush1.msra.mxu0 0.0
      %475 = vmatprep.subr.mxu0 0.0
      %476 = vmatpush1.msra.mxu0 0.0
      %477 = vmatprep.subr.mxu0 0.0
      %478 = vmatpush1.msra.mxu0 0.0
      %479 = vmatprep.subr.mxu0 0.0
      %480 = vmatpush1.msra.mxu0 0.0
      %481 = vmatprep.subr.mxu0 0.0
      %482 = vmatpush1.msra.mxu0 0.0
      %483 = vmatprep.subr.mxu0 0.0
      %484 = vmatpush1.msra.mxu0 0.0
      %485 = vmatprep.subr.mxu0 0.0
      %486 = vmatpush1.msra.mxu0 0.0
      %487 = vmatprep.subr.mxu0 0.0
      %488 = vmatpush1.msra.mxu0 0.0
      %489 = vmatprep.subr.mxu0 0.0
      %490 = vmatpush1.msra.mxu0 0.0
      %491 = vmatprep.subr.mxu0 0.0
      %492 = vmatpush1.msra.mxu0 %v195
      %493 = vmatprep.subr.mxu0 0.0
      %494 = vmatpush1.msra.mxu0 %v194
      %495 = vmatprep.subr.mxu0 0.0
      %496 = vmatpush1.msra.mxu0 %v193
      %497 = vmatprep.subr.mxu0 0.0
      %498 = vmatpush1.msra.mxu0 %v192
      %499 = vmatprep.subr.mxu0 0.0
      %500 = vmatpush2.msra.mxu0 0.0
      %501 = vmatprep.subr.mxu0 0.0
      %502 = vmatpush2.msra.mxu0 0.0
      %503 = vmatprep.subr.mxu0 0.0
      %504 = vmatpush2.msra.mxu0 0.0
      %505 = vmatprep.subr.mxu0 0.0
      %506 = vmatpush2.msra.mxu0 0.0
      %507 = vmatprep.subr.mxu0 0.0
      %508 = vmatpush2.msra.mxu0 0.0
      %509 = vmatprep.subr.mxu0 0.0
      %510 = vmatpush2.msra.mxu0 0.0
      %511 = vmatprep.subr.mxu0 0.0
      %512 = vmatpush2.msra.mxu0 0.0
      %513 = vmatprep.subr.mxu0 0.0
      %514 = vmatpush2.msra.mxu0 0.0
      %515 = vmatprep.subr.mxu0 0.0
      %516 = vmatpush2.msra.mxu0 0.0
      %517 = vmatprep.subr.mxu0 0.0
      %518 = vmatpush2.msra.mxu0 0.0
      %519 = vmatprep.subr.mxu0 0.0
      %520 = vmatpush2.msra.mxu0 0.0
      %521 = vmatprep.subr.mxu0 0.0
      %522 = vmatpush2.msra.mxu0 0.0
      %523 = vmatprep.subr.mxu0 0.0
      %524 = vmatpush2.msra.mxu0 0.0
      %525 = vmatprep.subr.mxu0 0.0
      %526 = vmatpush2.msra.mxu0 0.0
      %527 = vmatprep.subr.mxu0 0.0
      %528 = vmatpush2.msra.mxu0 0.0
      %529 = vmatprep.subr.mxu0 0.0
      %530 = vmatpush2.msra.mxu0 0.0
      %531 = vmatprep.mubr.f32.mxu0 0.0
      %532 = vmatmul.mubr.f32.gmra.mxu0 %v465
      %v533 = vpop.f32.mrf.mxu0
      %v534 = vadd.f32 0.0, %v533
      %v535 = vpop.f32.mrf.mxu0
      %536 = vdwg.mxu0
      %v538 = vsel %vm244, %v168, 0
      %540 = vmatprep.subr.mxu0 0.0
      %541 = vmatpush1.msra.mxu0 0.0
      %542 = vmatprep.subr.mxu0 0.0
      %543 = vmatpush1.msra.mxu0 0.0
      %544 = vmatprep.subr.mxu0 0.0
      %545 = vmatpush1.msra.mxu0 0.0
      %546 = vmatprep.subr.mxu0 0.0
      %547 = vmatpush1.msra.mxu0 0.0
      %548 = vmatprep.subr.mxu0 0.0
      %549 = vmatpush1.msra.mxu0 0.0
      %550 = vmatprep.subr.mxu0 0.0
      %551 = vmatpush1.msra.mxu0 0.0
      %552 = vmatprep.subr.mxu0 0.0
      %553 = vmatpush1.msra.mxu0 0.0
      %554 = vmatprep.subr.mxu0 0.0
      %555 = vmatpush1.msra.mxu0 0.0
      %556 = vmatprep.subr.mxu0 0.0
      %557 = vmatpush1.msra.mxu0 0.0
      %558 = vmatprep.subr.mxu0 0.0
      %559 = vmatpush1.msra.mxu0 0.0
      %560 = vmatprep.subr.mxu0 0.0
      %561 = vmatpush1.msra.mxu0 0.0
      %562 = vmatprep.subr.mxu0 0.0
      %563 = vmatpush1.msra.mxu0 0.0
      %564 = vmatprep.subr.mxu0 0.0
      %565 = vmatpush1.msra.mxu0 %v199
      %566 = vmatprep.subr.mxu0 0.0
      %567 = vmatpush1.msra.mxu0 %v198
      %568 = vmatprep.subr.mxu0 0.0
      %569 = vmatpush1.msra.mxu0 %v197
      %570 = vmatprep.subr.mxu0 0.0
      %571 = vmatpush1.msra.mxu0 %v196
      %572 = vmatprep.subr.mxu0 0.0
      %573 = vmatpush2.msra.mxu0 0.0
      %574 = vmatprep.subr.mxu0 0.0
      %575 = vmatpush2.msra.mxu0 0.0
      %576 = vmatprep.subr.mxu0 0.0
      %577 = vmatpush2.msra.mxu0 0.0
      %578 = vmatprep.subr.mxu0 0.0
      %579 = vmatpush2.msra.mxu0 0.0
      %580 = vmatprep.subr.mxu0 0.0
      %581 = vmatpush2.msra.mxu0 0.0
      %582 = vmatprep.subr.mxu0 0.0
      %583 = vmatpush2.msra.mxu0 0.0
      %584 = vmatprep.subr.mxu0 0.0
      %585 = vmatpush2.msra.mxu0 0.0
      %586 = vmatprep.subr.mxu0 0.0
      %587 = vmatpush2.msra.mxu0 0.0
      %588 = vmatprep.subr.mxu0 0.0
      %589 = vmatpush2.msra.mxu0 0.0
      %590 = vmatprep.subr.mxu0 0.0
      %591 = vmatpush2.msra.mxu0 0.0
      %592 = vmatprep.subr.mxu0 0.0
      %593 = vmatpush2.msra.mxu0 0.0
      %594 = vmatprep.subr.mxu0 0.0
      %595 = vmatpush2.msra.mxu0 0.0
      %596 = vmatprep.subr.mxu0 0.0
      %597 = vmatpush2.msra.mxu0 0.0
      %598 = vmatprep.subr.mxu0 0.0
      %599 = vmatpush2.msra.mxu0 0.0
      %600 = vmatprep.subr.mxu0 0.0
      %601 = vmatpush2.msra.mxu0 0.0
      %602 = vmatprep.subr.mxu0 0.0
      %603 = vmatpush2.msra.mxu0 0.0
      %604 = vmatprep.mubr.f32.mxu0 0.0
      %605 = vmatmul.mubr.f32.gmra.mxu0 %v538
      %v606 = vpop.f32.mrf.mxu0
      %v607 = vadd.f32 0.0, %v606
      %v608 = vpop.f32.mrf.mxu0
      %609 = vdwg.mxu0
      %v611 = vsel %vm244, %v169, 0
      %613 = vmatprep.subr.mxu0 0.0
      %614 = vmatpush1.msra.mxu0 0.0
      %615 = vmatprep.subr.mxu0 0.0
      %616 = vmatpush1.msra.mxu0 0.0
      %617 = vmatprep.subr.mxu0 0.0
      %618 = vmatpush1.msra.mxu0 0.0
      %619 = vmatprep.subr.mxu0 0.0
      %620 = vmatpush1.msra.mxu0 0.0
      %621 = vmatprep.subr.mxu0 0.0
      %622 = vmatpush1.msra.mxu0 0.0
      %623 = vmatprep.subr.mxu0 0.0
      %624 = vmatpush1.msra.mxu0 0.0
      %625 = vmatprep.subr.mxu0 0.0
      %626 = vmatpush1.msra.mxu0 0.0
      %627 = vmatprep.subr.mxu0 0.0
      %628 = vmatpush1.msra.mxu0 0.0
      %629 = vmatprep.subr.mxu0 0.0
      %630 = vmatpush1.msra.mxu0 0.0
      %631 = vmatprep.subr.mxu0 0.0
      %632 = vmatpush1.msra.mxu0 0.0
      %633 = vmatprep.subr.mxu0 0.0
      %634 = vmatpush1.msra.mxu0 0.0
      %635 = vmatprep.subr.mxu0 0.0
      %636 = vmatpush1.msra.mxu0 0.0
      %637 = vmatprep.subr.mxu0 0.0
      %638 = vmatpush1.msra.mxu0 %v203
      %639 = vmatprep.subr.mxu0 0.0
      %640 = vmatpush1.msra.mxu0 %v202
      %641 = vmatprep.subr.mxu0 0.0
      %642 = vmatpush1.msra.mxu0 %v201
      %643 = vmatprep.subr.mxu0 0.0
      %644 = vmatpush1.msra.mxu0 %v200
      %645 = vmatprep.subr.mxu0 0.0
      %646 = vmatpush2.msra.mxu0 0.0
      %647 = vmatprep.subr.mxu0 0.0
      %648 = vmatpush2.msra.mxu0 0.0
      %649 = vmatprep.subr.mxu0 0.0
      %650 = vmatpush2.msra.mxu0 0.0
      %651 = vmatprep.subr.mxu0 0.0
      %652 = vmatpush2.msra.mxu0 0.0
      %653 = vmatprep.subr.mxu0 0.0
      %654 = vmatpush2.msra.mxu0 0.0
      %655 = vmatprep.subr.mxu0 0.0
      %656 = vmatpush2.msra.mxu0 0.0
      %657 = vmatprep.subr.mxu0 0.0
      %658 = vmatpush2.msra.mxu0 0.0
      %659 = vmatprep.subr.mxu0 0.0
      %660 = vmatpush2.msra.mxu0 0.0
      %661 = vmatprep.subr.mxu0 0.0
      %662 = vmatpush2.msra.mxu0 0.0
      %663 = vmatprep.subr.mxu0 0.0
      %664 = vmatpush2.msra.mxu0 0.0
      %665 = vmatprep.subr.mxu0 0.0
      %666 = vmatpush2.msra.mxu0 0.0
      %667 = vmatprep.subr.mxu0 0.0
      %668 = vmatpush2.msra.mxu0 0.0
      %669 = vmatprep.subr.mxu0 0.0
      %670 = vmatpush2.msra.mxu0 0.0
      %671 = vmatprep.subr.mxu0 0.0
      %672 = vmatpush2.msra.mxu0 0.0
      %673 = vmatprep.subr.mxu0 0.0
      %674 = vmatpush2.msra.mxu0 0.0
      %675 = vmatprep.subr.mxu0 0.0
      %676 = vmatpush2.msra.mxu0 0.0
      %677 = vmatprep.mubr.f32.mxu0 0.0
      %678 = vmatmul.mubr.f32.gmra.mxu0 %v611
      %v679 = vpop.f32.mrf.mxu0
      %v680 = vadd.f32 0.0, %v679
      %v681 = vpop.f32.mrf.mxu0
      %682 = vdwg.mxu0
      %v684 = vsel %vm244, %v170, 0
      %686 = vmatprep.subr.mxu0 0.0
      %687 = vmatpush1.msra.mxu0 0.0
      %688 = vmatprep.subr.mxu0 0.0
      %689 = vmatpush1.msra.mxu0 0.0
      %690 = vmatprep.subr.mxu0 0.0
      %691 = vmatpush1.msra.mxu0 0.0
      %692 = vmatprep.subr.mxu0 0.0
      %693 = vmatpush1.msra.mxu0 0.0
      %694 = vmatprep.subr.mxu0 0.0
      %695 = vmatpush1.msra.mxu0 0.0
      %696 = vmatprep.subr.mxu0 0.0
      %697 = vmatpush1.msra.mxu0 0.0
      %698 = vmatprep.subr.mxu0 0.0
      %699 = vmatpush1.msra.mxu0 0.0
      %700 = vmatprep.subr.mxu0 0.0
      %701 = vmatpush1.msra.mxu0 0.0
      %702 = vmatprep.subr.mxu0 0.0
      %703 = vmatpush1.msra.mxu0 0.0
      %704 = vmatprep.subr.mxu0 0.0
      %705 = vmatpush1.msra.mxu0 0.0
      %706 = vmatprep.subr.mxu0 0.0
      %707 = vmatpush1.msra.mxu0 0.0
      %708 = vmatprep.subr.mxu0 0.0
      %709 = vmatpush1.msra.mxu0 0.0
      %710 = vmatprep.subr.mxu0 0.0
      %711 = vmatpush1.msra.mxu0 %v207
      %712 = vmatprep.subr.mxu0 0.0
      %713 = vmatpush1.msra.mxu0 %v206
      %714 = vmatprep.subr.mxu0 0.0
      %715 = vmatpush1.msra.mxu0 %v205
      %716 = vmatprep.subr.mxu0 0.0
      %717 = vmatpush1.msra.mxu0 %v204
      %718 = vmatprep.subr.mxu0 0.0
      %719 = vmatpush2.msra.mxu0 0.0
      %720 = vmatprep.subr.mxu0 0.0
      %721 = vmatpush2.msra.mxu0 0.0
      %722 = vmatprep.subr.mxu0 0.0
      %723 = vmatpush2.msra.mxu0 0.0
      %724 = vmatprep.subr.mxu0 0.0
      %725 = vmatpush2.msra.mxu0 0.0
      %726 = vmatprep.subr.mxu0 0.0
      %727 = vmatpush2.msra.mxu0 0.0
      %728 = vmatprep.subr.mxu0 0.0
      %729 = vmatpush2.msra.mxu0 0.0
      %730 = vmatprep.subr.mxu0 0.0
      %731 = vmatpush2.msra.mxu0 0.0
      %732 = vmatprep.subr.mxu0 0.0
      %733 = vmatpush2.msra.mxu0 0.0
      %734 = vmatprep.subr.mxu0 0.0
      %735 = vmatpush2.msra.mxu0 0.0
      %736 = vmatprep.subr.mxu0 0.0
      %737 = vmatpush2.msra.mxu0 0.0
      %738 = vmatprep.subr.mxu0 0.0
      %739 = vmatpush2.msra.mxu0 0.0
      %740 = vmatprep.subr.mxu0 0.0
      %741 = vmatpush2.msra.mxu0 0.0
      %742 = vmatprep.subr.mxu0 0.0
      %743 = vmatpush2.msra.mxu0 0.0
      %744 = vmatprep.subr.mxu0 0.0
      %745 = vmatpush2.msra.mxu0 0.0
      %746 = vmatprep.subr.mxu0 0.0
      %747 = vmatpush2.msra.mxu0 0.0
      %748 = vmatprep.subr.mxu0 0.0
      %749 = vmatpush2.msra.mxu0 0.0
      %750 = vmatprep.mubr.f32.mxu0 0.0
      %751 = vmatmul.mubr.f32.gmra.mxu0 %v684
      %v752 = vpop.f32.mrf.mxu0
      %v753 = vadd.f32 0.0, %v752
      %v754 = vpop.f32.mrf.mxu0
      %755 = vdwg.mxu0
      %v757 = vsel %vm244, %v171, 0
      %759 = vmatprep.subr.mxu0 0.0
      %760 = vmatpush1.msra.mxu0 0.0
      %761 = vmatprep.subr.mxu0 0.0
      %762 = vmatpush1.msra.mxu0 0.0
      %763 = vmatprep.subr.mxu0 0.0
      %764 = vmatpush1.msra.mxu0 0.0
      %765 = vmatprep.subr.mxu0 0.0
      %766 = vmatpush1.msra.mxu0 0.0
      %767 = vmatprep.subr.mxu0 0.0
      %768 = vmatpush1.msra.mxu0 0.0
      %769 = vmatprep.subr.mxu0 0.0
      %770 = vmatpush1.msra.mxu0 0.0
      %771 = vmatprep.subr.mxu0 0.0
      %772 = vmatpush1.msra.mxu0 0.0
      %773 = vmatprep.subr.mxu0 0.0
      %774 = vmatpush1.msra.mxu0 0.0
      %775 = vmatprep.subr.mxu0 0.0
      %776 = vmatpush1.msra.mxu0 0.0
      %777 = vmatprep.subr.mxu0 0.0
      %778 = vmatpush1.msra.mxu0 0.0
      %779 = vmatprep.subr.mxu0 0.0
      %780 = vmatpush1.msra.mxu0 0.0
      %781 = vmatprep.subr.mxu0 0.0
      %782 = vmatpush1.msra.mxu0 0.0
      %783 = vmatprep.subr.mxu0 0.0
      %784 = vmatpush1.msra.mxu0 %v211
      %785 = vmatprep.subr.mxu0 0.0
      %786 = vmatpush1.msra.mxu0 %v210
      %787 = vmatprep.subr.mxu0 0.0
      %788 = vmatpush1.msra.mxu0 %v209
      %789 = vmatprep.subr.mxu0 0.0
      %790 = vmatpush1.msra.mxu0 %v208
      %791 = vmatprep.subr.mxu0 0.0
      %792 = vmatpush2.msra.mxu0 0.0
      %793 = vmatprep.subr.mxu0 0.0
      %794 = vmatpush2.msra.mxu0 0.0
      %795 = vmatprep.subr.mxu0 0.0
      %796 = vmatpush2.msra.mxu0 0.0
      %797 = vmatprep.subr.mxu0 0.0
      %798 = vmatpush2.msra.mxu0 0.0
      %799 = vmatprep.subr.mxu0 0.0
      %800 = vmatpush2.msra.mxu0 0.0
      %801 = vmatprep.subr.mxu0 0.0
      %802 = vmatpush2.msra.mxu0 0.0
      %803 = vmatprep.subr.mxu0 0.0
      %804 = vmatpush2.msra.mxu0 0.0
      %805 = vmatprep.subr.mxu0 0.0
      %806 = vmatpush2.msra.mxu0 0.0
      %807 = vmatprep.subr.mxu0 0.0
      %808 = vmatpush2.msra.mxu0 0.0
      %809 = vmatprep.subr.mxu0 0.0
      %810 = vmatpush2.msra.mxu0 0.0
      %811 = vmatprep.subr.mxu0 0.0
      %812 = vmatpush2.msra.mxu0 0.0
      %813 = vmatprep.subr.mxu0 0.0
      %814 = vmatpush2.msra.mxu0 0.0
      %815 = vmatprep.subr.mxu0 0.0
      %816 = vmatpush2.msra.mxu0 0.0
      %817 = vmatprep.subr.mxu0 0.0
      %818 = vmatpush2.msra.mxu0 0.0
      %819 = vmatprep.subr.mxu0 0.0
      %820 = vmatpush2.msra.mxu0 0.0
      %821 = vmatprep.subr.mxu0 0.0
      %822 = vmatpush2.msra.mxu0 0.0
      %823 = vmatprep.mubr.f32.mxu0 0.0
      %824 = vmatmul.mubr.f32.gmra.mxu0 %v757
      %v825 = vpop.f32.mrf.mxu0
      %v826 = vadd.f32 0.0, %v825
      %v827 = vpop.f32.mrf.mxu0
      %828 = vdwg.mxu0
      %v830 = vsel %vm244, %v172, 0
      %832 = vmatprep.subr.mxu0 0.0
      %833 = vmatpush1.msra.mxu0 0.0
      %834 = vmatprep.subr.mxu0 0.0
      %835 = vmatpush1.msra.mxu0 0.0
      %836 = vmatprep.subr.mxu0 0.0
      %837 = vmatpush1.msra.mxu0 0.0
      %838 = vmatprep.subr.mxu0 0.0
      %839 = vmatpush1.msra.mxu0 0.0
      %840 = vmatprep.subr.mxu0 0.0
      %841 = vmatpush1.msra.mxu0 0.0
      %842 = vmatprep.subr.mxu0 0.0
      %843 = vmatpush1.msra.mxu0 0.0
      %844 = vmatprep.subr.mxu0 0.0
      %845 = vmatpush1.msra.mxu0 0.0
      %846 = vmatprep.subr.mxu0 0.0
      %847 = vmatpush1.msra.mxu0 0.0
      %848 = vmatprep.subr.mxu0 0.0
      %849 = vmatpush1.msra.mxu0 0.0
      %850 = vmatprep.subr.mxu0 0.0
      %851 = vmatpush1.msra.mxu0 0.0
      %852 = vmatprep.subr.mxu0 0.0
      %853 = vmatpush1.msra.mxu0 0.0
      %854 = vmatprep.subr.mxu0 0.0
      %855 = vmatpush1.msra.mxu0 0.0
      %856 = vmatprep.subr.mxu0 0.0
      %857 = vmatpush1.msra.mxu0 %v215
      %858 = vmatprep.subr.mxu0 0.0
      %859 = vmatpush1.msra.mxu0 %v214
      %860 = vmatprep.subr.mxu0 0.0
      %861 = vmatpush1.msra.mxu0 %v213
      %862 = vmatprep.subr.mxu0 0.0
      %863 = vmatpush1.msra.mxu0 %v212
      %864 = vmatprep.subr.mxu0 0.0
      %865 = vmatpush2.msra.mxu0 0.0
      %866 = vmatprep.subr.mxu0 0.0
      %867 = vmatpush2.msra.mxu0 0.0
      %868 = vmatprep.subr.mxu0 0.0
      %869 = vmatpush2.msra.mxu0 0.0
      %870 = vmatprep.subr.mxu0 0.0
      %871 = vmatpush2.msra.mxu0 0.0
      %872 = vmatprep.subr.mxu0 0.0
      %873 = vmatpush2.msra.mxu0 0.0
      %874 = vmatprep.subr.mxu0 0.0
      %875 = vmatpush2.msra.mxu0 0.0
      %876 = vmatprep.subr.mxu0 0.0
      %877 = vmatpush2.msra.mxu0 0.0
      %878 = vmatprep.subr.mxu0 0.0
      %879 = vmatpush2.msra.mxu0 0.0
      %880 = vmatprep.subr.mxu0 0.0
      %881 = vmatpush2.msra.mxu0 0.0
      %882 = vmatprep.subr.mxu0 0.0
      %883 = vmatpush2.msra.mxu0 0.0
      %884 = vmatprep.subr.mxu0 0.0
      %885 = vmatpush2.msra.mxu0 0.0
      %886 = vmatprep.subr.mxu0 0.0
      %887 = vmatpush2.msra.mxu0 0.0
      %888 = vmatprep.subr.mxu0 0.0
      %889 = vmatpush2.msra.mxu0 0.0
      %890 = vmatprep.subr.mxu0 0.0
      %891 = vmatpush2.msra.mxu0 0.0
      %892 = vmatprep.subr.mxu0 0.0
      %893 = vmatpush2.msra.mxu0 0.0
      %894 = vmatprep.subr.mxu0 0.0
      %895 = vmatpush2.msra.mxu0 0.0
      %896 = vmatprep.mubr.f32.mxu0 0.0
      %897 = vmatmul.mubr.f32.gmra.mxu0 %v830
      %v898 = vpop.f32.mrf.mxu0
      %v899 = vadd.f32 0.0, %v898
      %v900 = vpop.f32.mrf.mxu0
      %901 = vdwg.mxu0
      %v903 = vsel %vm244, %v173, 0
      %905 = vmatprep.subr.mxu0 0.0
      %906 = vmatpush1.msra.mxu0 0.0
      %907 = vmatprep.subr.mxu0 0.0
      %908 = vmatpush1.msra.mxu0 0.0
      %909 = vmatprep.subr.mxu0 0.0
      %910 = vmatpush1.msra.mxu0 0.0
      %911 = vmatprep.subr.mxu0 0.0
      %912 = vmatpush1.msra.mxu0 0.0
      %913 = vmatprep.subr.mxu0 0.0
      %914 = vmatpush1.msra.mxu0 0.0
      %915 = vmatprep.subr.mxu0 0.0
      %916 = vmatpush1.msra.mxu0 0.0
      %917 = vmatprep.subr.mxu0 0.0
      %918 = vmatpush1.msra.mxu0 0.0
      %919 = vmatprep.subr.mxu0 0.0
      %920 = vmatpush1.msra.mxu0 0.0
      %921 = vmatprep.subr.mxu0 0.0
      %922 = vmatpush1.msra.mxu0 0.0
      %923 = vmatprep.subr.mxu0 0.0
      %924 = vmatpush1.msra.mxu0 0.0
      %925 = vmatprep.subr.mxu0 0.0
      %926 = vmatpush1.msra.mxu0 0.0
      %927 = vmatprep.subr.mxu0 0.0
      %928 = vmatpush1.msra.mxu0 0.0
      %929 = vmatprep.subr.mxu0 0.0
      %930 = vmatpush1.msra.mxu0 %v219
      %931 = vmatprep.subr.mxu0 0.0
      %932 = vmatpush1.msra.mxu0 %v218
      %933 = vmatprep.subr.mxu0 0.0
      %934 = vmatpush1.msra.mxu0 %v217
      %935 = vmatprep.subr.mxu0 0.0
      %936 = vmatpush1.msra.mxu0 %v216
      %937 = vmatprep.subr.mxu0 0.0
      %938 = vmatpush2.msra.mxu0 0.0
      %939 = vmatprep.subr.mxu0 0.0
      %940 = vmatpush2.msra.mxu0 0.0
      %941 = vmatprep.subr.mxu0 0.0
      %942 = vmatpush2.msra.mxu0 0.0
      %943 = vmatprep.subr.mxu0 0.0
      %944 = vmatpush2.msra.mxu0 0.0
      %945 = vmatprep.subr.mxu0 0.0
      %946 = vmatpush2.msra.mxu0 0.0
      %947 = vmatprep.subr.mxu0 0.0
      %948 = vmatpush2.msra.mxu0 0.0
      %949 = vmatprep.subr.mxu0 0.0
      %950 = vmatpush2.msra.mxu0 0.0
      %951 = vmatprep.subr.mxu0 0.0
      %952 = vmatpush2.msra.mxu0 0.0
      %953 = vmatprep.subr.mxu0 0.0
      %954 = vmatpush2.msra.mxu0 0.0
      %955 = vmatprep.subr.mxu0 0.0
      %956 = vmatpush2.msra.mxu0 0.0
      %957 = vmatprep.subr.mxu0 0.0
      %958 = vmatpush2.msra.mxu0 0.0
      %959 = vmatprep.subr.mxu0 0.0
      %960 = vmatpush2.msra.mxu0 0.0
      %961 = vmatprep.subr.mxu0 0.0
      %962 = vmatpush2.msra.mxu0 0.0
      %963 = vmatprep.subr.mxu0 0.0
      %964 = vmatpush2.msra.mxu0 0.0
      %965 = vmatprep.subr.mxu0 0.0
      %966 = vmatpush2.msra.mxu0 0.0
      %967 = vmatprep.subr.mxu0 0.0
      %968 = vmatpush2.msra.mxu0 0.0
      %969 = vmatprep.mubr.f32.mxu0 0.0
      %970 = vmatmul.mubr.f32.gmra.mxu0 %v903
      %v971 = vpop.f32.mrf.mxu0
      %v972 = vadd.f32 0.0, %v971
      %v973 = vpop.f32.mrf.mxu0
      %974 = vdwg.mxu0
      %v976 = vsel %vm244, %v174, 0
      %978 = vmatprep.subr.mxu0 0.0
      %979 = vmatpush1.msra.mxu0 0.0
      %980 = vmatprep.subr.mxu0 0.0
      %981 = vmatpush1.msra.mxu0 0.0
      %982 = vmatprep.subr.mxu0 0.0
      %983 = vmatpush1.msra.mxu0 0.0
      %984 = vmatprep.subr.mxu0 0.0
      %985 = vmatpush1.msra.mxu0 0.0
      %986 = vmatprep.subr.mxu0 0.0
      %987 = vmatpush1.msra.mxu0 0.0
      %988 = vmatprep.subr.mxu0 0.0
      %989 = vmatpush1.msra.mxu0 0.0
      %990 = vmatprep.subr.mxu0 0.0
      %991 = vmatpush1.msra.mxu0 0.0
      %992 = vmatprep.subr.mxu0 0.0
      %993 = vmatpush1.msra.mxu0 0.0
      %994 = vmatprep.subr.mxu0 0.0
      %995 = vmatpush1.msra.mxu0 0.0
      %996 = vmatprep.subr.mxu0 0.0
      %997 = vmatpush1.msra.mxu0 0.0
      %998 = vmatprep.subr.mxu0 0.0
      %999 = vmatpush1.msra.mxu0 0.0
      %1000 = vmatprep.subr.mxu0 0.0
      %1001 = vmatpush1.msra.mxu0 0.0
      %1002 = vmatprep.subr.mxu0 0.0
      %1003 = vmatpush1.msra.mxu0 %v223
      %1004 = vmatprep.subr.mxu0 0.0
      %1005 = vmatpush1.msra.mxu0 %v222
      %1006 = vmatprep.subr.mxu0 0.0
      %1007 = vmatpush1.msra.mxu0 %v221
      %1008 = vmatprep.subr.mxu0 0.0
      %1009 = vmatpush1.msra.mxu0 %v220
      %1010 = vmatprep.subr.mxu0 0.0
      %1011 = vmatpush2.msra.mxu0 0.0
      %1012 = vmatprep.subr.mxu0 0.0
      %1013 = vmatpush2.msra.mxu0 0.0
      %1014 = vmatprep.subr.mxu0 0.0
      %1015 = vmatpush2.msra.mxu0 0.0
      %1016 = vmatprep.subr.mxu0 0.0
      %1017 = vmatpush2.msra.mxu0 0.0
      %1018 = vmatprep.subr.mxu0 0.0
      %1019 = vmatpush2.msra.mxu0 0.0
      %1020 = vmatprep.subr.mxu0 0.0
      %1021 = vmatpush2.msra.mxu0 0.0
      %1022 = vmatprep.subr.mxu0 0.0
      %1023 = vmatpush2.msra.mxu0 0.0
      %1024 = vmatprep.subr.mxu0 0.0
      %1025 = vmatpush2.msra.mxu0 0.0
      %1026 = vmatprep.subr.mxu0 0.0
      %1027 = vmatpush2.msra.mxu0 0.0
      %1028 = vmatprep.subr.mxu0 0.0
      %1029 = vmatpush2.msra.mxu0 0.0
      %1030 = vmatprep.subr.mxu0 0.0
      %1031 = vmatpush2.msra.mxu0 0.0
      %1032 = vmatprep.subr.mxu0 0.0
      %1033 = vmatpush2.msra.mxu0 0.0
      %1034 = vmatprep.subr.mxu0 0.0
      %1035 = vmatpush2.msra.mxu0 0.0
      %1036 = vmatprep.subr.mxu0 0.0
      %1037 = vmatpush2.msra.mxu0 0.0
      %1038 = vmatprep.subr.mxu0 0.0
      %1039 = vmatpush2.msra.mxu0 0.0
      %1040 = vmatprep.subr.mxu0 0.0
      %1041 = vmatpush2.msra.mxu0 0.0
      %1042 = vmatprep.mubr.f32.mxu0 0.0
      %1043 = vmatmul.mubr.f32.gmra.mxu0 %v976
      %v1044 = vpop.f32.mrf.mxu0
      %v1045 = vadd.f32 0.0, %v1044
      %v1046 = vpop.f32.mrf.mxu0
      %1047 = vdwg.mxu0
      %v1049 = vsel %vm244, %v175, 0
      %1051 = vmatprep.subr.mxu0 0.0
      %1052 = vmatpush1.msra.mxu0 0.0
      %1053 = vmatprep.subr.mxu0 0.0
      %1054 = vmatpush1.msra.mxu0 0.0
      %1055 = vmatprep.subr.mxu0 0.0
      %1056 = vmatpush1.msra.mxu0 0.0
      %1057 = vmatprep.subr.mxu0 0.0
      %1058 = vmatpush1.msra.mxu0 0.0
      %1059 = vmatprep.subr.mxu0 0.0
      %1060 = vmatpush1.msra.mxu0 0.0
      %1061 = vmatprep.subr.mxu0 0.0
      %1062 = vmatpush1.msra.mxu0 0.0
      %1063 = vmatprep.subr.mxu0 0.0
      %1064 = vmatpush1.msra.mxu0 0.0
      %1065 = vmatprep.subr.mxu0 0.0
      %1066 = vmatpush1.msra.mxu0 0.0
      %1067 = vmatprep.subr.mxu0 0.0
      %1068 = vmatpush1.msra.mxu0 0.0
      %1069 = vmatprep.subr.mxu0 0.0
      %1070 = vmatpush1.msra.mxu0 0.0
      %1071 = vmatprep.subr.mxu0 0.0
      %1072 = vmatpush1.msra.mxu0 0.0
      %1073 = vmatprep.subr.mxu0 0.0
      %1074 = vmatpush1.msra.mxu0 0.0
      %1075 = vmatprep.subr.mxu0 0.0
      %1076 = vmatpush1.msra.mxu0 %v227
      %1077 = vmatprep.subr.mxu0 0.0
      %1078 = vmatpush1.msra.mxu0 %v226
      %1079 = vmatprep.subr.mxu0 0.0
      %1080 = vmatpush1.msra.mxu0 %v225
      %1081 = vmatprep.subr.mxu0 0.0
      %1082 = vmatpush1.msra.mxu0 %v224
      %1083 = vmatprep.subr.mxu0 0.0
      %1084 = vmatpush2.msra.mxu0 0.0
      %1085 = vmatprep.subr.mxu0 0.0
      %1086 = vmatpush2.msra.mxu0 0.0
      %1087 = vmatprep.subr.mxu0 0.0
      %1088 = vmatpush2.msra.mxu0 0.0
      %1089 = vmatprep.subr.mxu0 0.0
      %1090 = vmatpush2.msra.mxu0 0.0
      %1091 = vmatprep.subr.mxu0 0.0
      %1092 = vmatpush2.msra.mxu0 0.0
      %1093 = vmatprep.subr.mxu0 0.0
      %1094 = vmatpush2.msra.mxu0 0.0
      %1095 = vmatprep.subr.mxu0 0.0
      %1096 = vmatpush2.msra.mxu0 0.0
      %1097 = vmatprep.subr.mxu0 0.0
      %1098 = vmatpush2.msra.mxu0 0.0
      %1099 = vmatprep.subr.mxu0 0.0
      %1100 = vmatpush2.msra.mxu0 0.0
      %1101 = vmatprep.subr.mxu0 0.0
      %1102 = vmatpush2.msra.mxu0 0.0
      %1103 = vmatprep.subr.mxu0 0.0
      %1104 = vmatpush2.msra.mxu0 0.0
      %1105 = vmatprep.subr.mxu0 0.0
      %1106 = vmatpush2.msra.mxu0 0.0
      %1107 = vmatprep.subr.mxu0 0.0
      %1108 = vmatpush2.msra.mxu0 0.0
      %1109 = vmatprep.subr.mxu0 0.0
      %1110 = vmatpush2.msra.mxu0 0.0
      %1111 = vmatprep.subr.mxu0 0.0
      %1112 = vmatpush2.msra.mxu0 0.0
      %1113 = vmatprep.subr.mxu0 0.0
      %1114 = vmatpush2.msra.mxu0 0.0
      %1115 = vmatprep.mubr.f32.mxu0 0.0
      %1116 = vmatmul.mubr.f32.gmra.mxu0 %v1049
      %v1117 = vpop.f32.mrf.mxu0
      %v1118 = vadd.f32 0.0, %v1117
      %v1119 = vpop.f32.mrf.mxu0
      %1120 = vdwg.mxu0
      %v1122 = vsel %vm244, %v176, 0
      %1124 = vmatprep.subr.mxu0 0.0
      %1125 = vmatpush1.msra.mxu0 0.0
      %1126 = vmatprep.subr.mxu0 0.0
      %1127 = vmatpush1.msra.mxu0 0.0
      %1128 = vmatprep.subr.mxu0 0.0
      %1129 = vmatpush1.msra.mxu0 0.0
      %1130 = vmatprep.subr.mxu0 0.0
      %1131 = vmatpush1.msra.mxu0 0.0
      %1132 = vmatprep.subr.mxu0 0.0
      %1133 = vmatpush1.msra.mxu0 0.0
      %1134 = vmatprep.subr.mxu0 0.0
      %1135 = vmatpush1.msra.mxu0 0.0
      %1136 = vmatprep.subr.mxu0 0.0
      %1137 = vmatpush1.msra.mxu0 0.0
      %1138 = vmatprep.subr.mxu0 0.0
      %1139 = vmatpush1.msra.mxu0 0.0
      %1140 = vmatprep.subr.mxu0 0.0
      %1141 = vmatpush1.msra.mxu0 0.0
      %1142 = vmatprep.subr.mxu0 0.0
      %1143 = vmatpush1.msra.mxu0 0.0
      %1144 = vmatprep.subr.mxu0 0.0
      %1145 = vmatpush1.msra.mxu0 0.0
      %1146 = vmatprep.subr.mxu0 0.0
      %1147 = vmatpush1.msra.mxu0 0.0
      %1148 = vmatprep.subr.mxu0 0.0
      %1149 = vmatpush1.msra.mxu0 %v231
      %1150 = vmatprep.subr.mxu0 0.0
      %1151 = vmatpush1.msra.mxu0 %v230
      %1152 = vmatprep.subr.mxu0 0.0
      %1153 = vmatpush1.msra.mxu0 %v229
      %1154 = vmatprep.subr.mxu0 0.0
      %1155 = vmatpush1.msra.mxu0 %v228
      %1156 = vmatprep.subr.mxu0 0.0
      %1157 = vmatpush2.msra.mxu0 0.0
      %1158 = vmatprep.subr.mxu0 0.0
      %1159 = vmatpush2.msra.mxu0 0.0
      %1160 = vmatprep.subr.mxu0 0.0
      %1161 = vmatpush2.msra.mxu0 0.0
      %1162 = vmatprep.subr.mxu0 0.0
      %1163 = vmatpush2.msra.mxu0 0.0
      %1164 = vmatprep.subr.mxu0 0.0
      %1165 = vmatpush2.msra.mxu0 0.0
      %1166 = vmatprep.subr.mxu0 0.0
      %1167 = vmatpush2.msra.mxu0 0.0
      %1168 = vmatprep.subr.mxu0 0.0
      %1169 = vmatpush2.msra.mxu0 0.0
      %1170 = vmatprep.subr.mxu0 0.0
      %1171 = vmatpush2.msra.mxu0 0.0
      %1172 = vmatprep.subr.mxu0 0.0
      %1173 = vmatpush2.msra.mxu0 0.0
      %1174 = vmatprep.subr.mxu0 0.0
      %1175 = vmatpush2.msra.mxu0 0.0
      %1176 = vmatprep.subr.mxu0 0.0
      %1177 = vmatpush2.msra.mxu0 0.0
      %1178 = vmatprep.subr.mxu0 0.0
      %1179 = vmatpush2.msra.mxu0 0.0
      %1180 = vmatprep.subr.mxu0 0.0
      %1181 = vmatpush2.msra.mxu0 0.0
      %1182 = vmatprep.subr.mxu0 0.0
      %1183 = vmatpush2.msra.mxu0 0.0
      %1184 = vmatprep.subr.mxu0 0.0
      %1185 = vmatpush2.msra.mxu0 0.0
      %1186 = vmatprep.subr.mxu0 0.0
      %1187 = vmatpush2.msra.mxu0 0.0
      %1188 = vmatprep.mubr.f32.mxu0 0.0
      %1189 = vmatmul.mubr.f32.gmra.mxu0 %v1122
      %v1190 = vpop.f32.mrf.mxu0
      %v1191 = vadd.f32 0.0, %v1190
      %v1192 = vpop.f32.mrf.mxu0
      %1193 = vdwg.mxu0
      %v1195 = vsel %vm244, %v177, 0
      %1197 = vmatprep.subr.mxu0 0.0
      %1198 = vmatpush1.msra.mxu0 0.0
      %1199 = vmatprep.subr.mxu0 0.0
      %1200 = vmatpush1.msra.mxu0 0.0
      %1201 = vmatprep.subr.mxu0 0.0
      %1202 = vmatpush1.msra.mxu0 0.0
      %1203 = vmatprep.subr.mxu0 0.0
      %1204 = vmatpush1.msra.mxu0 0.0
      %1205 = vmatprep.subr.mxu0 0.0
      %1206 = vmatpush1.msra.mxu0 0.0
      %1207 = vmatprep.subr.mxu0 0.0
      %1208 = vmatpush1.msra.mxu0 0.0
      %1209 = vmatprep.subr.mxu0 0.0
      %1210 = vmatpush1.msra.mxu0 0.0
      %1211 = vmatprep.subr.mxu0 0.0
      %1212 = vmatpush1.msra.mxu0 0.0
      %1213 = vmatprep.subr.mxu0 0.0
      %1214 = vmatpush1.msra.mxu0 0.0
      %1215 = vmatprep.subr.mxu0 0.0
      %1216 = vmatpush1.msra.mxu0 0.0
      %1217 = vmatprep.subr.mxu0 0.0
      %1218 = vmatpush1.msra.mxu0 0.0
      %1219 = vmatprep.subr.mxu0 0.0
      %1220 = vmatpush1.msra.mxu0 0.0
      %1221 = vmatprep.subr.mxu0 0.0
      %1222 = vmatpush1.msra.mxu0 %v235
      %1223 = vmatprep.subr.mxu0 0.0
      %1224 = vmatpush1.msra.mxu0 %v234
      %1225 = vmatprep.subr.mxu0 0.0
      %1226 = vmatpush1.msra.mxu0 %v233
      %1227 = vmatprep.subr.mxu0 0.0
      %1228 = vmatpush1.msra.mxu0 %v232
      %1229 = vmatprep.subr.mxu0 0.0
      %1230 = vmatpush2.msra.mxu0 0.0
      %1231 = vmatprep.subr.mxu0 0.0
      %1232 = vmatpush2.msra.mxu0 0.0
      %1233 = vmatprep.subr.mxu0 0.0
      %1234 = vmatpush2.msra.mxu0 0.0
      %1235 = vmatprep.subr.mxu0 0.0
      %1236 = vmatpush2.msra.mxu0 0.0
      %1237 = vmatprep.subr.mxu0 0.0
      %1238 = vmatpush2.msra.mxu0 0.0
      %1239 = vmatprep.subr.mxu0 0.0
      %1240 = vmatpush2.msra.mxu0 0.0
      %1241 = vmatprep.subr.mxu0 0.0
      %1242 = vmatpush2.msra.mxu0 0.0
      %1243 = vmatprep.subr.mxu0 0.0
      %1244 = vmatpush2.msra.mxu0 0.0
      %1245 = vmatprep.subr.mxu0 0.0
      %1246 = vmatpush2.msra.mxu0 0.0
      %1247 = vmatprep.subr.mxu0 0.0
      %1248 = vmatpush2.msra.mxu0 0.0
      %1249 = vmatprep.subr.mxu0 0.0
      %1250 = vmatpush2.msra.mxu0 0.0
      %1251 = vmatprep.subr.mxu0 0.0
      %1252 = vmatpush2.msra.mxu0 0.0
      %1253 = vmatprep.subr.mxu0 0.0
      %1254 = vmatpush2.msra.mxu0 0.0
      %1255 = vmatprep.subr.mxu0 0.0
      %1256 = vmatpush2.msra.mxu0 0.0
      %1257 = vmatprep.subr.mxu0 0.0
      %1258 = vmatpush2.msra.mxu0 0.0
      %1259 = vmatprep.subr.mxu0 0.0
      %1260 = vmatpush2.msra.mxu0 0.0
      %1261 = vmatprep.mubr.f32.mxu0 0.0
      %1262 = vmatmul.mubr.f32.gmra.mxu0 %v1195
      %v1263 = vpop.f32.mrf.mxu0
      %v1264 = vadd.f32 0.0, %v1263
      %v1265 = vpop.f32.mrf.mxu0
      %1266 = vdwg.mxu0
      %v1268 = vsel %vm244, %v178, 0
      %1270 = vmatprep.subr.mxu0 0.0
      %1271 = vmatpush1.msra.mxu0 0.0
      %1272 = vmatprep.subr.mxu0 0.0
      %1273 = vmatpush1.msra.mxu0 0.0
      %1274 = vmatprep.subr.mxu0 0.0
      %1275 = vmatpush1.msra.mxu0 0.0
      %1276 = vmatprep.subr.mxu0 0.0
      %1277 = vmatpush1.msra.mxu0 0.0
      %1278 = vmatprep.subr.mxu0 0.0
      %1279 = vmatpush1.msra.mxu0 0.0
      %1280 = vmatprep.subr.mxu0 0.0
      %1281 = vmatpush1.msra.mxu0 0.0
      %1282 = vmatprep.subr.mxu0 0.0
      %1283 = vmatpush1.msra.mxu0 0.0
      %1284 = vmatprep.subr.mxu0 0.0
      %1285 = vmatpush1.msra.mxu0 0.0
      %1286 = vmatprep.subr.mxu0 0.0
      %1287 = vmatpush1.msra.mxu0 0.0
      %1288 = vmatprep.subr.mxu0 0.0
      %1289 = vmatpush1.msra.mxu0 0.0
      %1290 = vmatprep.subr.mxu0 0.0
      %1291 = vmatpush1.msra.mxu0 0.0
      %1292 = vmatprep.subr.mxu0 0.0
      %1293 = vmatpush1.msra.mxu0 0.0
      %1294 = vmatprep.subr.mxu0 0.0
      %1295 = vmatpush1.msra.mxu0 %v239
      %1296 = vmatprep.subr.mxu0 0.0
      %1297 = vmatpush1.msra.mxu0 %v238
      %1298 = vmatprep.subr.mxu0 0.0
      %1299 = vmatpush1.msra.mxu0 %v237
      %1300 = vmatprep.subr.mxu0 0.0
      %1301 = vmatpush1.msra.mxu0 %v236
      %1302 = vmatprep.subr.mxu0 0.0
      %1303 = vmatpush2.msra.mxu0 0.0
      %1304 = vmatprep.subr.mxu0 0.0
      %1305 = vmatpush2.msra.mxu0 0.0
      %1306 = vmatprep.subr.mxu0 0.0
      %1307 = vmatpush2.msra.mxu0 0.0
      %1308 = vmatprep.subr.mxu0 0.0
      %1309 = vmatpush2.msra.mxu0 0.0
      %1310 = vmatprep.subr.mxu0 0.0
      %1311 = vmatpush2.msra.mxu0 0.0
      %1312 = vmatprep.subr.mxu0 0.0
      %1313 = vmatpush2.msra.mxu0 0.0
      %1314 = vmatprep.subr.mxu0 0.0
      %1315 = vmatpush2.msra.mxu0 0.0
      %1316 = vmatprep.subr.mxu0 0.0
      %1317 = vmatpush2.msra.mxu0 0.0
      %1318 = vmatprep.subr.mxu0 0.0
      %1319 = vmatpush2.msra.mxu0 0.0
      %1320 = vmatprep.subr.mxu0 0.0
      %1321 = vmatpush2.msra.mxu0 0.0
      %1322 = vmatprep.subr.mxu0 0.0
      %1323 = vmatpush2.msra.mxu0 0.0
      %1324 = vmatprep.subr.mxu0 0.0
      %1325 = vmatpush2.msra.mxu0 0.0
      %1326 = vmatprep.subr.mxu0 0.0
      %1327 = vmatpush2.msra.mxu0 0.0
      %1328 = vmatprep.subr.mxu0 0.0
      %1329 = vmatpush2.msra.mxu0 0.0
      %1330 = vmatprep.subr.mxu0 0.0
      %1331 = vmatpush2.msra.mxu0 0.0
      %1332 = vmatprep.subr.mxu0 0.0
      %1333 = vmatpush2.msra.mxu0 0.0
      %1334 = vmatprep.mubr.f32.mxu0 0.0
      %1335 = vmatmul.mubr.f32.gmra.mxu0 %v1268
      %v1336 = vpop.f32.mrf.mxu0
      %v1337 = vadd.f32 0.0, %v1336
      %v1338 = vpop.f32.mrf.mxu0
      %1339 = vdwg.mxu0
      %v1341 = vsel %vm244, %v179, 0
      %1343 = vmatprep.subr.mxu0 0.0
      %1344 = vmatpush1.msra.mxu0 0.0
      %1345 = vmatprep.subr.mxu0 0.0
      %1346 = vmatpush1.msra.mxu0 0.0
      %1347 = vmatprep.subr.mxu0 0.0
      %1348 = vmatpush1.msra.mxu0 0.0
      %1349 = vmatprep.subr.mxu0 0.0
      %1350 = vmatpush1.msra.mxu0 0.0
      %1351 = vmatprep.subr.mxu0 0.0
      %1352 = vmatpush1.msra.mxu0 0.0
      %1353 = vmatprep.subr.mxu0 0.0
      %1354 = vmatpush1.msra.mxu0 0.0
      %1355 = vmatprep.subr.mxu0 0.0
      %1356 = vmatpush1.msra.mxu0 0.0
      %1357 = vmatprep.subr.mxu0 0.0
      %1358 = vmatpush1.msra.mxu0 0.0
      %1359 = vmatprep.subr.mxu0 0.0
      %1360 = vmatpush1.msra.mxu0 0.0
      %1361 = vmatprep.subr.mxu0 0.0
      %1362 = vmatpush1.msra.mxu0 0.0
      %1363 = vmatprep.subr.mxu0 0.0
      %1364 = vmatpush1.msra.mxu0 0.0
      %1365 = vmatprep.subr.mxu0 0.0
      %1366 = vmatpush1.msra.mxu0 0.0
      %1367 = vmatprep.subr.mxu0 0.0
      %1368 = vmatpush1.msra.mxu0 %v243
      %1369 = vmatprep.subr.mxu0 0.0
      %1370 = vmatpush1.msra.mxu0 %v242
      %1371 = vmatprep.subr.mxu0 0.0
      %1372 = vmatpush1.msra.mxu0 %v241
      %1373 = vmatprep.subr.mxu0 0.0
      %1374 = vmatpush1.msra.mxu0 %v240
      %1375 = vmatprep.subr.mxu0 0.0
      %1376 = vmatpush2.msra.mxu0 0.0
      %1377 = vmatprep.subr.mxu0 0.0
      %1378 = vmatpush2.msra.mxu0 0.0
      %1379 = vmatprep.subr.mxu0 0.0
      %1380 = vmatpush2.msra.mxu0 0.0
      %1381 = vmatprep.subr.mxu0 0.0
      %1382 = vmatpush2.msra.mxu0 0.0
      %1383 = vmatprep.subr.mxu0 0.0
      %1384 = vmatpush2.msra.mxu0 0.0
      %1385 = vmatprep.subr.mxu0 0.0
      %1386 = vmatpush2.msra.mxu0 0.0
      %1387 = vmatprep.subr.mxu0 0.0
      %1388 = vmatpush2.msra.mxu0 0.0
      %1389 = vmatprep.subr.mxu0 0.0
      %1390 = vmatpush2.msra.mxu0 0.0
      %1391 = vmatprep.subr.mxu0 0.0
      %1392 = vmatpush2.msra.mxu0 0.0
      %1393 = vmatprep.subr.mxu0 0.0
      %1394 = vmatpush2.msra.mxu0 0.0
      %1395 = vmatprep.subr.mxu0 0.0
      %1396 = vmatpush2.msra.mxu0 0.0
      %1397 = vmatprep.subr.mxu0 0.0
      %1398 = vmatpush2.msra.mxu0 0.0
      %1399 = vmatprep.subr.mxu0 0.0
      %1400 = vmatpush2.msra.mxu0 0.0
      %1401 = vmatprep.subr.mxu0 0.0
      %1402 = vmatpush2.msra.mxu0 0.0
      %1403 = vmatprep.subr.mxu0 0.0
      %1404 = vmatpush2.msra.mxu0 0.0
      %1405 = vmatprep.subr.mxu0 0.0
      %1406 = vmatpush2.msra.mxu0 0.0
      %1407 = vmatprep.mubr.f32.mxu0 0.0
      %1408 = vmatmul.mubr.f32.gmra.mxu0 %v1341
      %v1409 = vpop.f32.mrf.mxu0
      %v1410 = vadd.f32 0.0, %v1409
      %v1411 = vpop.f32.mrf.mxu0
      %1412 = vdwg.mxu0
      %vm1413 = vcmask 254976
      %1414 = vst.msk [vmem:[%s163] sm:$0x3] %vm1413, %v315
      %1415 = vst.msk [vmem:[%s163 + $0x2] sm:$0x3] %vm1413, %v388
      %1416 = vst.msk [vmem:[%s163 + $0x4] sm:$0x3] %vm1413, %v461
      %1417 = vst.msk [vmem:[%s163 + $0x6] sm:$0x3] %vm1413, %v534
      %1418 = vst.msk [vmem:[%s163 + $0x8] sm:$0x3] %vm1413, %v607
      %1419 = vst.msk [vmem:[%s163 + $0xa] sm:$0x3] %vm1413, %v680
      %1420 = vst.msk [vmem:[%s163 + $0xc] sm:$0x3] %vm1413, %v753
      %1421 = vst.msk [vmem:[%s163 + $0xe] sm:$0x3] %vm1413, %v826
      %1422 = vst.msk [vmem:[%s163 + $0x10] sm:$0x3] %vm1413, %v899
      %1423 = vst.msk [vmem:[%s163 + $0x12] sm:$0x3] %vm1413, %v972
      %1424 = vst.msk [vmem:[%s163 + $0x14] sm:$0x3] %vm1413, %v1045
      %1425 = vst.msk [vmem:[%s163 + $0x16] sm:$0x3] %vm1413, %v1118
      %1426 = vst.msk [vmem:[%s163 + $0x18] sm:$0x3] %vm1413, %v1191
      %1427 = vst.msk [vmem:[%s163 + $0x1a] sm:$0x3] %vm1413, %v1264
      %1428 = vst.msk [vmem:[%s163 + $0x1c] sm:$0x3] %vm1413, %v1337
      %1429 = vst.msk [vmem:[%s163 + $0x1e] sm:$0x3] %vm1413, %v1410
      %p1430 = scmp.lt.s32.totalorder %s13, 1
      %s1431 = scalar_select %p1430, %s13, 1
      %s1432 = smul.addr %s1431, 16
      %s1433 = smul.addr %s1432, 2
      %s1434 = scalar_lea.vmem %s2, %s1433
      // Predicated region
      $region29: #{simple_block2d.10} parent=27 // pred_check
        %p1435 = pneg %p83
      $region30: #{simple_block2d.10} parent=27 // pred_check_branch
        %1437 = sbr.rel (%p1435) target = $region32
      $region31: #{simple_block2d.10} parent=27 // pred_region
        _
      $region32: #{simple_block2d.10} parent=27 // pred_fallthru
        _
    $region28: #{simple_block2d.10} parent=5 // pred_fallthru
      _
    %p1438 = scmp.le.s32.totalorder 2, %s8
    // Predicated region
    $region33: #{simple_block2d.10} parent=5 // pred_check
      %p1439 = pneg %p1438
    $region34: #{simple_block2d.10} parent=5 // pred_check_branch
      %1441 = sbr.rel (%p1439) target = $region36
    $region35: #{simple_block2d.10} parent=5 // pred_region
      %s1442 = ssub.s32 %s8, 2
      // Predicated region
      $region37: #{simple_block2d.10} parent=35 // pred_check
        %p1443 = pneg %p89
      $region38: #{simple_block2d.10} parent=35 // pred_check_branch
        %1445 = sbr.rel (%p1443) target = $region40
      $region39: #{simple_block2d.10} parent=35 // pred_region
        %p1446 = scmp.lt.s32.totalorder %s14, 1
        %s1447 = scalar_select %p1446, %s14, 1
        %s1448 = smul.addr %s1447, 16
        %s1449 = smul.addr %s1448, 2
        %s1450 = scalar_lea.vmem %s2, %s1449
      $region40: #{simple_block2d.10} parent=35 // pred_fallthru
        _
    $region36: #{simple_block2d.10} parent=5 // pred_fallthru
      _
  $region6: #{simple_block2d.10} parent=0 // loop_footer
    %s12 = sadd.s32 1, %s8
  $region7: #{simple_block2d.10} parent=0 // loop_footer_branch
    %7 = sbr.rel target = $region3
  $region8: #{simple_block2d.10} parent=0 // loop_exit
    _

// kernel: reverse.8
$region0: #{reverse.8}
  #allocation0 [shape = 's32[1]{0}', space=sflag, size = 0x4, scoped, tag = 'scoped memory for reverse.8']
  %s0 = inlined_call_operand.vmem [shape: f32[2,16,16,7], index: 0, kind: input, shape index: {}]
  %s1 = inlined_call_operand.vmem [shape: f32[2,16,16,7], index: 1, kind: output, shape index: {}]
  %s2 = scalar_lea.vmem %s0, 96
  %v3 = vld [vmem:[%s2] sm:$0xff]
  %4 = vst [vmem:[%s1] sm:$0xff] %v3
  %s5 = scalar_lea.vmem %s0, 208
  %v6 = vld [vmem:[%s5] sm:$0xff]
  %s7 = scalar_lea.vmem %s1, 112
  %8 = vst [vmem:[%s7] sm:$0xff] %v6
  %s9 = scalar_lea.vmem %s0, 80
  %v10 = vld [vmem:[%s9] sm:$0xff]
  %s11 = scalar_lea.vmem %s1, 16
  %12 = vst [vmem:[%s11] sm:$0xff] %v10
  %s13 = scalar_lea.vmem %s0, 192
  %v14 = vld [vmem:[%s13] sm:$0xff]
  %s15 = scalar_lea.vmem %s1, 128
  %16 = vst [vmem:[%s15] sm:$0xff] %v14
  %s17 = scalar_lea.vmem %s0, 64
  %v18 = vld [vmem:[%s17] sm:$0xff]
  %s19 = scalar_lea.vmem %s1, 32
  %20 = vst [vmem:[%s19] sm:$0xff] %v18
  %s21 = scalar_lea.vmem %s0, 176
  %v22 = vld [vmem:[%s21] sm:$0xff]
  %s23 = scalar_lea.vmem %s1, 144
  %24 = vst [vmem:[%s23] sm:$0xff] %v22
  %s25 = scalar_lea.vmem %s0, 48
  %v26 = vld [vmem:[%s25] sm:$0xff]
  %s27 = scalar_lea.vmem %s1, 48
  %28 = vst [vmem:[%s27] sm:$0xff] %v26
  %s29 = scalar_lea.vmem %s0, 160
  %v30 = vld [vmem:[%s29] sm:$0xff]
  %s31 = scalar_lea.vmem %s1, 160
  %32 = vst [vmem:[%s31] sm:$0xff] %v30
  %s33 = scalar_lea.vmem %s0, 32
  %v34 = vld [vmem:[%s33] sm:$0xff]
  %s35 = scalar_lea.vmem %s1, 64
  %36 = vst [vmem:[%s35] sm:$0xff] %v34
  %s37 = scalar_lea.vmem %s0, 144
  %v38 = vld [vmem:[%s37] sm:$0xff]
  %s39 = scalar_lea.vmem %s1, 176
  %40 = vst [vmem:[%s39] sm:$0xff] %v38
  %s41 = scalar_lea.vmem %s0, 16
  %v42 = vld [vmem:[%s41] sm:$0xff]
  %s43 = scalar_lea.vmem %s1, 80
  %44 = vst [vmem:[%s43] sm:$0xff] %v42
  %s45 = scalar_lea.vmem %s0, 128
  %v46 = vld [vmem:[%s45] sm:$0xff]
  %s47 = scalar_lea.vmem %s1, 192
  %48 = vst [vmem:[%s47] sm:$0xff] %v46
  %v49 = vld [vmem:[%s0] sm:$0xff]
  %s50 = scalar_lea.vmem %s1, 96
  %51 = vst [vmem:[%s50] sm:$0xff] %v49
  %s52 = scalar_lea.vmem %s0, 112
  %v53 = vld [vmem:[%s52] sm:$0xff]
  %s54 = scalar_lea.vmem %s1, 208
  %55 = vst [vmem:[%s54] sm:$0xff] %v53
  %s56 = scalar_lea.vmem %s0, 104
  %v57 = vld [vmem:[%s56] sm:$0xff]
  %s58 = scalar_lea.vmem %s1, 8
  %59 = vst [vmem:[%s58] sm:$0xff] %v57
  %s60 = scalar_lea.vmem %s0, 216
  %v61 = vld [vmem:[%s60] sm:$0xff]
  %s62 = scalar_lea.vmem %s1, 120
  %63 = vst [vmem:[%s62] sm:$0xff] %v61
  %s64 = scalar_lea.vmem %s0, 88
  %v65 = vld [vmem:[%s64] sm:$0xff]
  %s66 = scalar_lea.vmem %s1, 24
  %67 = vst [vmem:[%s66] sm:$0xff] %v65
  %s68 = scalar_lea.vmem %s0, 200
  %v69 = vld [vmem:[%s68] sm:$0xff]
  %s70 = scalar_lea.vmem %s1, 136
  %71 = vst [vmem:[%s70] sm:$0xff] %v69
  %s72 = scalar_lea.vmem %s0, 72
  %v73 = vld [vmem:[%s72] sm:$0xff]
  %s74 = scalar_lea.vmem %s1, 40
  %75 = vst [vmem:[%s74] sm:$0xff] %v73
  %s76 = scalar_lea.vmem %s0, 184
  %v77 = vld [vmem:[%s76] sm:$0xff]
  %s78 = scalar_lea.vmem %s1, 152
  %79 = vst [vmem:[%s78] sm:$0xff] %v77
  %s80 = scalar_lea.vmem %s0, 56
  %v81 = vld [vmem:[%s80] sm:$0xff]
  %s82 = scalar_lea.vmem %s1, 56
  %83 = vst [vmem:[%s82] sm:$0xff] %v81
  %s84 = scalar_lea.vmem %s0, 168
  %v85 = vld [vmem:[%s84] sm:$0xff]
  %s86 = scalar_lea.vmem %s1, 168
  %87 = vst [vmem:[%s86] sm:$0xff] %v85
  %s88 = scalar_lea.vmem %s0, 40
  %v89 = vld [vmem:[%s88] sm:$0xff]
  %s90 = scalar_lea.vmem %s1, 72
  %91 = vst [vmem:[%s90] sm:$0xff] %v89
  %s92 = scalar_lea.vmem %s0, 152
  %v93 = vld [vmem:[%s92] sm:$0xff]
  %s94 = scalar_lea.vmem %s1, 184
  %95 = vst [vmem:[%s94] sm:$0xff] %v93
  %s96 = scalar_lea.vmem %s0, 24
  %v97 = vld [vmem:[%s96] sm:$0xff]
  %s98 = scalar_lea.vmem %s1, 88
  %99 = vst [vmem:[%s98] sm:$0xff] %v97
  %s100 = scalar_lea.vmem %s0, 136
  %v101 = vld [vmem:[%s100] sm:$0xff]
  %s102 = scalar_lea.vmem %s1, 200
  %103 = vst [vmem:[%s102] sm:$0xff] %v101
  %s104 = scalar_lea.vmem %s0, 8
  %v105 = vld [vmem:[%s104] sm:$0xff]
  %s106 = scalar_lea.vmem %s1, 104
  %107 = vst [vmem:[%s106] sm:$0xff] %v105
  %s108 = scalar_lea.vmem %s0, 120
  %v109 = vld [vmem:[%s108] sm:$0xff]
  %s110 = scalar_lea.vmem %s1, 216
  %111 = vst [vmem:[%s110] sm:$0xff] %v109

// kernel: simple_block2d.11
$region0: #{simple_block2d.11}
  #allocation0 [shape = 'u32[]', space=smem, size = 0x4, offset = 0x4, fixed_abs, tag = 'smem constant byte address 0x4 - core index']
  #allocation1 [shape = 'u32[144,128]{1,0:T(1,128)}', space=vmem, size = 0x12000, scoped, tag = 'internal scratch']
  %s0 = inlined_call_operand.vmem [shape: f32[512,16], index: 0, kind: input, shape index: {}]
  %s1 = inlined_call_operand.vmem [shape: f32[16,16], index: 1, kind: input, shape index: {}]
  %s2 = inlined_call_operand.vmem [shape: f32[1,16], index: 2, kind: input, shape index: {}]
  %s3 = inlined_call_operand.vmem [shape: f32[512,16], index: 3, kind: input, shape index: {}]
  %s4 = inlined_call_operand.vmem [shape: f32[1,16], index: 4, kind: input, shape index: {}]
  %s5 = inlined_call_operand.vmem [shape: f32[1,16], index: 5, kind: input, shape index: {}]
  %s6 = inlined_call_operand.vmem [shape: f32[512,16], index: 6, kind: output, shape index: {}]
  %s7 = sld [smem:[#allocation0]]
  $region34: #{simple_block2d.11} parent=0
    _
  %s9 = ssub.s32 1, %s7
  %s10 = scalar_select 0, %s9, %s7
  // Predicated region
  $region2: #{simple_block2d.11} parent=0 // pred_check
    _
  $region3: #{simple_block2d.11} parent=0 // pred_check_branch
    %12 = sbr.rel (0) target = $region5
  $region4: #{simple_block2d.11} parent=0 // pred_region
    _
  $region5: #{simple_block2d.11} parent=0 // pred_fallthru
    _
  // Predicated region
  $region6: #{simple_block2d.11} parent=0 // pred_check
    _
  $region7: #{simple_block2d.11} parent=0 // pred_check_branch
    %14 = sbr.rel (0) target = $region9
  $region8: #{simple_block2d.11} parent=0 // pred_region
    _
  $region9: #{simple_block2d.11} parent=0 // pred_fallthru
    _
  // Predicated region
  $region10: #{simple_block2d.11} parent=0 // pred_check
    _
  $region11: #{simple_block2d.11} parent=0 // pred_check_branch
    %16 = sbr.rel (0) target = $region13
  $region12: #{simple_block2d.11} parent=0 // pred_region
    _
  $region13: #{simple_block2d.11} parent=0 // pred_fallthru
    _
  // Predicated region
  $region14: #{simple_block2d.11} parent=0 // pred_check
    _
  $region15: #{simple_block2d.11} parent=0 // pred_check_branch
    %18 = sbr.rel (0) target = $region17
  $region16: #{simple_block2d.11} parent=0 // pred_region
    _
  $region17: #{simple_block2d.11} parent=0 // pred_fallthru
    _
  // Predicated region
  $region18: #{simple_block2d.11} parent=0 // pred_check
    _
  $region19: #{simple_block2d.11} parent=0 // pred_check_branch
    %20 = sbr.rel (0) target = $region21
  $region20: #{simple_block2d.11} parent=0 // pred_region
    _
  $region21: #{simple_block2d.11} parent=0 // pred_fallthru
    _
  // Predicated region
  $region22: #{simple_block2d.11} parent=0 // pred_check
    _
  $region23: #{simple_block2d.11} parent=0 // pred_check_branch
    %22 = sbr.rel (0) target = $region25
  $region24: #{simple_block2d.11} parent=0 // pred_region
    _
  $region25: #{simple_block2d.11} parent=0 // pred_fallthru
    _
  %v23 = vld [vmem:[%s0] sm:$0xff]
  %v24 = vld [vmem:[%s0 + $0x8] sm:$0xff]
  %v25 = vld [vmem:[%s0 + $0x10] sm:$0xff]
  %v26 = vld [vmem:[%s0 + $0x18] sm:$0xff]
  %v27 = vld [vmem:[%s0 + $0x20] sm:$0xff]
  %v28 = vld [vmem:[%s0 + $0x28] sm:$0xff]
  %v29 = vld [vmem:[%s0 + $0x30] sm:$0xff]
  %v30 = vld [vmem:[%s0 + $0x38] sm:$0xff]
  %v31 = vld [vmem:[%s0 + $0x40] sm:$0xff]
  %v32 = vld [vmem:[%s0 + $0x48] sm:$0xff]
  %v33 = vld [vmem:[%s0 + $0x50] sm:$0xff]
  %v34 = vld [vmem:[%s0 + $0x58] sm:$0xff]
  %v35 = vld [vmem:[%s0 + $0x60] sm:$0xff]
  %v36 = vld [vmem:[%s0 + $0x68] sm:$0xff]
  %v37 = vld [vmem:[%s0 + $0x70] sm:$0xff]
  %v38 = vld [vmem:[%s0 + $0x78] sm:$0xff]
  %v39 = vld [vmem:[%s0 + $0x80] sm:$0xff]
  %v40 = vld [vmem:[%s0 + $0x88] sm:$0xff]
  %v41 = vld [vmem:[%s0 + $0x90] sm:$0xff]
  %v42 = vld [vmem:[%s0 + $0x98] sm:$0xff]
  %v43 = vld [vmem:[%s0 + $0xa0] sm:$0xff]
  %v44 = vld [vmem:[%s0 + $0xa8] sm:$0xff]
  %v45 = vld [vmem:[%s0 + $0xb0] sm:$0xff]
  %v46 = vld [vmem:[%s0 + $0xb8] sm:$0xff]
  %v47 = vld [vmem:[%s0 + $0xc0] sm:$0xff]
  %v48 = vld [vmem:[%s0 + $0xc8] sm:$0xff]
  %v49 = vld [vmem:[%s0 + $0xd0] sm:$0xff]
  %v50 = vld [vmem:[%s0 + $0xd8] sm:$0xff]
  %v51 = vld [vmem:[%s0 + $0xe0] sm:$0xff]
  %v52 = vld [vmem:[%s0 + $0xe8] sm:$0xff]
  %v53 = vld [vmem:[%s0 + $0xf0] sm:$0xff]
  %v54 = vld [vmem:[%s0 + $0xf8] sm:$0xff]
  %v55 = vld [vmem:[%s0 + $0x100] sm:$0xff]
  %v56 = vld [vmem:[%s0 + $0x108] sm:$0xff]
  %v57 = vld [vmem:[%s0 + $0x110] sm:$0xff]
  %v58 = vld [vmem:[%s0 + $0x118] sm:$0xff]
  %v59 = vld [vmem:[%s0 + $0x120] sm:$0xff]
  %v60 = vld [vmem:[%s0 + $0x128] sm:$0xff]
  %v61 = vld [vmem:[%s0 + $0x130] sm:$0xff]
  %v62 = vld [vmem:[%s0 + $0x138] sm:$0xff]
  %v63 = vld [vmem:[%s0 + $0x140] sm:$0xff]
  %v64 = vld [vmem:[%s0 + $0x148] sm:$0xff]
  %v65 = vld [vmem:[%s0 + $0x150] sm:$0xff]
  %v66 = vld [vmem:[%s0 + $0x158] sm:$0xff]
  %v67 = vld [vmem:[%s0 + $0x160] sm:$0xff]
  %v68 = vld [vmem:[%s0 + $0x168] sm:$0xff]
  %v69 = vld [vmem:[%s0 + $0x170] sm:$0xff]
  %v70 = vld [vmem:[%s0 + $0x178] sm:$0xff]
  %v71 = vld [vmem:[%s0 + $0x180] sm:$0xff]
  %v72 = vld [vmem:[%s0 + $0x188] sm:$0xff]
  %v73 = vld [vmem:[%s0 + $0x190] sm:$0xff]
  %v74 = vld [vmem:[%s0 + $0x198] sm:$0xff]
  %v75 = vld [vmem:[%s0 + $0x1a0] sm:$0xff]
  %v76 = vld [vmem:[%s0 + $0x1a8] sm:$0xff]
  %v77 = vld [vmem:[%s0 + $0x1b0] sm:$0xff]
  %v78 = vld [vmem:[%s0 + $0x1b8] sm:$0xff]
  %v79 = vld [vmem:[%s0 + $0x1c0] sm:$0xff]
  %v80 = vld [vmem:[%s0 + $0x1c8] sm:$0xff]
  %v81 = vld [vmem:[%s0 + $0x1d0] sm:$0xff]
  %v82 = vld [vmem:[%s0 + $0x1d8] sm:$0xff]
  %v83 = vld [vmem:[%s0 + $0x1e0] sm:$0xff]
  %v84 = vld [vmem:[%s0 + $0x1e8] sm:$0xff]
  %v85 = vld [vmem:[%s0 + $0x1f0] sm:$0xff]
  %v86 = vld [vmem:[%s0 + $0x1f8] sm:$0xff]
  %v87 = vld [vmem:[%s1] sm:$0xff]
  %v88 = vld [vmem:[%s1 + $0x8] sm:$0xff]
  %v89 = vld [vmem:[%s2] sm:$0x1]
  %v91 = vlaneseq
  %v92 = vshrl.u32 %v91, 7
  %v93 = vsub.s32 0, %v92
  %v94 = vrot.slane %v89, %v93
  %vm96 = vcmask 130048
  %v98 = vsel %vm96, %v23, 0
  %v101 = vsel %vm96, %v24, 0
  %v104 = vsel %vm96, %v25, 0
  %v107 = vsel %vm96, %v26, 0
  %v110 = vsel %vm96, %v27, 0
  %v113 = vsel %vm96, %v28, 0
  %v116 = vsel %vm96, %v29, 0
  %v119 = vsel %vm96, %v30, 0
  %v122 = vsel %vm96, %v31, 0
  %v125 = vsel %vm96, %v32, 0
  %v128 = vsel %vm96, %v33, 0
  %v131 = vsel %vm96, %v34, 0
  %v134 = vsel %vm96, %v35, 0
  %v137 = vsel %vm96, %v36, 0
  %v140 = vsel %vm96, %v37, 0
  %v143 = vsel %vm96, %v38, 0
  %v146 = vsel %vm96, %v39, 0
  %v149 = vsel %vm96, %v40, 0
  %v152 = vsel %vm96, %v41, 0
  %v155 = vsel %vm96, %v42, 0
  %v158 = vsel %vm96, %v43, 0
  %v161 = vsel %vm96, %v44, 0
  %v164 = vsel %vm96, %v45, 0
  %v167 = vsel %vm96, %v46, 0
  %v170 = vsel %vm96, %v47, 0
  %v173 = vsel %vm96, %v48, 0
  %v176 = vsel %vm96, %v49, 0
  %v179 = vsel %vm96, %v50, 0
  %v182 = vsel %vm96, %v51, 0
  %v185 = vsel %vm96, %v52, 0
  %v188 = vsel %vm96, %v53, 0
  %v191 = vsel %vm96, %v54, 0
  %v194 = vsel %vm96, %v55, 0
  %v197 = vsel %vm96, %v56, 0
  %v200 = vsel %vm96, %v57, 0
  %v203 = vsel %vm96, %v58, 0
  %v206 = vsel %vm96, %v59, 0
  %v209 = vsel %vm96, %v60, 0
  %v212 = vsel %vm96, %v61, 0
  %v215 = vsel %vm96, %v62, 0
  %v218 = vsel %vm96, %v63, 0
  %v221 = vsel %vm96, %v64, 0
  %v224 = vsel %vm96, %v65, 0
  %v227 = vsel %vm96, %v66, 0
  %v230 = vsel %vm96, %v67, 0
  %v233 = vsel %vm96, %v68, 0
  %v236 = vsel %vm96, %v69, 0
  %v239 = vsel %vm96, %v70, 0
  %v242 = vsel %vm96, %v71, 0
  %v245 = vsel %vm96, %v72, 0
  %v248 = vsel %vm96, %v73, 0
  %v251 = vsel %vm96, %v74, 0
  %v254 = vsel %vm96, %v75, 0
  %v257 = vsel %vm96, %v76, 0
  %v260 = vsel %vm96, %v77, 0
  %v263 = vsel %vm96, %v78, 0
  %v266 = vsel %vm96, %v79, 0
  %v269 = vsel %vm96, %v80, 0
  %v272 = vsel %vm96, %v81, 0
  %v275 = vsel %vm96, %v82, 0
  %v278 = vsel %vm96, %v83, 0
  %v281 = vsel %vm96, %v84, 0
  %v284 = vsel %vm96, %v85, 0
  %v287 = vsel %vm96, %v86, 0
  %289 = vmatprep.subr.mxu0 0.0
  %290 = vmatpush1.msra.mxu0 0.0
  %291 = vmatprep.subr.mxu0 0.0
  %292 = vmatpush1.msra.mxu0 0.0
  %293 = vmatprep.subr.mxu0 0.0
  %294 = vmatpush1.msra.mxu0 0.0
  %295 = vmatprep.subr.mxu0 0.0
  %296 = vmatpush1.msra.mxu0 0.0
  %297 = vmatprep.subr.mxu0 0.0
  %298 = vmatpush1.msra.mxu0 0.0
  %299 = vmatprep.subr.mxu0 0.0
  %300 = vmatpush1.msra.mxu0 0.0
  %301 = vmatprep.subr.mxu0 0.0
  %302 = vmatpush1.msra.mxu0 0.0
  %303 = vmatprep.subr.mxu0 0.0
  %304 = vmatpush1.msra.mxu0 0.0
  %305 = vmatprep.subr.mxu0 0.0
  %306 = vmatpush1.msra.mxu0 0.0
  %307 = vmatprep.subr.mxu0 0.0
  %308 = vmatpush1.msra.mxu0 0.0
  %309 = vmatprep.subr.mxu0 0.0
  %310 = vmatpush1.msra.mxu0 0.0
  %311 = vmatprep.subr.mxu0 0.0
  %312 = vmatpush1.msra.mxu0 0.0
  %313 = vmatprep.subr.mxu0 0.0
  %314 = vmatpush1.msra.mxu0 0.0
  %315 = vmatprep.subr.mxu0 0.0
  %316 = vmatpush1.msra.mxu0 0.0
  %317 = vmatprep.subr.mxu0 0.0
  %318 = vmatpush1.msra.mxu0 %v88
  %319 = vmatprep.subr.mxu0 0.0
  %320 = vmatpush1.msra.mxu0 %v87
  %321 = vmatprep.subr.mxu0 0.0
  %322 = vmatpush2.msra.mxu0 0.0
  %323 = vmatprep.subr.mxu0 0.0
  %324 = vmatpush2.msra.mxu0 0.0
  %325 = vmatprep.subr.mxu0 0.0
  %326 = vmatpush2.msra.mxu0 0.0
  %327 = vmatprep.subr.mxu0 0.0
  %328 = vmatpush2.msra.mxu0 0.0
  %329 = vmatprep.subr.mxu0 0.0
  %330 = vmatpush2.msra.mxu0 0.0
  %331 = vmatprep.subr.mxu0 0.0
  %332 = vmatpush2.msra.mxu0 0.0
  %333 = vmatprep.subr.mxu0 0.0
  %334 = vmatpush2.msra.mxu0 0.0
  %335 = vmatprep.subr.mxu0 0.0
  %336 = vmatpush2.msra.mxu0 0.0
  %337 = vmatprep.subr.mxu0 0.0
  %338 = vmatpush2.msra.mxu0 0.0
  %339 = vmatprep.subr.mxu0 0.0
  %340 = vmatpush2.msra.mxu0 0.0
  %341 = vmatprep.subr.mxu0 0.0
  %342 = vmatpush2.msra.mxu0 0.0
  %343 = vmatprep.subr.mxu0 0.0
  %344 = vmatpush2.msra.mxu0 0.0
  %345 = vmatprep.subr.mxu0 0.0
  %346 = vmatpush2.msra.mxu0 0.0
  %347 = vmatprep.subr.mxu0 0.0
  %348 = vmatpush2.msra.mxu0 0.0
  %349 = vmatprep.subr.mxu0 0.0
  %350 = vmatpush2.msra.mxu0 0.0
  %351 = vmatprep.subr.mxu0 0.0
  %352 = vmatpush2.msra.mxu0 0.0
  %353 = vmatprep.mubr.f32.mxu0 0.0
  %354 = vmatmul.mubr.f32.gmra.mxu0 %v98
  %v355 = vpop.f32.mrf.mxu0
  %v356 = vadd.f32 %v94, %v355
  %v357 = vpop.f32.mrf.mxu0
  %358 = vmatprep.mubr.f32.mxu0 0.0
  %359 = vmatmul.mubr.f32.gmra.mxu0 %v101
  %v360 = vpop.f32.mrf.mxu0
  %v361 = vadd.f32 %v94, %v360
  %v362 = vpop.f32.mrf.mxu0
  %363 = vmatprep.mubr.f32.mxu0 0.0
  %364 = vmatmul.mubr.f32.gmra.mxu0 %v104
  %v365 = vpop.f32.mrf.mxu0
  %v366 = vadd.f32 %v94, %v365
  %v367 = vpop.f32.mrf.mxu0
  %368 = vmatprep.mubr.f32.mxu0 0.0
  %369 = vmatmul.mubr.f32.gmra.mxu0 %v107
  %v370 = vpop.f32.mrf.mxu0
  %v371 = vadd.f32 %v94, %v370
  %v372 = vpop.f32.mrf.mxu0
  %373 = vmatprep.mubr.f32.mxu0 0.0
  %374 = vmatmul.mubr.f32.gmra.mxu0 %v110
  %v375 = vpop.f32.mrf.mxu0
  %v376 = vadd.f32 %v94, %v375
  %v377 = vpop.f32.mrf.mxu0
  %378 = vmatprep.mubr.f32.mxu0 0.0
  %379 = vmatmul.mubr.f32.gmra.mxu0 %v113
  %v380 = vpop.f32.mrf.mxu0
  %v381 = vadd.f32 %v94, %v380
  %v382 = vpop.f32.mrf.mxu0
  %383 = vmatprep.mubr.f32.mxu0 0.0
  %384 = vmatmul.mubr.f32.gmra.mxu0 %v116
  %v385 = vpop.f32.mrf.mxu0
  %v386 = vadd.f32 %v94, %v385
  %v387 = vpop.f32.mrf.mxu0
  %388 = vmatprep.mubr.f32.mxu0 0.0
  %389 = vmatmul.mubr.f32.gmra.mxu0 %v119
  %v390 = vpop.f32.mrf.mxu0
  %v391 = vadd.f32 %v94, %v390
  %v392 = vpop.f32.mrf.mxu0
  %393 = vmatprep.mubr.f32.mxu0 0.0
  %394 = vmatmul.mubr.f32.gmra.mxu0 %v122
  %v395 = vpop.f32.mrf.mxu0
  %v396 = vadd.f32 %v94, %v395
  %v397 = vpop.f32.mrf.mxu0
  %398 = vmatprep.mubr.f32.mxu0 0.0
  %399 = vmatmul.mubr.f32.gmra.mxu0 %v125
  %v400 = vpop.f32.mrf.mxu0
  %v401 = vadd.f32 %v94, %v400
  %v402 = vpop.f32.mrf.mxu0
  %403 = vmatprep.mubr.f32.mxu0 0.0
  %404 = vmatmul.mubr.f32.gmra.mxu0 %v128
  %v405 = vpop.f32.mrf.mxu0
  %v406 = vadd.f32 %v94, %v405
  %v407 = vpop.f32.mrf.mxu0
  %408 = vmatprep.mubr.f32.mxu0 0.0
  %409 = vmatmul.mubr.f32.gmra.mxu0 %v131
  %v410 = vpop.f32.mrf.mxu0
  %v411 = vadd.f32 %v94, %v410
  %v412 = vpop.f32.mrf.mxu0
  %413 = vmatprep.mubr.f32.mxu0 0.0
  %414 = vmatmul.mubr.f32.gmra.mxu0 %v134
  %v415 = vpop.f32.mrf.mxu0
  %v416 = vadd.f32 %v94, %v415
  %v417 = vpop.f32.mrf.mxu0
  %418 = vmatprep.mubr.f32.mxu0 0.0
  %419 = vmatmul.mubr.f32.gmra.mxu0 %v137
  %v420 = vpop.f32.mrf.mxu0
  %v421 = vadd.f32 %v94, %v420
  %v422 = vpop.f32.mrf.mxu0
  %423 = vmatprep.mubr.f32.mxu0 0.0
  %424 = vmatmul.mubr.f32.gmra.mxu0 %v140
  %v425 = vpop.f32.mrf.mxu0
  %v426 = vadd.f32 %v94, %v425
  %v427 = vpop.f32.mrf.mxu0
  %428 = vmatprep.mubr.f32.mxu0 0.0
  %429 = vmatmul.mubr.f32.gmra.mxu0 %v143
  %v430 = vpop.f32.mrf.mxu0
  %v431 = vadd.f32 %v94, %v430
  %v432 = vpop.f32.mrf.mxu0
  %433 = vmatprep.mubr.f32.mxu0 0.0
  %434 = vmatmul.mubr.f32.gmra.mxu0 %v146
  %v435 = vpop.f32.mrf.mxu0
  %v436 = vadd.f32 %v94, %v435
  %v437 = vpop.f32.mrf.mxu0
  %438 = vmatprep.mubr.f32.mxu0 0.0
  %439 = vmatmul.mubr.f32.gmra.mxu0 %v149
  %v440 = vpop.f32.mrf.mxu0
  %v441 = vadd.f32 %v94, %v440
  %v442 = vpop.f32.mrf.mxu0
  %443 = vmatprep.mubr.f32.mxu0 0.0
  %444 = vmatmul.mubr.f32.gmra.mxu0 %v152
  %v445 = vpop.f32.mrf.mxu0
  %v446 = vadd.f32 %v94, %v445
  %v447 = vpop.f32.mrf.mxu0
  %448 = vmatprep.mubr.f32.mxu0 0.0
  %449 = vmatmul.mubr.f32.gmra.mxu0 %v155
  %v450 = vpop.f32.mrf.mxu0
  %v451 = vadd.f32 %v94, %v450
  %v452 = vpop.f32.mrf.mxu0
  %453 = vmatprep.mubr.f32.mxu0 0.0
  %454 = vmatmul.mubr.f32.gmra.mxu0 %v158
  %v455 = vpop.f32.mrf.mxu0
  %v456 = vadd.f32 %v94, %v455
  %v457 = vpop.f32.mrf.mxu0
  %458 = vmatprep.mubr.f32.mxu0 0.0
  %459 = vmatmul.mubr.f32.gmra.mxu0 %v161
  %v460 = vpop.f32.mrf.mxu0
  %v461 = vadd.f32 %v94, %v460
  %v462 = vpop.f32.mrf.mxu0
  %463 = vmatprep.mubr.f32.mxu0 0.0
  %464 = vmatmul.mubr.f32.gmra.mxu0 %v164
  %v465 = vpop.f32.mrf.mxu0
  %v466 = vadd.f32 %v94, %v465
  %v467 = vpop.f32.mrf.mxu0
  %468 = vmatprep.mubr.f32.mxu0 0.0
  %469 = vmatmul.mubr.f32.gmra.mxu0 %v167
  %v470 = vpop.f32.mrf.mxu0
  %v471 = vadd.f32 %v94, %v470
  %v472 = vpop.f32.mrf.mxu0
  %473 = vmatprep.mubr.f32.mxu0 0.0
  %474 = vmatmul.mubr.f32.gmra.mxu0 %v170
  %v475 = vpop.f32.mrf.mxu0
  %v476 = vadd.f32 %v94, %v475
  %v477 = vpop.f32.mrf.mxu0
  %478 = vmatprep.mubr.f32.mxu0 0.0
  %479 = vmatmul.mubr.f32.gmra.mxu0 %v173
  %v480 = vpop.f32.mrf.mxu0
  %v481 = vadd.f32 %v94, %v480
  %v482 = vpop.f32.mrf.mxu0
  %483 = vmatprep.mubr.f32.mxu0 0.0
  %484 = vmatmul.mubr.f32.gmra.mxu0 %v176
  %v485 = vpop.f32.mrf.mxu0
  %v486 = vadd.f32 %v94, %v485
  %v487 = vpop.f32.mrf.mxu0
  %488 = vmatprep.mubr.f32.mxu0 0.0
  %489 = vmatmul.mubr.f32.gmra.mxu0 %v179
  %v490 = vpop.f32.mrf.mxu0
  %v491 = vadd.f32 %v94, %v490
  %v492 = vpop.f32.mrf.mxu0
  %493 = vmatprep.mubr.f32.mxu0 0.0
  %494 = vmatmul.mubr.f32.gmra.mxu0 %v182
  %v495 = vpop.f32.mrf.mxu0
  %v496 = vadd.f32 %v94, %v495
  %v497 = vpop.f32.mrf.mxu0
  %498 = vmatprep.mubr.f32.mxu0 0.0
  %499 = vmatmul.mubr.f32.gmra.mxu0 %v185
  %v500 = vpop.f32.mrf.mxu0
  %v501 = vadd.f32 %v94, %v500
  %v502 = vpop.f32.mrf.mxu0
  %503 = vmatprep.mubr.f32.mxu0 0.0
  %504 = vmatmul.mubr.f32.gmra.mxu0 %v188
  %v505 = vpop.f32.mrf.mxu0
  %v506 = vadd.f32 %v94, %v505
  %v507 = vpop.f32.mrf.mxu0
  %508 = vmatprep.mubr.f32.mxu0 0.0
  %509 = vmatmul.mubr.f32.gmra.mxu0 %v191
  %v510 = vpop.f32.mrf.mxu0
  %v511 = vadd.f32 %v94, %v510
  %v512 = vpop.f32.mrf.mxu0
  %513 = vmatprep.mubr.f32.mxu0 0.0
  %514 = vmatmul.mubr.f32.gmra.mxu0 %v194
  %v515 = vpop.f32.mrf.mxu0
  %v516 = vadd.f32 %v94, %v515
  %v517 = vpop.f32.mrf.mxu0
  %518 = vmatprep.mubr.f32.mxu0 0.0
  %519 = vmatmul.mubr.f32.gmra.mxu0 %v197
  %v520 = vpop.f32.mrf.mxu0
  %v521 = vadd.f32 %v94, %v520
  %v522 = vpop.f32.mrf.mxu0
  %523 = vmatprep.mubr.f32.mxu0 0.0
  %524 = vmatmul.mubr.f32.gmra.mxu0 %v200
  %v525 = vpop.f32.mrf.mxu0
  %v526 = vadd.f32 %v94, %v525
  %v527 = vpop.f32.mrf.mxu0
  %528 = vmatprep.mubr.f32.mxu0 0.0
  %529 = vmatmul.mubr.f32.gmra.mxu0 %v203
  %v530 = vpop.f32.mrf.mxu0
  %v531 = vadd.f32 %v94, %v530
  %v532 = vpop.f32.mrf.mxu0
  %533 = vmatprep.mubr.f32.mxu0 0.0
  %534 = vmatmul.mubr.f32.gmra.mxu0 %v206
  %v535 = vpop.f32.mrf.mxu0
  %v536 = vadd.f32 %v94, %v535
  %v537 = vpop.f32.mrf.mxu0
  %538 = vmatprep.mubr.f32.mxu0 0.0
  %539 = vmatmul.mubr.f32.gmra.mxu0 %v209
  %v540 = vpop.f32.mrf.mxu0
  %v541 = vadd.f32 %v94, %v540
  %v542 = vpop.f32.mrf.mxu0
  %543 = vmatprep.mubr.f32.mxu0 0.0
  %544 = vmatmul.mubr.f32.gmra.mxu0 %v212
  %v545 = vpop.f32.mrf.mxu0
  %v546 = vadd.f32 %v94, %v545
  %v547 = vpop.f32.mrf.mxu0
  %548 = vmatprep.mubr.f32.mxu0 0.0
  %549 = vmatmul.mubr.f32.gmra.mxu0 %v215
  %v550 = vpop.f32.mrf.mxu0
  %v551 = vadd.f32 %v94, %v550
  %v552 = vpop.f32.mrf.mxu0
  %553 = vmatprep.mubr.f32.mxu0 0.0
  %554 = vmatmul.mubr.f32.gmra.mxu0 %v218
  %v555 = vpop.f32.mrf.mxu0
  %v556 = vadd.f32 %v94, %v555
  %v557 = vpop.f32.mrf.mxu0
  %558 = vmatprep.mubr.f32.mxu0 0.0
  %559 = vmatmul.mubr.f32.gmra.mxu0 %v221
  %v560 = vpop.f32.mrf.mxu0
  %v561 = vadd.f32 %v94, %v560
  %v562 = vpop.f32.mrf.mxu0
  %563 = vmatprep.mubr.f32.mxu0 0.0
  %564 = vmatmul.mubr.f32.gmra.mxu0 %v224
  %v565 = vpop.f32.mrf.mxu0
  %v566 = vadd.f32 %v94, %v565
  %v567 = vpop.f32.mrf.mxu0
  %568 = vmatprep.mubr.f32.mxu0 0.0
  %569 = vmatmul.mubr.f32.gmra.mxu0 %v227
  %v570 = vpop.f32.mrf.mxu0
  %v571 = vadd.f32 %v94, %v570
  %v572 = vpop.f32.mrf.mxu0
  %573 = vmatprep.mubr.f32.mxu0 0.0
  %574 = vmatmul.mubr.f32.gmra.mxu0 %v230
  %v575 = vpop.f32.mrf.mxu0
  %v576 = vadd.f32 %v94, %v575
  %v577 = vpop.f32.mrf.mxu0
  %578 = vmatprep.mubr.f32.mxu0 0.0
  %579 = vmatmul.mubr.f32.gmra.mxu0 %v233
  %v580 = vpop.f32.mrf.mxu0
  %v581 = vadd.f32 %v94, %v580
  %v582 = vpop.f32.mrf.mxu0
  %583 = vmatprep.mubr.f32.mxu0 0.0
  %584 = vmatmul.mubr.f32.gmra.mxu0 %v236
  %v585 = vpop.f32.mrf.mxu0
  %v586 = vadd.f32 %v94, %v585
  %v587 = vpop.f32.mrf.mxu0
  %588 = vmatprep.mubr.f32.mxu0 0.0
  %589 = vmatmul.mubr.f32.gmra.mxu0 %v239
  %v590 = vpop.f32.mrf.mxu0
  %v591 = vadd.f32 %v94, %v590
  %v592 = vpop.f32.mrf.mxu0
  %593 = vmatprep.mubr.f32.mxu0 0.0
  %594 = vmatmul.mubr.f32.gmra.mxu0 %v242
  %v595 = vpop.f32.mrf.mxu0
  %v596 = vadd.f32 %v94, %v595
  %v597 = vpop.f32.mrf.mxu0
  %598 = vmatprep.mubr.f32.mxu0 0.0
  %599 = vmatmul.mubr.f32.gmra.mxu0 %v245
  %v600 = vpop.f32.mrf.mxu0
  %v601 = vadd.f32 %v94, %v600
  %v602 = vpop.f32.mrf.mxu0
  %603 = vmatprep.mubr.f32.mxu0 0.0
  %604 = vmatmul.mubr.f32.gmra.mxu0 %v248
  %v605 = vpop.f32.mrf.mxu0
  %v606 = vadd.f32 %v94, %v605
  %v607 = vpop.f32.mrf.mxu0
  %608 = vmatprep.mubr.f32.mxu0 0.0
  %609 = vmatmul.mubr.f32.gmra.mxu0 %v251
  %v610 = vpop.f32.mrf.mxu0
  %v611 = vadd.f32 %v94, %v610
  %v612 = vpop.f32.mrf.mxu0
  %613 = vmatprep.mubr.f32.mxu0 0.0
  %614 = vmatmul.mubr.f32.gmra.mxu0 %v254
  %v615 = vpop.f32.mrf.mxu0
  %v616 = vadd.f32 %v94, %v615
  %v617 = vpop.f32.mrf.mxu0
  %618 = vmatprep.mubr.f32.mxu0 0.0
  %619 = vmatmul.mubr.f32.gmra.mxu0 %v257
  %v620 = vpop.f32.mrf.mxu0
  %v621 = vadd.f32 %v94, %v620
  %v622 = vpop.f32.mrf.mxu0
  %623 = vmatprep.mubr.f32.mxu0 0.0
  %624 = vmatmul.mubr.f32.gmra.mxu0 %v260
  %v625 = vpop.f32.mrf.mxu0
  %v626 = vadd.f32 %v94, %v625
  %v627 = vpop.f32.mrf.mxu0
  %628 = vmatprep.mubr.f32.mxu0 0.0
  %629 = vmatmul.mubr.f32.gmra.mxu0 %v263
  %v630 = vpop.f32.mrf.mxu0
  %v631 = vadd.f32 %v94, %v630
  %v632 = vpop.f32.mrf.mxu0
  %633 = vmatprep.mubr.f32.mxu0 0.0
  %634 = vmatmul.mubr.f32.gmra.mxu0 %v266
  %v635 = vpop.f32.mrf.mxu0
  %v636 = vadd.f32 %v94, %v635
  %v637 = vpop.f32.mrf.mxu0
  %638 = vmatprep.mubr.f32.mxu0 0.0
  %639 = vmatmul.mubr.f32.gmra.mxu0 %v269
  %v640 = vpop.f32.mrf.mxu0
  %v641 = vadd.f32 %v94, %v640
  %v642 = vpop.f32.mrf.mxu0
  %643 = vmatprep.mubr.f32.mxu0 0.0
  %644 = vmatmul.mubr.f32.gmra.mxu0 %v272
  %v645 = vpop.f32.mrf.mxu0
  %v646 = vadd.f32 %v94, %v645
  %v647 = vpop.f32.mrf.mxu0
  %648 = vmatprep.mubr.f32.mxu0 0.0
  %649 = vmatmul.mubr.f32.gmra.mxu0 %v275
  %v650 = vpop.f32.mrf.mxu0
  %v651 = vadd.f32 %v94, %v650
  %v652 = vpop.f32.mrf.mxu0
  %653 = vmatprep.mubr.f32.mxu0 0.0
  %654 = vmatmul.mubr.f32.gmra.mxu0 %v278
  %v655 = vpop.f32.mrf.mxu0
  %v656 = vadd.f32 %v94, %v655
  %v657 = vpop.f32.mrf.mxu0
  %658 = vmatprep.mubr.f32.mxu0 0.0
  %659 = vmatmul.mubr.f32.gmra.mxu0 %v281
  %v660 = vpop.f32.mrf.mxu0
  %v661 = vadd.f32 %v94, %v660
  %v662 = vpop.f32.mrf.mxu0
  %663 = vmatprep.mubr.f32.mxu0 0.0
  %664 = vmatmul.mubr.f32.gmra.mxu0 %v284
  %v665 = vpop.f32.mrf.mxu0
  %v666 = vadd.f32 %v94, %v665
  %v667 = vpop.f32.mrf.mxu0
  %668 = vmatprep.mubr.f32.mxu0 0.0
  %669 = vmatmul.mubr.f32.gmra.mxu0 %v287
  %v670 = vpop.f32.mrf.mxu0
  %v671 = vadd.f32 %v94, %v670
  %v672 = vpop.f32.mrf.mxu0
  %673 = vdwg.mxu0
  %v674 = vld [vmem:[%s3] sm:$0xff]
  %v675 = vld [vmem:[%s3 + $0x8] sm:$0xff]
  %v676 = vld [vmem:[%s3 + $0x10] sm:$0xff]
  %v677 = vld [vmem:[%s3 + $0x18] sm:$0xff]
  %v678 = vld [vmem:[%s3 + $0x20] sm:$0xff]
  %v679 = vld [vmem:[%s3 + $0x28] sm:$0xff]
  %v680 = vld [vmem:[%s3 + $0x30] sm:$0xff]
  %v681 = vld [vmem:[%s3 + $0x38] sm:$0xff]
  %v682 = vld [vmem:[%s3 + $0x40] sm:$0xff]
  %v683 = vld [vmem:[%s3 + $0x48] sm:$0xff]
  %v684 = vld [vmem:[%s3 + $0x50] sm:$0xff]
  %v685 = vld [vmem:[%s3 + $0x58] sm:$0xff]
  %v686 = vld [vmem:[%s3 + $0x60] sm:$0xff]
  %v687 = vld [vmem:[%s3 + $0x68] sm:$0xff]
  %v688 = vld [vmem:[%s3 + $0x70] sm:$0xff]
  %v689 = vld [vmem:[%s3 + $0x78] sm:$0xff]
  %v690 = vld [vmem:[%s3 + $0x80] sm:$0xff]
  %v691 = vld [vmem:[%s3 + $0x88] sm:$0xff]
  %v692 = vld [vmem:[%s3 + $0x90] sm:$0xff]
  %v693 = vld [vmem:[%s3 + $0x98] sm:$0xff]
  %v694 = vld [vmem:[%s3 + $0xa0] sm:$0xff]
  %v695 = vld [vmem:[%s3 + $0xa8] sm:$0xff]
  %v696 = vld [vmem:[%s3 + $0xb0] sm:$0xff]
  %v697 = vld [vmem:[%s3 + $0xb8] sm:$0xff]
  %v698 = vld [vmem:[%s3 + $0xc0] sm:$0xff]
  %v699 = vld [vmem:[%s3 + $0xc8] sm:$0xff]
  %v700 = vld [vmem:[%s3 + $0xd0] sm:$0xff]
  %v701 = vld [vmem:[%s3 + $0xd8] sm:$0xff]
  %v702 = vld [vmem:[%s3 + $0xe0] sm:$0xff]
  %v703 = vld [vmem:[%s3 + $0xe8] sm:$0xff]
  %v704 = vld [vmem:[%s3 + $0xf0] sm:$0xff]
  %v705 = vld [vmem:[%s3 + $0xf8] sm:$0xff]
  %v706 = vld [vmem:[%s3 + $0x100] sm:$0xff]
  %v707 = vld [vmem:[%s3 + $0x108] sm:$0xff]
  %v708 = vld [vmem:[%s3 + $0x110] sm:$0xff]
  %v709 = vld [vmem:[%s3 + $0x118] sm:$0xff]
  %v710 = vld [vmem:[%s3 + $0x120] sm:$0xff]
  %v711 = vld [vmem:[%s3 + $0x128] sm:$0xff]
  %v712 = vld [vmem:[%s3 + $0x130] sm:$0xff]
  %v713 = vld [vmem:[%s3 + $0x138] sm:$0xff]
  %v714 = vld [vmem:[%s3 + $0x140] sm:$0xff]
  %v715 = vld [vmem:[%s3 + $0x148] sm:$0xff]
  %v716 = vld [vmem:[%s3 + $0x150] sm:$0xff]
  %v717 = vld [vmem:[%s3 + $0x158] sm:$0xff]
  %v718 = vld [vmem:[%s3 + $0x160] sm:$0xff]
  %v719 = vld [vmem:[%s3 + $0x168] sm:$0xff]
  %v720 = vld [vmem:[%s3 + $0x170] sm:$0xff]
  %v721 = vld [vmem:[%s3 + $0x178] sm:$0xff]
  %v722 = vld [vmem:[%s3 + $0x180] sm:$0xff]
  %v723 = vld [vmem:[%s3 + $0x188] sm:$0xff]
  %v724 = vld [vmem:[%s3 + $0x190] sm:$0xff]
  %v725 = vld [vmem:[%s3 + $0x198] sm:$0xff]
  %v726 = vld [vmem:[%s3 + $0x1a0] sm:$0xff]
  %v727 = vld [vmem:[%s3 + $0x1a8] sm:$0xff]
  %v728 = vld [vmem:[%s3 + $0x1b0] sm:$0xff]
  %v729 = vld [vmem:[%s3 + $0x1b8] sm:$0xff]
  %v730 = vld [vmem:[%s3 + $0x1c0] sm:$0xff]
  %v731 = vld [vmem:[%s3 + $0x1c8] sm:$0xff]
  %v732 = vld [vmem:[%s3 + $0x1d0] sm:$0xff]
  %v733 = vld [vmem:[%s3 + $0x1d8] sm:$0xff]
  %v734 = vld [vmem:[%s3 + $0x1e0] sm:$0xff]
  %v735 = vld [vmem:[%s3 + $0x1e8] sm:$0xff]
  %v736 = vld [vmem:[%s3 + $0x1f0] sm:$0xff]
  %v737 = vld [vmem:[%s3 + $0x1f8] sm:$0xff]
  %v738 = vadd.f32 %v356, %v674
  %v739 = vadd.f32 %v361, %v675
  %v740 = vadd.f32 %v366, %v676
  %v741 = vadd.f32 %v371, %v677
  %v742 = vadd.f32 %v376, %v678
  %v743 = vadd.f32 %v381, %v679
  %v744 = vadd.f32 %v386, %v680
  %v745 = vadd.f32 %v391, %v681
  %v746 = vadd.f32 %v396, %v682
  %v747 = vadd.f32 %v401, %v683
  %v748 = vadd.f32 %v406, %v684
  %v749 = vadd.f32 %v411, %v685
  %v750 = vadd.f32 %v416, %v686
  %v751 = vadd.f32 %v421, %v687
  %v752 = vadd.f32 %v426, %v688
  %v753 = vadd.f32 %v431, %v689
  %v754 = vadd.f32 %v436, %v690
  %v755 = vadd.f32 %v441, %v691
  %v756 = vadd.f32 %v446, %v692
  %v757 = vadd.f32 %v451, %v693
  %v758 = vadd.f32 %v456, %v694
  %v759 = vadd.f32 %v461, %v695
  %v760 = vadd.f32 %v466, %v696
  %v761 = vadd.f32 %v471, %v697
  %v762 = vadd.f32 %v476, %v698
  %v763 = vadd.f32 %v481, %v699
  %v764 = vadd.f32 %v486, %v700
  %v765 = vadd.f32 %v491, %v701
  %v766 = vadd.f32 %v496, %v702
  %v767 = vadd.f32 %v501, %v703
  %v768 = vadd.f32 %v506, %v704
  %v769 = vadd.f32 %v511, %v705
  %v770 = vadd.f32 %v516, %v706
  %v771 = vadd.f32 %v521, %v707
  %v772 = vadd.f32 %v526, %v708
  %v773 = vadd.f32 %v531, %v709
  %v774 = vadd.f32 %v536, %v710
  %v775 = vadd.f32 %v541, %v711
  %v776 = vadd.f32 %v546, %v712
  %v777 = vadd.f32 %v551, %v713
  %v778 = vadd.f32 %v556, %v714
  %v779 = vadd.f32 %v561, %v715
  %v780 = vadd.f32 %v566, %v716
  %v781 = vadd.f32 %v571, %v717
  %v782 = vadd.f32 %v576, %v718
  %v783 = vadd.f32 %v581, %v719
  %v784 = vadd.f32 %v586, %v720
  %v785 = vadd.f32 %v591, %v721
  %v786 = vadd.f32 %v596, %v722
  %v787 = vadd.f32 %v601, %v723
  %v788 = vadd.f32 %v606, %v724
  %v789 = vadd.f32 %v611, %v725
  %v790 = vadd.f32 %v616, %v726
  %v791 = vadd.f32 %v621, %v727
  %v792 = vadd.f32 %v626, %v728
  %v793 = vadd.f32 %v631, %v729
  %v794 = vadd.f32 %v636, %v730
  %v795 = vadd.f32 %v641, %v731
  %v796 = vadd.f32 %v646, %v732
  %v797 = vadd.f32 %v651, %v733
  %v798 = vadd.f32 %v656, %v734
  %v799 = vadd.f32 %v661, %v735
  %v800 = vadd.f32 %v666, %v736
  %v801 = vadd.f32 %v671, %v737
  %v802 = vld [vmem:[%s4] sm:$0x1]
  %v804 = vlaneseq
  %v805 = vshrl.u32 %v804, 7
  %v806 = vsub.s32 0, %v805
  %v807 = vrot.slane %v802, %v806
  %v809 = vmul.f32 %v738, %v807
  %v810 = vmul.f32 %v739, %v807
  %v811 = vmul.f32 %v740, %v807
  %v812 = vmul.f32 %v741, %v807
  %v813 = vmul.f32 %v742, %v807
  %v814 = vmul.f32 %v743, %v807
  %v815 = vmul.f32 %v744, %v807
  %v816 = vmul.f32 %v745, %v807
  %v817 = vmul.f32 %v746, %v807
  %v818 = vmul.f32 %v747, %v807
  %v819 = vmul.f32 %v748, %v807
  %v820 = vmul.f32 %v749, %v807
  %v821 = vmul.f32 %v750, %v807
  %v822 = vmul.f32 %v751, %v807
  %v823 = vmul.f32 %v752, %v807
  %v824 = vmul.f32 %v753, %v807
  %v825 = vmul.f32 %v754, %v807
  %v826 = vmul.f32 %v755, %v807
  %v827 = vmul.f32 %v756, %v807
  %v828 = vmul.f32 %v757, %v807
  %v829 = vmul.f32 %v758, %v807
  %v830 = vmul.f32 %v759, %v807
  %v831 = vmul.f32 %v760, %v807
  %v832 = vmul.f32 %v761, %v807
  %v833 = vmul.f32 %v762, %v807
  %v834 = vmul.f32 %v763, %v807
  %v835 = vmul.f32 %v764, %v807
  %v836 = vmul.f32 %v765, %v807
  %v837 = vmul.f32 %v766, %v807
  %v838 = vmul.f32 %v767, %v807
  %v839 = vmul.f32 %v768, %v807
  %v840 = vmul.f32 %v769, %v807
  %v841 = vmul.f32 %v770, %v807
  %v842 = vmul.f32 %v771, %v807
  %v843 = vmul.f32 %v772, %v807
  %v844 = vmul.f32 %v773, %v807
  %v845 = vmul.f32 %v774, %v807
  %v846 = vmul.f32 %v775, %v807
  %v847 = vmul.f32 %v776, %v807
  %v848 = vmul.f32 %v777, %v807
  %v849 = vmul.f32 %v778, %v807
  %v850 = vmul.f32 %v779, %v807
  %v851 = vmul.f32 %v780, %v807
  %v852 = vmul.f32 %v781, %v807
  %v853 = vmul.f32 %v782, %v807
  %v854 = vmul.f32 %v783, %v807
  %v855 = vmul.f32 %v784, %v807
  %v856 = vmul.f32 %v785, %v807
  %v857 = vmul.f32 %v786, %v807
  %v858 = vmul.f32 %v787, %v807
  %v859 = vmul.f32 %v788, %v807
  %v860 = vmul.f32 %v789, %v807
  %v861 = vmul.f32 %v790, %v807
  %v862 = vmul.f32 %v791, %v807
  %v863 = vmul.f32 %v792, %v807
  %v864 = vmul.f32 %v793, %v807
  %v865 = vmul.f32 %v794, %v807
  %v866 = vmul.f32 %v795, %v807
  %v867 = vmul.f32 %v796, %v807
  %v868 = vmul.f32 %v797, %v807
  %v869 = vmul.f32 %v798, %v807
  %v870 = vmul.f32 %v799, %v807
  %v871 = vmul.f32 %v800, %v807
  %v872 = vmul.f32 %v801, %v807
  %v873 = vld [vmem:[%s5] sm:$0x1]
  %v875 = vlaneseq
  %v876 = vshrl.u32 %v875, 7
  %v877 = vsub.s32 0, %v876
  %v878 = vrot.slane %v873, %v877
  %v880 = vadd.f32 %v809, %v878
  %v881 = vadd.f32 %v810, %v878
  %v882 = vadd.f32 %v811, %v878
  %v883 = vadd.f32 %v812, %v878
  %v884 = vadd.f32 %v813, %v878
  %v885 = vadd.f32 %v814, %v878
  %v886 = vadd.f32 %v815, %v878
  %v887 = vadd.f32 %v816, %v878
  %v888 = vadd.f32 %v817, %v878
  %v889 = vadd.f32 %v818, %v878
  %v890 = vadd.f32 %v819, %v878
  %v891 = vadd.f32 %v820, %v878
  %v892 = vadd.f32 %v821, %v878
  %v893 = vadd.f32 %v822, %v878
  %v894 = vadd.f32 %v823, %v878
  %v895 = vadd.f32 %v824, %v878
  %v896 = vadd.f32 %v825, %v878
  %v897 = vadd.f32 %v826, %v878
  %v898 = vadd.f32 %v827, %v878
  %v899 = vadd.f32 %v828, %v878
  %v900 = vadd.f32 %v829, %v878
  %v901 = vadd.f32 %v830, %v878
  %v902 = vadd.f32 %v831, %v878
  %v903 = vadd.f32 %v832, %v878
  %v904 = vadd.f32 %v833, %v878
  %v905 = vadd.f32 %v834, %v878
  %v906 = vadd.f32 %v835, %v878
  %v907 = vadd.f32 %v836, %v878
  %v908 = vadd.f32 %v837, %v878
  %v909 = vadd.f32 %v838, %v878
  %v910 = vadd.f32 %v839, %v878
  %v911 = vadd.f32 %v840, %v878
  %v912 = vadd.f32 %v841, %v878
  %v913 = vadd.f32 %v842, %v878
  %v914 = vadd.f32 %v843, %v878
  %v915 = vadd.f32 %v844, %v878
  %v916 = vadd.f32 %v845, %v878
  %v917 = vadd.f32 %v846, %v878
  %v918 = vadd.f32 %v847, %v878
  %v919 = vadd.f32 %v848, %v878
  %v920 = vadd.f32 %v849, %v878
  %v921 = vadd.f32 %v850, %v878
  %v922 = vadd.f32 %v851, %v878
  %v923 = vadd.f32 %v852, %v878
  %v924 = vadd.f32 %v853, %v878
  %v925 = vadd.f32 %v854, %v878
  %v926 = vadd.f32 %v855, %v878
  %v927 = vadd.f32 %v856, %v878
  %v928 = vadd.f32 %v857, %v878
  %v929 = vadd.f32 %v858, %v878
  %v930 = vadd.f32 %v859, %v878
  %v931 = vadd.f32 %v860, %v878
  %v932 = vadd.f32 %v861, %v878
  %v933 = vadd.f32 %v862, %v878
  %v934 = vadd.f32 %v863, %v878
  %v935 = vadd.f32 %v864, %v878
  %v936 = vadd.f32 %v865, %v878
  %v937 = vadd.f32 %v866, %v878
  %v938 = vadd.f32 %v867, %v878
  %v939 = vadd.f32 %v868, %v878
  %v940 = vadd.f32 %v869, %v878
  %v941 = vadd.f32 %v870, %v878
  %v942 = vadd.f32 %v871, %v878
  %v943 = vadd.f32 %v872, %v878
  %v944 = vmax.f32 %v880, 0.0
  %v945 = vmax.f32 %v881, 0.0
  %v946 = vmax.f32 %v882, 0.0
  %v947 = vmax.f32 %v883, 0.0
  %v948 = vmax.f32 %v884, 0.0
  %v949 = vmax.f32 %v885, 0.0
  %v950 = vmax.f32 %v886, 0.0
  %v951 = vmax.f32 %v887, 0.0
  %v952 = vmax.f32 %v888, 0.0
  %v953 = vmax.f32 %v889, 0.0
  %v954 = vmax.f32 %v890, 0.0
  %v955 = vmax.f32 %v891, 0.0
  %v956 = vmax.f32 %v892, 0.0
  %v957 = vmax.f32 %v893, 0.0
  %v958 = vmax.f32 %v894, 0.0
  %v959 = vmax.f32 %v895, 0.0
  %v960 = vmax.f32 %v896, 0.0
  %v961 = vmax.f32 %v897, 0.0
  %v962 = vmax.f32 %v898, 0.0
  %v963 = vmax.f32 %v899, 0.0
  %v964 = vmax.f32 %v900, 0.0
  %v965 = vmax.f32 %v901, 0.0
  %v966 = vmax.f32 %v902, 0.0
  %v967 = vmax.f32 %v903, 0.0
  %v968 = vmax.f32 %v904, 0.0
  %v969 = vmax.f32 %v905, 0.0
  %v970 = vmax.f32 %v906, 0.0
  %v971 = vmax.f32 %v907, 0.0
  %v972 = vmax.f32 %v908, 0.0
  %v973 = vmax.f32 %v909, 0.0
  %v974 = vmax.f32 %v910, 0.0
  %v975 = vmax.f32 %v911, 0.0
  %v976 = vmax.f32 %v912, 0.0
  %v977 = vmax.f32 %v913, 0.0
  %v978 = vmax.f32 %v914, 0.0
  %v979 = vmax.f32 %v915, 0.0
  %v980 = vmax.f32 %v916, 0.0
  %v981 = vmax.f32 %v917, 0.0
  %v982 = vmax.f32 %v918, 0.0
  %v983 = vmax.f32 %v919, 0.0
  %v984 = vmax.f32 %v920, 0.0
  %v985 = vmax.f32 %v921, 0.0
  %v986 = vmax.f32 %v922, 0.0
  %v987 = vmax.f32 %v923, 0.0
  %v988 = vmax.f32 %v924, 0.0
  %v989 = vmax.f32 %v925, 0.0
  %v990 = vmax.f32 %v926, 0.0
  %v991 = vmax.f32 %v927, 0.0
  %v992 = vmax.f32 %v928, 0.0
  %v993 = vmax.f32 %v929, 0.0
  %v994 = vmax.f32 %v930, 0.0
  %v995 = vmax.f32 %v931, 0.0
  %v996 = vmax.f32 %v932, 0.0
  %v997 = vmax.f32 %v933, 0.0
  %v998 = vmax.f32 %v934, 0.0
  %v999 = vmax.f32 %v935, 0.0
  %v1000 = vmax.f32 %v936, 0.0
  %v1001 = vmax.f32 %v937, 0.0
  %v1002 = vmax.f32 %v938, 0.0
  %v1003 = vmax.f32 %v939, 0.0
  %v1004 = vmax.f32 %v940, 0.0
  %v1005 = vmax.f32 %v941, 0.0
  %v1006 = vmax.f32 %v942, 0.0
  %v1007 = vmax.f32 %v943, 0.0
  %1008 = vst.msk [vmem:[%s6] sm:$0xff] %vm96, %v944
  %1009 = vst.msk [vmem:[%s6 + $0x8] sm:$0xff] %vm96, %v945
  %1010 = vst.msk [vmem:[%s6 + $0x10] sm:$0xff] %vm96, %v946
  %1011 = vst.msk [vmem:[%s6 + $0x18] sm:$0xff] %vm96, %v947
  %1012 = vst.msk [vmem:[%s6 + $0x20] sm:$0xff] %vm96, %v948
  %1013 = vst.msk [vmem:[%s6 + $0x28] sm:$0xff] %vm96, %v949
  %1014 = vst.msk [vmem:[%s6 + $0x30] sm:$0xff] %vm96, %v950
  %1015 = vst.msk [vmem:[%s6 + $0x38] sm:$0xff] %vm96, %v951
  %1016 = vst.msk [vmem:[%s6 + $0x40] sm:$0xff] %vm96, %v952
  %1017 = vst.msk [vmem:[%s6 + $0x48] sm:$0xff] %vm96, %v953
  %1018 = vst.msk [vmem:[%s6 + $0x50] sm:$0xff] %vm96, %v954
  %1019 = vst.msk [vmem:[%s6 + $0x58] sm:$0xff] %vm96, %v955
  %1020 = vst.msk [vmem:[%s6 + $0x60] sm:$0xff] %vm96, %v956
  %1021 = vst.msk [vmem:[%s6 + $0x68] sm:$0xff] %vm96, %v957
  %1022 = vst.msk [vmem:[%s6 + $0x70] sm:$0xff] %vm96, %v958
  %1023 = vst.msk [vmem:[%s6 + $0x78] sm:$0xff] %vm96, %v959
  %1024 = vst.msk [vmem:[%s6 + $0x80] sm:$0xff] %vm96, %v960
  %1025 = vst.msk [vmem:[%s6 + $0x88] sm:$0xff] %vm96, %v961
  %1026 = vst.msk [vmem:[%s6 + $0x90] sm:$0xff] %vm96, %v962
  %1027 = vst.msk [vmem:[%s6 + $0x98] sm:$0xff] %vm96, %v963
  %1028 = vst.msk [vmem:[%s6 + $0xa0] sm:$0xff] %vm96, %v964
  %1029 = vst.msk [vmem:[%s6 + $0xa8] sm:$0xff] %vm96, %v965
  %1030 = vst.msk [vmem:[%s6 + $0xb0] sm:$0xff] %vm96, %v966
  %1031 = vst.msk [vmem:[%s6 + $0xb8] sm:$0xff] %vm96, %v967
  %1032 = vst.msk [vmem:[%s6 + $0xc0] sm:$0xff] %vm96, %v968
  %1033 = vst.msk [vmem:[%s6 + $0xc8] sm:$0xff] %vm96, %v969
  %1034 = vst.msk [vmem:[%s6 + $0xd0] sm:$0xff] %vm96, %v970
  %1035 = vst.msk [vmem:[%s6 + $0xd8] sm:$0xff] %vm96, %v971
  %1036 = vst.msk [vmem:[%s6 + $0xe0] sm:$0xff] %vm96, %v972
  %1037 = vst.msk [vmem:[%s6 + $0xe8] sm:$0xff] %vm96, %v973
  %1038 = vst.msk [vmem:[%s6 + $0xf0] sm:$0xff] %vm96, %v974
  %1039 = vst.msk [vmem:[%s6 + $0xf8] sm:$0xff] %vm96, %v975
  %1040 = vst.msk [vmem:[%s6 + $0x100] sm:$0xff] %vm96, %v976
  %1041 = vst.msk [vmem:[%s6 + $0x108] sm:$0xff] %vm96, %v977
  %1042 = vst.msk [vmem:[%s6 + $0x110] sm:$0xff] %vm96, %v978
  %1043 = vst.msk [vmem:[%s6 + $0x118] sm:$0xff] %vm96, %v979
  %1044 = vst.msk [vmem:[%s6 + $0x120] sm:$0xff] %vm96, %v980
  %1045 = vst.msk [vmem:[%s6 + $0x128] sm:$0xff] %vm96, %v981
  %1046 = vst.msk [vmem:[%s6 + $0x130] sm:$0xff] %vm96, %v982
  %1047 = vst.msk [vmem:[%s6 + $0x138] sm:$0xff] %vm96, %v983
  %1048 = vst.msk [vmem:[%s6 + $0x140] sm:$0xff] %vm96, %v984
  %1049 = vst.msk [vmem:[%s6 + $0x148] sm:$0xff] %vm96, %v985
  %1050 = vst.msk [vmem:[%s6 + $0x150] sm:$0xff] %vm96, %v986
  %1051 = vst.msk [vmem:[%s6 + $0x158] sm:$0xff] %vm96, %v987
  %1052 = vst.msk [vmem:[%s6 + $0x160] sm:$0xff] %vm96, %v988
  %1053 = vst.msk [vmem:[%s6 + $0x168] sm:$0xff] %vm96, %v989
  %1054 = vst.msk [vmem:[%s6 + $0x170] sm:$0xff] %vm96, %v990
  %1055 = vst.msk [vmem:[%s6 + $0x178] sm:$0xff] %vm96, %v991
  %1056 = vst.msk [vmem:[%s6 + $0x180] sm:$0xff] %vm96, %v992
  %1057 = vst.msk [vmem:[%s6 + $0x188] sm:$0xff] %vm96, %v993
  %1058 = vst.msk [vmem:[%s6 + $0x190] sm:$0xff] %vm96, %v994
  %1059 = vst.msk [vmem:[%s6 + $0x198] sm:$0xff] %vm96, %v995
  %1060 = vst.msk [vmem:[%s6 + $0x1a0] sm:$0xff] %vm96, %v996
  %1061 = vst.msk [vmem:[%s6 + $0x1a8] sm:$0xff] %vm96, %v997
  %1062 = vst.msk [vmem:[%s6 + $0x1b0] sm:$0xff] %vm96, %v998
  %1063 = vst.msk [vmem:[%s6 + $0x1b8] sm:$0xff] %vm96, %v999
  %1064 = vst.msk [vmem:[%s6 + $0x1c0] sm:$0xff] %vm96, %v1000
  %1065 = vst.msk [vmem:[%s6 + $0x1c8] sm:$0xff] %vm96, %v1001
  %1066 = vst.msk [vmem:[%s6 + $0x1d0] sm:$0xff] %vm96, %v1002
  %1067 = vst.msk [vmem:[%s6 + $0x1d8] sm:$0xff] %vm96, %v1003
  %1068 = vst.msk [vmem:[%s6 + $0x1e0] sm:$0xff] %vm96, %v1004
  %1069 = vst.msk [vmem:[%s6 + $0x1e8] sm:$0xff] %vm96, %v1005
  %1070 = vst.msk [vmem:[%s6 + $0x1f0] sm:$0xff] %vm96, %v1006
  %1071 = vst.msk [vmem:[%s6 + $0x1f8] sm:$0xff] %vm96, %v1007
  // Predicated region
  $region26: #{simple_block2d.11} parent=0 // pred_check
    _
  $region27: #{simple_block2d.11} parent=0 // pred_check_branch
    %1073 = sbr.rel (0) target = $region29
  $region28: #{simple_block2d.11} parent=0 // pred_region
    _
  $region29: #{simple_block2d.11} parent=0 // pred_fallthru
    _
  // Predicated region
  $region30: #{simple_block2d.11} parent=0 // pred_check
    _
  $region31: #{simple_block2d.11} parent=0 // pred_check_branch
    %1075 = sbr.rel (0) target = $region33
  $region32: #{simple_block2d.11} parent=0 // pred_region
    _
  $region33: #{simple_block2d.11} parent=0 // pred_fallthru
    _

// kernel: simple_block2d.17
$region0: #{simple_block2d.17}
  #allocation0 [shape = 'u32[]', space=smem, size = 0x4, offset = 0x4, fixed_abs, tag = 'smem constant byte address 0x4 - core index']
  #allocation1 [shape = 'u32[144,128]{1,0:T(1,128)}', space=vmem, size = 0x12000, scoped, tag = 'internal scratch']
  #allocation2 [shape = 'f32[1,1]{1,0:T(1,128)S(1)}', space=vmem, size = 0x200, scoped, tag = 'scoped memory for simple_block2d.17']
  %s0 = inlined_call_operand.vmem [shape: f32[512,16], index: 0, kind: input, shape index: {}]
  %s1 = inlined_call_operand.vmem [shape: f32[16,16], index: 1, kind: input, shape index: {}]
  %s2 = inlined_call_operand.vmem [shape: f32[1,16], index: 2, kind: input, shape index: {}]
  %s3 = inlined_call_operand.vmem [shape: f32[512,16], index: 3, kind: input, shape index: {}]
  %s4 = inlined_call_operand.vmem [shape: f32[1,16], index: 4, kind: input, shape index: {}]
  %s5 = inlined_call_operand.vmem [shape: f32[1,16], index: 5, kind: input, shape index: {}]
  %s6 = inlined_call_operand.vmem [shape: f32[16,128], index: 6, kind: input, shape index: {}]
  %s7 = inlined_call_operand.vmem [shape: f32[1,128], index: 7, kind: input, shape index: {}]
  %s8 = inlined_call_operand.vmem [shape: f32[1,128], index: 8, kind: input, shape index: {}]
  %s9 = inlined_call_operand.<no memory space> [shape: f32[1,1], index: 9, kind: input, shape index: {}]
  %s10 = inlined_call_operand.vmem [shape: f32[1,1,512], index: 10, kind: output, shape index: {}]
  %s11 = sld [smem:[#allocation0]]
  $region50: #{simple_block2d.17} parent=0
    _
  %s13 = ssub.s32 1, %s11
  %s14 = scalar_select 0, %s13, %s11
  %v15 = vstv %s9
  %16 = vst [vmem:[#allocation2] sm:$0x1] %v15
  // Predicated region
  $region2: #{simple_block2d.17} parent=0 // pred_check
    _
  $region3: #{simple_block2d.17} parent=0 // pred_check_branch
    %18 = sbr.rel (0) target = $region5
  $region4: #{simple_block2d.17} parent=0 // pred_region
    _
  $region5: #{simple_block2d.17} parent=0 // pred_fallthru
    _
  // Predicated region
  $region6: #{simple_block2d.17} parent=0 // pred_check
    _
  $region7: #{simple_block2d.17} parent=0 // pred_check_branch
    %20 = sbr.rel (0) target = $region9
  $region8: #{simple_block2d.17} parent=0 // pred_region
    _
  $region9: #{simple_block2d.17} parent=0 // pred_fallthru
    _
  // Predicated region
  $region10: #{simple_block2d.17} parent=0 // pred_check
    _
  $region11: #{simple_block2d.17} parent=0 // pred_check_branch
    %22 = sbr.rel (0) target = $region13
  $region12: #{simple_block2d.17} parent=0 // pred_region
    _
  $region13: #{simple_block2d.17} parent=0 // pred_fallthru
    _
  // Predicated region
  $region14: #{simple_block2d.17} parent=0 // pred_check
    _
  $region15: #{simple_block2d.17} parent=0 // pred_check_branch
    %24 = sbr.rel (0) target = $region17
  $region16: #{simple_block2d.17} parent=0 // pred_region
    _
  $region17: #{simple_block2d.17} parent=0 // pred_fallthru
    _
  // Predicated region
  $region18: #{simple_block2d.17} parent=0 // pred_check
    _
  $region19: #{simple_block2d.17} parent=0 // pred_check_branch
    %26 = sbr.rel (0) target = $region21
  $region20: #{simple_block2d.17} parent=0 // pred_region
    _
  $region21: #{simple_block2d.17} parent=0 // pred_fallthru
    _
  // Predicated region
  $region22: #{simple_block2d.17} parent=0 // pred_check
    _
  $region23: #{simple_block2d.17} parent=0 // pred_check_branch
    %28 = sbr.rel (0) target = $region25
  $region24: #{simple_block2d.17} parent=0 // pred_region
    _
  $region25: #{simple_block2d.17} parent=0 // pred_fallthru
    _
  // Predicated region
  $region26: #{simple_block2d.17} parent=0 // pred_check
    _
  $region27: #{simple_block2d.17} parent=0 // pred_check_branch
    %30 = sbr.rel (0) target = $region29
  $region28: #{simple_block2d.17} parent=0 // pred_region
    _
  $region29: #{simple_block2d.17} parent=0 // pred_fallthru
    _
  // Predicated region
  $region30: #{simple_block2d.17} parent=0 // pred_check
    _
  $region31: #{simple_block2d.17} parent=0 // pred_check_branch
    %32 = sbr.rel (0) target = $region33
  $region32: #{simple_block2d.17} parent=0 // pred_region
    _
  $region33: #{simple_block2d.17} parent=0 // pred_fallthru
    _
  // Predicated region
  $region34: #{simple_block2d.17} parent=0 // pred_check
    _
  $region35: #{simple_block2d.17} parent=0 // pred_check_branch
    %34 = sbr.rel (0) target = $region37
  $region36: #{simple_block2d.17} parent=0 // pred_region
    _
  $region37: #{simple_block2d.17} parent=0 // pred_fallthru
    _
  // Predicated region
  $region38: #{simple_block2d.17} parent=0 // pred_check
    _
  $region39: #{simple_block2d.17} parent=0 // pred_check_branch
    %36 = sbr.rel (0) target = $region41
  $region40: #{simple_block2d.17} parent=0 // pred_region
    _
  $region41: #{simple_block2d.17} parent=0 // pred_fallthru
    _
  %v37 = vld [vmem:[%s0] sm:$0xff]
  %v38 = vld [vmem:[%s0 + $0x8] sm:$0xff]
  %v39 = vld [vmem:[%s0 + $0x10] sm:$0xff]
  %v40 = vld [vmem:[%s0 + $0x18] sm:$0xff]
  %v41 = vld [vmem:[%s0 + $0x20] sm:$0xff]
  %v42 = vld [vmem:[%s0 + $0x28] sm:$0xff]
  %v43 = vld [vmem:[%s0 + $0x30] sm:$0xff]
  %v44 = vld [vmem:[%s0 + $0x38] sm:$0xff]
  %v45 = vld [vmem:[%s0 + $0x40] sm:$0xff]
  %v46 = vld [vmem:[%s0 + $0x48] sm:$0xff]
  %v47 = vld [vmem:[%s0 + $0x50] sm:$0xff]
  %v48 = vld [vmem:[%s0 + $0x58] sm:$0xff]
  %v49 = vld [vmem:[%s0 + $0x60] sm:$0xff]
  %v50 = vld [vmem:[%s0 + $0x68] sm:$0xff]
  %v51 = vld [vmem:[%s0 + $0x70] sm:$0xff]
  %v52 = vld [vmem:[%s0 + $0x78] sm:$0xff]
  %v53 = vld [vmem:[%s0 + $0x80] sm:$0xff]
  %v54 = vld [vmem:[%s0 + $0x88] sm:$0xff]
  %v55 = vld [vmem:[%s0 + $0x90] sm:$0xff]
  %v56 = vld [vmem:[%s0 + $0x98] sm:$0xff]
  %v57 = vld [vmem:[%s0 + $0xa0] sm:$0xff]
  %v58 = vld [vmem:[%s0 + $0xa8] sm:$0xff]
  %v59 = vld [vmem:[%s0 + $0xb0] sm:$0xff]
  %v60 = vld [vmem:[%s0 + $0xb8] sm:$0xff]
  %v61 = vld [vmem:[%s0 + $0xc0] sm:$0xff]
  %v62 = vld [vmem:[%s0 + $0xc8] sm:$0xff]
  %v63 = vld [vmem:[%s0 + $0xd0] sm:$0xff]
  %v64 = vld [vmem:[%s0 + $0xd8] sm:$0xff]
  %v65 = vld [vmem:[%s0 + $0xe0] sm:$0xff]
  %v66 = vld [vmem:[%s0 + $0xe8] sm:$0xff]
  %v67 = vld [vmem:[%s0 + $0xf0] sm:$0xff]
  %v68 = vld [vmem:[%s0 + $0xf8] sm:$0xff]
  %v69 = vld [vmem:[%s0 + $0x100] sm:$0xff]
  %v70 = vld [vmem:[%s0 + $0x108] sm:$0xff]
  %v71 = vld [vmem:[%s0 + $0x110] sm:$0xff]
  %v72 = vld [vmem:[%s0 + $0x118] sm:$0xff]
  %v73 = vld [vmem:[%s0 + $0x120] sm:$0xff]
  %v74 = vld [vmem:[%s0 + $0x128] sm:$0xff]
  %v75 = vld [vmem:[%s0 + $0x130] sm:$0xff]
  %v76 = vld [vmem:[%s0 + $0x138] sm:$0xff]
  %v77 = vld [vmem:[%s0 + $0x140] sm:$0xff]
  %v78 = vld [vmem:[%s0 + $0x148] sm:$0xff]
  %v79 = vld [vmem:[%s0 + $0x150] sm:$0xff]
  %v80 = vld [vmem:[%s0 + $0x158] sm:$0xff]
  %v81 = vld [vmem:[%s0 + $0x160] sm:$0xff]
  %v82 = vld [vmem:[%s0 + $0x168] sm:$0xff]
  %v83 = vld [vmem:[%s0 + $0x170] sm:$0xff]
  %v84 = vld [vmem:[%s0 + $0x178] sm:$0xff]
  %v85 = vld [vmem:[%s0 + $0x180] sm:$0xff]
  %v86 = vld [vmem:[%s0 + $0x188] sm:$0xff]
  %v87 = vld [vmem:[%s0 + $0x190] sm:$0xff]
  %v88 = vld [vmem:[%s0 + $0x198] sm:$0xff]
  %v89 = vld [vmem:[%s0 + $0x1a0] sm:$0xff]
  %v90 = vld [vmem:[%s0 + $0x1a8] sm:$0xff]
  %v91 = vld [vmem:[%s0 + $0x1b0] sm:$0xff]
  %v92 = vld [vmem:[%s0 + $0x1b8] sm:$0xff]
  %v93 = vld [vmem:[%s0 + $0x1c0] sm:$0xff]
  %v94 = vld [vmem:[%s0 + $0x1c8] sm:$0xff]
  %v95 = vld [vmem:[%s0 + $0x1d0] sm:$0xff]
  %v96 = vld [vmem:[%s0 + $0x1d8] sm:$0xff]
  %v97 = vld [vmem:[%s0 + $0x1e0] sm:$0xff]
  %v98 = vld [vmem:[%s0 + $0x1e8] sm:$0xff]
  %v99 = vld [vmem:[%s0 + $0x1f0] sm:$0xff]
  %v100 = vld [vmem:[%s0 + $0x1f8] sm:$0xff]
  %v101 = vld [vmem:[%s1] sm:$0xff]
  %v102 = vld [vmem:[%s1 + $0x8] sm:$0xff]
  %v103 = vld [vmem:[%s2] sm:$0x1]
  %v105 = vlaneseq
  %v106 = vshrl.u32 %v105, 7
  %v107 = vsub.s32 0, %v106
  %v108 = vrot.slane %v103, %v107
  %vm110 = vcmask 130048
  %v112 = vsel %vm110, %v37, 0
  %v115 = vsel %vm110, %v38, 0
  %v118 = vsel %vm110, %v39, 0
  %v121 = vsel %vm110, %v40, 0
  %v124 = vsel %vm110, %v41, 0
  %v127 = vsel %vm110, %v42, 0
  %v130 = vsel %vm110, %v43, 0
  %v133 = vsel %vm110, %v44, 0
  %v136 = vsel %vm110, %v45, 0
  %v139 = vsel %vm110, %v46, 0
  %v142 = vsel %vm110, %v47, 0
  %v145 = vsel %vm110, %v48, 0
  %v148 = vsel %vm110, %v49, 0
  %v151 = vsel %vm110, %v50, 0
  %v154 = vsel %vm110, %v51, 0
  %v157 = vsel %vm110, %v52, 0
  %v160 = vsel %vm110, %v53, 0
  %v163 = vsel %vm110, %v54, 0
  %v166 = vsel %vm110, %v55, 0
  %v169 = vsel %vm110, %v56, 0
  %v172 = vsel %vm110, %v57, 0
  %v175 = vsel %vm110, %v58, 0
  %v178 = vsel %vm110, %v59, 0
  %v181 = vsel %vm110, %v60, 0
  %v184 = vsel %vm110, %v61, 0
  %v187 = vsel %vm110, %v62, 0
  %v190 = vsel %vm110, %v63, 0
  %v193 = vsel %vm110, %v64, 0
  %v196 = vsel %vm110, %v65, 0
  %v199 = vsel %vm110, %v66, 0
  %v202 = vsel %vm110, %v67, 0
  %v205 = vsel %vm110, %v68, 0
  %v208 = vsel %vm110, %v69, 0
  %v211 = vsel %vm110, %v70, 0
  %v214 = vsel %vm110, %v71, 0
  %v217 = vsel %vm110, %v72, 0
  %v220 = vsel %vm110, %v73, 0
  %v223 = vsel %vm110, %v74, 0
  %v226 = vsel %vm110, %v75, 0
  %v229 = vsel %vm110, %v76, 0
  %v232 = vsel %vm110, %v77, 0
  %v235 = vsel %vm110, %v78, 0
  %v238 = vsel %vm110, %v79, 0
  %v241 = vsel %vm110, %v80, 0
  %v244 = vsel %vm110, %v81, 0
  %v247 = vsel %vm110, %v82, 0
  %v250 = vsel %vm110, %v83, 0
  %v253 = vsel %vm110, %v84, 0
  %v256 = vsel %vm110, %v85, 0
  %v259 = vsel %vm110, %v86, 0
  %v262 = vsel %vm110, %v87, 0
  %v265 = vsel %vm110, %v88, 0
  %v268 = vsel %vm110, %v89, 0
  %v271 = vsel %vm110, %v90, 0
  %v274 = vsel %vm110, %v91, 0
  %v277 = vsel %vm110, %v92, 0
  %v280 = vsel %vm110, %v93, 0
  %v283 = vsel %vm110, %v94, 0
  %v286 = vsel %vm110, %v95, 0
  %v289 = vsel %vm110, %v96, 0
  %v292 = vsel %vm110, %v97, 0
  %v295 = vsel %vm110, %v98, 0
  %v298 = vsel %vm110, %v99, 0
  %v301 = vsel %vm110, %v100, 0
  %303 = vmatprep.subr.mxu0 0.0
  %304 = vmatpush1.msra.mxu0 0.0
  %305 = vmatprep.subr.mxu0 0.0
  %306 = vmatpush1.msra.mxu0 0.0
  %307 = vmatprep.subr.mxu0 0.0
  %308 = vmatpush1.msra.mxu0 0.0
  %309 = vmatprep.subr.mxu0 0.0
  %310 = vmatpush1.msra.mxu0 0.0
  %311 = vmatprep.subr.mxu0 0.0
  %312 = vmatpush1.msra.mxu0 0.0
  %313 = vmatprep.subr.mxu0 0.0
  %314 = vmatpush1.msra.mxu0 0.0
  %315 = vmatprep.subr.mxu0 0.0
  %316 = vmatpush1.msra.mxu0 0.0
  %317 = vmatprep.subr.mxu0 0.0
  %318 = vmatpush1.msra.mxu0 0.0
  %319 = vmatprep.subr.mxu0 0.0
  %320 = vmatpush1.msra.mxu0 0.0
  %321 = vmatprep.subr.mxu0 0.0
  %322 = vmatpush1.msra.mxu0 0.0
  %323 = vmatprep.subr.mxu0 0.0
  %324 = vmatpush1.msra.mxu0 0.0
  %325 = vmatprep.subr.mxu0 0.0
  %326 = vmatpush1.msra.mxu0 0.0
  %327 = vmatprep.subr.mxu0 0.0
  %328 = vmatpush1.msra.mxu0 0.0
  %329 = vmatprep.subr.mxu0 0.0
  %330 = vmatpush1.msra.mxu0 0.0
  %331 = vmatprep.subr.mxu0 0.0
  %332 = vmatpush1.msra.mxu0 %v102
  %333 = vmatprep.subr.mxu0 0.0
  %334 = vmatpush1.msra.mxu0 %v101
  %335 = vmatprep.subr.mxu0 0.0
  %336 = vmatpush2.msra.mxu0 0.0
  %337 = vmatprep.subr.mxu0 0.0
  %338 = vmatpush2.msra.mxu0 0.0
  %339 = vmatprep.subr.mxu0 0.0
  %340 = vmatpush2.msra.mxu0 0.0
  %341 = vmatprep.subr.mxu0 0.0
  %342 = vmatpush2.msra.mxu0 0.0
  %343 = vmatprep.subr.mxu0 0.0
  %344 = vmatpush2.msra.mxu0 0.0
  %345 = vmatprep.subr.mxu0 0.0
  %346 = vmatpush2.msra.mxu0 0.0
  %347 = vmatprep.subr.mxu0 0.0
  %348 = vmatpush2.msra.mxu0 0.0
  %349 = vmatprep.subr.mxu0 0.0
  %350 = vmatpush2.msra.mxu0 0.0
  %351 = vmatprep.subr.mxu0 0.0
  %352 = vmatpush2.msra.mxu0 0.0
  %353 = vmatprep.subr.mxu0 0.0
  %354 = vmatpush2.msra.mxu0 0.0
  %355 = vmatprep.subr.mxu0 0.0
  %356 = vmatpush2.msra.mxu0 0.0
  %357 = vmatprep.subr.mxu0 0.0
  %358 = vmatpush2.msra.mxu0 0.0
  %359 = vmatprep.subr.mxu0 0.0
  %360 = vmatpush2.msra.mxu0 0.0
  %361 = vmatprep.subr.mxu0 0.0
  %362 = vmatpush2.msra.mxu0 0.0
  %363 = vmatprep.subr.mxu0 0.0
  %364 = vmatpush2.msra.mxu0 0.0
  %365 = vmatprep.subr.mxu0 0.0
  %366 = vmatpush2.msra.mxu0 0.0
  %367 = vmatprep.mubr.f32.mxu0 0.0
  %368 = vmatmul.mubr.f32.gmra.mxu0 %v112
  %v369 = vpop.f32.mrf.mxu0
  %v370 = vadd.f32 %v108, %v369
  %v371 = vpop.f32.mrf.mxu0
  %372 = vmatprep.mubr.f32.mxu0 0.0
  %373 = vmatmul.mubr.f32.gmra.mxu0 %v115
  %v374 = vpop.f32.mrf.mxu0
  %v375 = vadd.f32 %v108, %v374
  %v376 = vpop.f32.mrf.mxu0
  %377 = vmatprep.mubr.f32.mxu0 0.0
  %378 = vmatmul.mubr.f32.gmra.mxu0 %v118
  %v379 = vpop.f32.mrf.mxu0
  %v380 = vadd.f32 %v108, %v379
  %v381 = vpop.f32.mrf.mxu0
  %382 = vmatprep.mubr.f32.mxu0 0.0
  %383 = vmatmul.mubr.f32.gmra.mxu0 %v121
  %v384 = vpop.f32.mrf.mxu0
  %v385 = vadd.f32 %v108, %v384
  %v386 = vpop.f32.mrf.mxu0
  %387 = vmatprep.mubr.f32.mxu0 0.0
  %388 = vmatmul.mubr.f32.gmra.mxu0 %v124
  %v389 = vpop.f32.mrf.mxu0
  %v390 = vadd.f32 %v108, %v389
  %v391 = vpop.f32.mrf.mxu0
  %392 = vmatprep.mubr.f32.mxu0 0.0
  %393 = vmatmul.mubr.f32.gmra.mxu0 %v127
  %v394 = vpop.f32.mrf.mxu0
  %v395 = vadd.f32 %v108, %v394
  %v396 = vpop.f32.mrf.mxu0
  %397 = vmatprep.mubr.f32.mxu0 0.0
  %398 = vmatmul.mubr.f32.gmra.mxu0 %v130
  %v399 = vpop.f32.mrf.mxu0
  %v400 = vadd.f32 %v108, %v399
  %v401 = vpop.f32.mrf.mxu0
  %402 = vmatprep.mubr.f32.mxu0 0.0
  %403 = vmatmul.mubr.f32.gmra.mxu0 %v133
  %v404 = vpop.f32.mrf.mxu0
  %v405 = vadd.f32 %v108, %v404
  %v406 = vpop.f32.mrf.mxu0
  %407 = vmatprep.mubr.f32.mxu0 0.0
  %408 = vmatmul.mubr.f32.gmra.mxu0 %v136
  %v409 = vpop.f32.mrf.mxu0
  %v410 = vadd.f32 %v108, %v409
  %v411 = vpop.f32.mrf.mxu0
  %412 = vmatprep.mubr.f32.mxu0 0.0
  %413 = vmatmul.mubr.f32.gmra.mxu0 %v139
  %v414 = vpop.f32.mrf.mxu0
  %v415 = vadd.f32 %v108, %v414
  %v416 = vpop.f32.mrf.mxu0
  %417 = vmatprep.mubr.f32.mxu0 0.0
  %418 = vmatmul.mubr.f32.gmra.mxu0 %v142
  %v419 = vpop.f32.mrf.mxu0
  %v420 = vadd.f32 %v108, %v419
  %v421 = vpop.f32.mrf.mxu0
  %422 = vmatprep.mubr.f32.mxu0 0.0
  %423 = vmatmul.mubr.f32.gmra.mxu0 %v145
  %v424 = vpop.f32.mrf.mxu0
  %v425 = vadd.f32 %v108, %v424
  %v426 = vpop.f32.mrf.mxu0
  %427 = vmatprep.mubr.f32.mxu0 0.0
  %428 = vmatmul.mubr.f32.gmra.mxu0 %v148
  %v429 = vpop.f32.mrf.mxu0
  %v430 = vadd.f32 %v108, %v429
  %v431 = vpop.f32.mrf.mxu0
  %432 = vmatprep.mubr.f32.mxu0 0.0
  %433 = vmatmul.mubr.f32.gmra.mxu0 %v151
  %v434 = vpop.f32.mrf.mxu0
  %v435 = vadd.f32 %v108, %v434
  %v436 = vpop.f32.mrf.mxu0
  %437 = vmatprep.mubr.f32.mxu0 0.0
  %438 = vmatmul.mubr.f32.gmra.mxu0 %v154
  %v439 = vpop.f32.mrf.mxu0
  %v440 = vadd.f32 %v108, %v439
  %v441 = vpop.f32.mrf.mxu0
  %442 = vmatprep.mubr.f32.mxu0 0.0
  %443 = vmatmul.mubr.f32.gmra.mxu0 %v157
  %v444 = vpop.f32.mrf.mxu0
  %v445 = vadd.f32 %v108, %v444
  %v446 = vpop.f32.mrf.mxu0
  %447 = vmatprep.mubr.f32.mxu0 0.0
  %448 = vmatmul.mubr.f32.gmra.mxu0 %v160
  %v449 = vpop.f32.mrf.mxu0
  %v450 = vadd.f32 %v108, %v449
  %v451 = vpop.f32.mrf.mxu0
  %452 = vmatprep.mubr.f32.mxu0 0.0
  %453 = vmatmul.mubr.f32.gmra.mxu0 %v163
  %v454 = vpop.f32.mrf.mxu0
  %v455 = vadd.f32 %v108, %v454
  %v456 = vpop.f32.mrf.mxu0
  %457 = vmatprep.mubr.f32.mxu0 0.0
  %458 = vmatmul.mubr.f32.gmra.mxu0 %v166
  %v459 = vpop.f32.mrf.mxu0
  %v460 = vadd.f32 %v108, %v459
  %v461 = vpop.f32.mrf.mxu0
  %462 = vmatprep.mubr.f32.mxu0 0.0
  %463 = vmatmul.mubr.f32.gmra.mxu0 %v169
  %v464 = vpop.f32.mrf.mxu0
  %v465 = vadd.f32 %v108, %v464
  %v466 = vpop.f32.mrf.mxu0
  %467 = vmatprep.mubr.f32.mxu0 0.0
  %468 = vmatmul.mubr.f32.gmra.mxu0 %v172
  %v469 = vpop.f32.mrf.mxu0
  %v470 = vadd.f32 %v108, %v469
  %v471 = vpop.f32.mrf.mxu0
  %472 = vmatprep.mubr.f32.mxu0 0.0
  %473 = vmatmul.mubr.f32.gmra.mxu0 %v175
  %v474 = vpop.f32.mrf.mxu0
  %v475 = vadd.f32 %v108, %v474
  %v476 = vpop.f32.mrf.mxu0
  %477 = vmatprep.mubr.f32.mxu0 0.0
  %478 = vmatmul.mubr.f32.gmra.mxu0 %v178
  %v479 = vpop.f32.mrf.mxu0
  %v480 = vadd.f32 %v108, %v479
  %v481 = vpop.f32.mrf.mxu0
  %482 = vmatprep.mubr.f32.mxu0 0.0
  %483 = vmatmul.mubr.f32.gmra.mxu0 %v181
  %v484 = vpop.f32.mrf.mxu0
  %v485 = vadd.f32 %v108, %v484
  %v486 = vpop.f32.mrf.mxu0
  %487 = vmatprep.mubr.f32.mxu0 0.0
  %488 = vmatmul.mubr.f32.gmra.mxu0 %v184
  %v489 = vpop.f32.mrf.mxu0
  %v490 = vadd.f32 %v108, %v489
  %v491 = vpop.f32.mrf.mxu0
  %492 = vmatprep.mubr.f32.mxu0 0.0
  %493 = vmatmul.mubr.f32.gmra.mxu0 %v187
  %v494 = vpop.f32.mrf.mxu0
  %v495 = vadd.f32 %v108, %v494
  %v496 = vpop.f32.mrf.mxu0
  %497 = vmatprep.mubr.f32.mxu0 0.0
  %498 = vmatmul.mubr.f32.gmra.mxu0 %v190
  %v499 = vpop.f32.mrf.mxu0
  %v500 = vadd.f32 %v108, %v499
  %v501 = vpop.f32.mrf.mxu0
  %502 = vmatprep.mubr.f32.mxu0 0.0
  %503 = vmatmul.mubr.f32.gmra.mxu0 %v193
  %v504 = vpop.f32.mrf.mxu0
  %v505 = vadd.f32 %v108, %v504
  %v506 = vpop.f32.mrf.mxu0
  %507 = vmatprep.mubr.f32.mxu0 0.0
  %508 = vmatmul.mubr.f32.gmra.mxu0 %v196
  %v509 = vpop.f32.mrf.mxu0
  %v510 = vadd.f32 %v108, %v509
  %v511 = vpop.f32.mrf.mxu0
  %512 = vmatprep.mubr.f32.mxu0 0.0
  %513 = vmatmul.mubr.f32.gmra.mxu0 %v199
  %v514 = vpop.f32.mrf.mxu0
  %v515 = vadd.f32 %v108, %v514
  %v516 = vpop.f32.mrf.mxu0
  %517 = vmatprep.mubr.f32.mxu0 0.0
  %518 = vmatmul.mubr.f32.gmra.mxu0 %v202
  %v519 = vpop.f32.mrf.mxu0
  %v520 = vadd.f32 %v108, %v519
  %v521 = vpop.f32.mrf.mxu0
  %522 = vmatprep.mubr.f32.mxu0 0.0
  %523 = vmatmul.mubr.f32.gmra.mxu0 %v205
  %v524 = vpop.f32.mrf.mxu0
  %v525 = vadd.f32 %v108, %v524
  %v526 = vpop.f32.mrf.mxu0
  %527 = vmatprep.mubr.f32.mxu0 0.0
  %528 = vmatmul.mubr.f32.gmra.mxu0 %v208
  %v529 = vpop.f32.mrf.mxu0
  %v530 = vadd.f32 %v108, %v529
  %v531 = vpop.f32.mrf.mxu0
  %532 = vmatprep.mubr.f32.mxu0 0.0
  %533 = vmatmul.mubr.f32.gmra.mxu0 %v211
  %v534 = vpop.f32.mrf.mxu0
  %v535 = vadd.f32 %v108, %v534
  %v536 = vpop.f32.mrf.mxu0
  %537 = vmatprep.mubr.f32.mxu0 0.0
  %538 = vmatmul.mubr.f32.gmra.mxu0 %v214
  %v539 = vpop.f32.mrf.mxu0
  %v540 = vadd.f32 %v108, %v539
  %v541 = vpop.f32.mrf.mxu0
  %542 = vmatprep.mubr.f32.mxu0 0.0
  %543 = vmatmul.mubr.f32.gmra.mxu0 %v217
  %v544 = vpop.f32.mrf.mxu0
  %v545 = vadd.f32 %v108, %v544
  %v546 = vpop.f32.mrf.mxu0
  %547 = vmatprep.mubr.f32.mxu0 0.0
  %548 = vmatmul.mubr.f32.gmra.mxu0 %v220
  %v549 = vpop.f32.mrf.mxu0
  %v550 = vadd.f32 %v108, %v549
  %v551 = vpop.f32.mrf.mxu0
  %552 = vmatprep.mubr.f32.mxu0 0.0
  %553 = vmatmul.mubr.f32.gmra.mxu0 %v223
  %v554 = vpop.f32.mrf.mxu0
  %v555 = vadd.f32 %v108, %v554
  %v556 = vpop.f32.mrf.mxu0
  %557 = vmatprep.mubr.f32.mxu0 0.0
  %558 = vmatmul.mubr.f32.gmra.mxu0 %v226
  %v559 = vpop.f32.mrf.mxu0
  %v560 = vadd.f32 %v108, %v559
  %v561 = vpop.f32.mrf.mxu0
  %562 = vmatprep.mubr.f32.mxu0 0.0
  %563 = vmatmul.mubr.f32.gmra.mxu0 %v229
  %v564 = vpop.f32.mrf.mxu0
  %v565 = vadd.f32 %v108, %v564
  %v566 = vpop.f32.mrf.mxu0
  %567 = vmatprep.mubr.f32.mxu0 0.0
  %568 = vmatmul.mubr.f32.gmra.mxu0 %v232
  %v569 = vpop.f32.mrf.mxu0
  %v570 = vadd.f32 %v108, %v569
  %v571 = vpop.f32.mrf.mxu0
  %572 = vmatprep.mubr.f32.mxu0 0.0
  %573 = vmatmul.mubr.f32.gmra.mxu0 %v235
  %v574 = vpop.f32.mrf.mxu0
  %v575 = vadd.f32 %v108, %v574
  %v576 = vpop.f32.mrf.mxu0
  %577 = vmatprep.mubr.f32.mxu0 0.0
  %578 = vmatmul.mubr.f32.gmra.mxu0 %v238
  %v579 = vpop.f32.mrf.mxu0
  %v580 = vadd.f32 %v108, %v579
  %v581 = vpop.f32.mrf.mxu0
  %582 = vmatprep.mubr.f32.mxu0 0.0
  %583 = vmatmul.mubr.f32.gmra.mxu0 %v241
  %v584 = vpop.f32.mrf.mxu0
  %v585 = vadd.f32 %v108, %v584
  %v586 = vpop.f32.mrf.mxu0
  %587 = vmatprep.mubr.f32.mxu0 0.0
  %588 = vmatmul.mubr.f32.gmra.mxu0 %v244
  %v589 = vpop.f32.mrf.mxu0
  %v590 = vadd.f32 %v108, %v589
  %v591 = vpop.f32.mrf.mxu0
  %592 = vmatprep.mubr.f32.mxu0 0.0
  %593 = vmatmul.mubr.f32.gmra.mxu0 %v247
  %v594 = vpop.f32.mrf.mxu0
  %v595 = vadd.f32 %v108, %v594
  %v596 = vpop.f32.mrf.mxu0
  %597 = vmatprep.mubr.f32.mxu0 0.0
  %598 = vmatmul.mubr.f32.gmra.mxu0 %v250
  %v599 = vpop.f32.mrf.mxu0
  %v600 = vadd.f32 %v108, %v599
  %v601 = vpop.f32.mrf.mxu0
  %602 = vmatprep.mubr.f32.mxu0 0.0
  %603 = vmatmul.mubr.f32.gmra.mxu0 %v253
  %v604 = vpop.f32.mrf.mxu0
  %v605 = vadd.f32 %v108, %v604
  %v606 = vpop.f32.mrf.mxu0
  %607 = vmatprep.mubr.f32.mxu0 0.0
  %608 = vmatmul.mubr.f32.gmra.mxu0 %v256
  %v609 = vpop.f32.mrf.mxu0
  %v610 = vadd.f32 %v108, %v609
  %v611 = vpop.f32.mrf.mxu0
  %612 = vmatprep.mubr.f32.mxu0 0.0
  %613 = vmatmul.mubr.f32.gmra.mxu0 %v259
  %v614 = vpop.f32.mrf.mxu0
  %v615 = vadd.f32 %v108, %v614
  %v616 = vpop.f32.mrf.mxu0
  %617 = vmatprep.mubr.f32.mxu0 0.0
  %618 = vmatmul.mubr.f32.gmra.mxu0 %v262
  %v619 = vpop.f32.mrf.mxu0
  %v620 = vadd.f32 %v108, %v619
  %v621 = vpop.f32.mrf.mxu0
  %622 = vmatprep.mubr.f32.mxu0 0.0
  %623 = vmatmul.mubr.f32.gmra.mxu0 %v265
  %v624 = vpop.f32.mrf.mxu0
  %v625 = vadd.f32 %v108, %v624
  %v626 = vpop.f32.mrf.mxu0
  %627 = vmatprep.mubr.f32.mxu0 0.0
  %628 = vmatmul.mubr.f32.gmra.mxu0 %v268
  %v629 = vpop.f32.mrf.mxu0
  %v630 = vadd.f32 %v108, %v629
  %v631 = vpop.f32.mrf.mxu0
  %632 = vmatprep.mubr.f32.mxu0 0.0
  %633 = vmatmul.mubr.f32.gmra.mxu0 %v271
  %v634 = vpop.f32.mrf.mxu0
  %v635 = vadd.f32 %v108, %v634
  %v636 = vpop.f32.mrf.mxu0
  %637 = vmatprep.mubr.f32.mxu0 0.0
  %638 = vmatmul.mubr.f32.gmra.mxu0 %v274
  %v639 = vpop.f32.mrf.mxu0
  %v640 = vadd.f32 %v108, %v639
  %v641 = vpop.f32.mrf.mxu0
  %642 = vmatprep.mubr.f32.mxu0 0.0
  %643 = vmatmul.mubr.f32.gmra.mxu0 %v277
  %v644 = vpop.f32.mrf.mxu0
  %v645 = vadd.f32 %v108, %v644
  %v646 = vpop.f32.mrf.mxu0
  %647 = vmatprep.mubr.f32.mxu0 0.0
  %648 = vmatmul.mubr.f32.gmra.mxu0 %v280
  %v649 = vpop.f32.mrf.mxu0
  %v650 = vadd.f32 %v108, %v649
  %v651 = vpop.f32.mrf.mxu0
  %652 = vmatprep.mubr.f32.mxu0 0.0
  %653 = vmatmul.mubr.f32.gmra.mxu0 %v283
  %v654 = vpop.f32.mrf.mxu0
  %v655 = vadd.f32 %v108, %v654
  %v656 = vpop.f32.mrf.mxu0
  %657 = vmatprep.mubr.f32.mxu0 0.0
  %658 = vmatmul.mubr.f32.gmra.mxu0 %v286
  %v659 = vpop.f32.mrf.mxu0
  %v660 = vadd.f32 %v108, %v659
  %v661 = vpop.f32.mrf.mxu0
  %662 = vmatprep.mubr.f32.mxu0 0.0
  %663 = vmatmul.mubr.f32.gmra.mxu0 %v289
  %v664 = vpop.f32.mrf.mxu0
  %v665 = vadd.f32 %v108, %v664
  %v666 = vpop.f32.mrf.mxu0
  %667 = vmatprep.mubr.f32.mxu0 0.0
  %668 = vmatmul.mubr.f32.gmra.mxu0 %v292
  %v669 = vpop.f32.mrf.mxu0
  %v670 = vadd.f32 %v108, %v669
  %v671 = vpop.f32.mrf.mxu0
  %672 = vmatprep.mubr.f32.mxu0 0.0
  %673 = vmatmul.mubr.f32.gmra.mxu0 %v295
  %v674 = vpop.f32.mrf.mxu0
  %v675 = vadd.f32 %v108, %v674
  %v676 = vpop.f32.mrf.mxu0
  %677 = vmatprep.mubr.f32.mxu0 0.0
  %678 = vmatmul.mubr.f32.gmra.mxu0 %v298
  %v679 = vpop.f32.mrf.mxu0
  %v680 = vadd.f32 %v108, %v679
  %v681 = vpop.f32.mrf.mxu0
  %682 = vmatprep.mubr.f32.mxu0 0.0
  %683 = vmatmul.mubr.f32.gmra.mxu0 %v301
  %v684 = vpop.f32.mrf.mxu0
  %v685 = vadd.f32 %v108, %v684
  %v686 = vpop.f32.mrf.mxu0
  %687 = vdwg.mxu0
  %v688 = vld [vmem:[%s3] sm:$0xff]
  %v689 = vld [vmem:[%s3 + $0x8] sm:$0xff]
  %v690 = vld [vmem:[%s3 + $0x10] sm:$0xff]
  %v691 = vld [vmem:[%s3 + $0x18] sm:$0xff]
  %v692 = vld [vmem:[%s3 + $0x20] sm:$0xff]
  %v693 = vld [vmem:[%s3 + $0x28] sm:$0xff]
  %v694 = vld [vmem:[%s3 + $0x30] sm:$0xff]
  %v695 = vld [vmem:[%s3 + $0x38] sm:$0xff]
  %v696 = vld [vmem:[%s3 + $0x40] sm:$0xff]
  %v697 = vld [vmem:[%s3 + $0x48] sm:$0xff]
  %v698 = vld [vmem:[%s3 + $0x50] sm:$0xff]
  %v699 = vld [vmem:[%s3 + $0x58] sm:$0xff]
  %v700 = vld [vmem:[%s3 + $0x60] sm:$0xff]
  %v701 = vld [vmem:[%s3 + $0x68] sm:$0xff]
  %v702 = vld [vmem:[%s3 + $0x70] sm:$0xff]
  %v703 = vld [vmem:[%s3 + $0x78] sm:$0xff]
  %v704 = vld [vmem:[%s3 + $0x80] sm:$0xff]
  %v705 = vld [vmem:[%s3 + $0x88] sm:$0xff]
  %v706 = vld [vmem:[%s3 + $0x90] sm:$0xff]
  %v707 = vld [vmem:[%s3 + $0x98] sm:$0xff]
  %v708 = vld [vmem:[%s3 + $0xa0] sm:$0xff]
  %v709 = vld [vmem:[%s3 + $0xa8] sm:$0xff]
  %v710 = vld [vmem:[%s3 + $0xb0] sm:$0xff]
  %v711 = vld [vmem:[%s3 + $0xb8] sm:$0xff]
  %v712 = vld [vmem:[%s3 + $0xc0] sm:$0xff]
  %v713 = vld [vmem:[%s3 + $0xc8] sm:$0xff]
  %v714 = vld [vmem:[%s3 + $0xd0] sm:$0xff]
  %v715 = vld [vmem:[%s3 + $0xd8] sm:$0xff]
  %v716 = vld [vmem:[%s3 + $0xe0] sm:$0xff]
  %v717 = vld [vmem:[%s3 + $0xe8] sm:$0xff]
  %v718 = vld [vmem:[%s3 + $0xf0] sm:$0xff]
  %v719 = vld [vmem:[%s3 + $0xf8] sm:$0xff]
  %v720 = vld [vmem:[%s3 + $0x100] sm:$0xff]
  %v721 = vld [vmem:[%s3 + $0x108] sm:$0xff]
  %v722 = vld [vmem:[%s3 + $0x110] sm:$0xff]
  %v723 = vld [vmem:[%s3 + $0x118] sm:$0xff]
  %v724 = vld [vmem:[%s3 + $0x120] sm:$0xff]
  %v725 = vld [vmem:[%s3 + $0x128] sm:$0xff]
  %v726 = vld [vmem:[%s3 + $0x130] sm:$0xff]
  %v727 = vld [vmem:[%s3 + $0x138] sm:$0xff]
  %v728 = vld [vmem:[%s3 + $0x140] sm:$0xff]
  %v729 = vld [vmem:[%s3 + $0x148] sm:$0xff]
  %v730 = vld [vmem:[%s3 + $0x150] sm:$0xff]
  %v731 = vld [vmem:[%s3 + $0x158] sm:$0xff]
  %v732 = vld [vmem:[%s3 + $0x160] sm:$0xff]
  %v733 = vld [vmem:[%s3 + $0x168] sm:$0xff]
  %v734 = vld [vmem:[%s3 + $0x170] sm:$0xff]
  %v735 = vld [vmem:[%s3 + $0x178] sm:$0xff]
  %v736 = vld [vmem:[%s3 + $0x180] sm:$0xff]
  %v737 = vld [vmem:[%s3 + $0x188] sm:$0xff]
  %v738 = vld [vmem:[%s3 + $0x190] sm:$0xff]
  %v739 = vld [vmem:[%s3 + $0x198] sm:$0xff]
  %v740 = vld [vmem:[%s3 + $0x1a0] sm:$0xff]
  %v741 = vld [vmem:[%s3 + $0x1a8] sm:$0xff]
  %v742 = vld [vmem:[%s3 + $0x1b0] sm:$0xff]
  %v743 = vld [vmem:[%s3 + $0x1b8] sm:$0xff]
  %v744 = vld [vmem:[%s3 + $0x1c0] sm:$0xff]
  %v745 = vld [vmem:[%s3 + $0x1c8] sm:$0xff]
  %v746 = vld [vmem:[%s3 + $0x1d0] sm:$0xff]
  %v747 = vld [vmem:[%s3 + $0x1d8] sm:$0xff]
  %v748 = vld [vmem:[%s3 + $0x1e0] sm:$0xff]
  %v749 = vld [vmem:[%s3 + $0x1e8] sm:$0xff]
  %v750 = vld [vmem:[%s3 + $0x1f0] sm:$0xff]
  %v751 = vld [vmem:[%s3 + $0x1f8] sm:$0xff]
  %v752 = vadd.f32 %v370, %v688
  %v753 = vadd.f32 %v375, %v689
  %v754 = vadd.f32 %v380, %v690
  %v755 = vadd.f32 %v385, %v691
  %v756 = vadd.f32 %v390, %v692
  %v757 = vadd.f32 %v395, %v693
  %v758 = vadd.f32 %v400, %v694
  %v759 = vadd.f32 %v405, %v695
  %v760 = vadd.f32 %v410, %v696
  %v761 = vadd.f32 %v415, %v697
  %v762 = vadd.f32 %v420, %v698
  %v763 = vadd.f32 %v425, %v699
  %v764 = vadd.f32 %v430, %v700
  %v765 = vadd.f32 %v435, %v701
  %v766 = vadd.f32 %v440, %v702
  %v767 = vadd.f32 %v445, %v703
  %v768 = vadd.f32 %v450, %v704
  %v769 = vadd.f32 %v455, %v705
  %v770 = vadd.f32 %v460, %v706
  %v771 = vadd.f32 %v465, %v707
  %v772 = vadd.f32 %v470, %v708
  %v773 = vadd.f32 %v475, %v709
  %v774 = vadd.f32 %v480, %v710
  %v775 = vadd.f32 %v485, %v711
  %v776 = vadd.f32 %v490, %v712
  %v777 = vadd.f32 %v495, %v713
  %v778 = vadd.f32 %v500, %v714
  %v779 = vadd.f32 %v505, %v715
  %v780 = vadd.f32 %v510, %v716
  %v781 = vadd.f32 %v515, %v717
  %v782 = vadd.f32 %v520, %v718
  %v783 = vadd.f32 %v525, %v719
  %v784 = vadd.f32 %v530, %v720
  %v785 = vadd.f32 %v535, %v721
  %v786 = vadd.f32 %v540, %v722
  %v787 = vadd.f32 %v545, %v723
  %v788 = vadd.f32 %v550, %v724
  %v789 = vadd.f32 %v555, %v725
  %v790 = vadd.f32 %v560, %v726
  %v791 = vadd.f32 %v565, %v727
  %v792 = vadd.f32 %v570, %v728
  %v793 = vadd.f32 %v575, %v729
  %v794 = vadd.f32 %v580, %v730
  %v795 = vadd.f32 %v585, %v731
  %v796 = vadd.f32 %v590, %v732
  %v797 = vadd.f32 %v595, %v733
  %v798 = vadd.f32 %v600, %v734
  %v799 = vadd.f32 %v605, %v735
  %v800 = vadd.f32 %v610, %v736
  %v801 = vadd.f32 %v615, %v737
  %v802 = vadd.f32 %v620, %v738
  %v803 = vadd.f32 %v625, %v739
  %v804 = vadd.f32 %v630, %v740
  %v805 = vadd.f32 %v635, %v741
  %v806 = vadd.f32 %v640, %v742
  %v807 = vadd.f32 %v645, %v743
  %v808 = vadd.f32 %v650, %v744
  %v809 = vadd.f32 %v655, %v745
  %v810 = vadd.f32 %v660, %v746
  %v811 = vadd.f32 %v665, %v747
  %v812 = vadd.f32 %v670, %v748
  %v813 = vadd.f32 %v675, %v749
  %v814 = vadd.f32 %v680, %v750
  %v815 = vadd.f32 %v685, %v751
  %v816 = vld [vmem:[%s4] sm:$0x1]
  %v818 = vlaneseq
  %v819 = vshrl.u32 %v818, 7
  %v820 = vsub.s32 0, %v819
  %v821 = vrot.slane %v816, %v820
  %v823 = vmul.f32 %v752, %v821
  %v824 = vmul.f32 %v753, %v821
  %v825 = vmul.f32 %v754, %v821
  %v826 = vmul.f32 %v755, %v821
  %v827 = vmul.f32 %v756, %v821
  %v828 = vmul.f32 %v757, %v821
  %v829 = vmul.f32 %v758, %v821
  %v830 = vmul.f32 %v759, %v821
  %v831 = vmul.f32 %v760, %v821
  %v832 = vmul.f32 %v761, %v821
  %v833 = vmul.f32 %v762, %v821
  %v834 = vmul.f32 %v763, %v821
  %v835 = vmul.f32 %v764, %v821
  %v836 = vmul.f32 %v765, %v821
  %v837 = vmul.f32 %v766, %v821
  %v838 = vmul.f32 %v767, %v821
  %v839 = vmul.f32 %v768, %v821
  %v840 = vmul.f32 %v769, %v821
  %v841 = vmul.f32 %v770, %v821
  %v842 = vmul.f32 %v771, %v821
  %v843 = vmul.f32 %v772, %v821
  %v844 = vmul.f32 %v773, %v821
  %v845 = vmul.f32 %v774, %v821
  %v846 = vmul.f32 %v775, %v821
  %v847 = vmul.f32 %v776, %v821
  %v848 = vmul.f32 %v777, %v821
  %v849 = vmul.f32 %v778, %v821
  %v850 = vmul.f32 %v779, %v821
  %v851 = vmul.f32 %v780, %v821
  %v852 = vmul.f32 %v781, %v821
  %v853 = vmul.f32 %v782, %v821
  %v854 = vmul.f32 %v783, %v821
  %v855 = vmul.f32 %v784, %v821
  %v856 = vmul.f32 %v785, %v821
  %v857 = vmul.f32 %v786, %v821
  %v858 = vmul.f32 %v787, %v821
  %v859 = vmul.f32 %v788, %v821
  %v860 = vmul.f32 %v789, %v821
  %v861 = vmul.f32 %v790, %v821
  %v862 = vmul.f32 %v791, %v821
  %v863 = vmul.f32 %v792, %v821
  %v864 = vmul.f32 %v793, %v821
  %v865 = vmul.f32 %v794, %v821
  %v866 = vmul.f32 %v795, %v821
  %v867 = vmul.f32 %v796, %v821
  %v868 = vmul.f32 %v797, %v821
  %v869 = vmul.f32 %v798, %v821
  %v870 = vmul.f32 %v799, %v821
  %v871 = vmul.f32 %v800, %v821
  %v872 = vmul.f32 %v801, %v821
  %v873 = vmul.f32 %v802, %v821
  %v874 = vmul.f32 %v803, %v821
  %v875 = vmul.f32 %v804, %v821
  %v876 = vmul.f32 %v805, %v821
  %v877 = vmul.f32 %v806, %v821
  %v878 = vmul.f32 %v807, %v821
  %v879 = vmul.f32 %v808, %v821
  %v880 = vmul.f32 %v809, %v821
  %v881 = vmul.f32 %v810, %v821
  %v882 = vmul.f32 %v811, %v821
  %v883 = vmul.f32 %v812, %v821
  %v884 = vmul.f32 %v813, %v821
  %v885 = vmul.f32 %v814, %v821
  %v886 = vmul.f32 %v815, %v821
  %v887 = vld [vmem:[%s5] sm:$0x1]
  %v889 = vlaneseq
  %v890 = vshrl.u32 %v889, 7
  %v891 = vsub.s32 0, %v890
  %v892 = vrot.slane %v887, %v891
  %v894 = vadd.f32 %v823, %v892
  %v895 = vadd.f32 %v824, %v892
  %v896 = vadd.f32 %v825, %v892
  %v897 = vadd.f32 %v826, %v892
  %v898 = vadd.f32 %v827, %v892
  %v899 = vadd.f32 %v828, %v892
  %v900 = vadd.f32 %v829, %v892
  %v901 = vadd.f32 %v830, %v892
  %v902 = vadd.f32 %v831, %v892
  %v903 = vadd.f32 %v832, %v892
  %v904 = vadd.f32 %v833, %v892
  %v905 = vadd.f32 %v834, %v892
  %v906 = vadd.f32 %v835, %v892
  %v907 = vadd.f32 %v836, %v892
  %v908 = vadd.f32 %v837, %v892
  %v909 = vadd.f32 %v838, %v892
  %v910 = vadd.f32 %v839, %v892
  %v911 = vadd.f32 %v840, %v892
  %v912 = vadd.f32 %v841, %v892
  %v913 = vadd.f32 %v842, %v892
  %v914 = vadd.f32 %v843, %v892
  %v915 = vadd.f32 %v844, %v892
  %v916 = vadd.f32 %v845, %v892
  %v917 = vadd.f32 %v846, %v892
  %v918 = vadd.f32 %v847, %v892
  %v919 = vadd.f32 %v848, %v892
  %v920 = vadd.f32 %v849, %v892
  %v921 = vadd.f32 %v850, %v892
  %v922 = vadd.f32 %v851, %v892
  %v923 = vadd.f32 %v852, %v892
  %v924 = vadd.f32 %v853, %v892
  %v925 = vadd.f32 %v854, %v892
  %v926 = vadd.f32 %v855, %v892
  %v927 = vadd.f32 %v856, %v892
  %v928 = vadd.f32 %v857, %v892
  %v929 = vadd.f32 %v858, %v892
  %v930 = vadd.f32 %v859, %v892
  %v931 = vadd.f32 %v860, %v892
  %v932 = vadd.f32 %v861, %v892
  %v933 = vadd.f32 %v862, %v892
  %v934 = vadd.f32 %v863, %v892
  %v935 = vadd.f32 %v864, %v892
  %v936 = vadd.f32 %v865, %v892
  %v937 = vadd.f32 %v866, %v892
  %v938 = vadd.f32 %v867, %v892
  %v939 = vadd.f32 %v868, %v892
  %v940 = vadd.f32 %v869, %v892
  %v941 = vadd.f32 %v870, %v892
  %v942 = vadd.f32 %v871, %v892
  %v943 = vadd.f32 %v872, %v892
  %v944 = vadd.f32 %v873, %v892
  %v945 = vadd.f32 %v874, %v892
  %v946 = vadd.f32 %v875, %v892
  %v947 = vadd.f32 %v876, %v892
  %v948 = vadd.f32 %v877, %v892
  %v949 = vadd.f32 %v878, %v892
  %v950 = vadd.f32 %v879, %v892
  %v951 = vadd.f32 %v880, %v892
  %v952 = vadd.f32 %v881, %v892
  %v953 = vadd.f32 %v882, %v892
  %v954 = vadd.f32 %v883, %v892
  %v955 = vadd.f32 %v884, %v892
  %v956 = vadd.f32 %v885, %v892
  %v957 = vadd.f32 %v886, %v892
  %v958 = vld [vmem:[%s6] sm:$0xff]
  %v959 = vld [vmem:[%s6 + $0x8] sm:$0xff]
  %v960 = vld [vmem:[%s7] sm:$0x1]
  %v962 = vlaneseq
  %v963 = vshrl.u32 %v962, 7
  %v964 = vsub.s32 0, %v963
  %v965 = vrot.slane %v960, %v964
  %v968 = vsel %vm110, %v894, 0
  %v971 = vsel %vm110, %v895, 0
  %v974 = vsel %vm110, %v896, 0
  %v977 = vsel %vm110, %v897, 0
  %v980 = vsel %vm110, %v898, 0
  %v983 = vsel %vm110, %v899, 0
  %v986 = vsel %vm110, %v900, 0
  %v989 = vsel %vm110, %v901, 0
  %v992 = vsel %vm110, %v902, 0
  %v995 = vsel %vm110, %v903, 0
  %v998 = vsel %vm110, %v904, 0
  %v1001 = vsel %vm110, %v905, 0
  %v1004 = vsel %vm110, %v906, 0
  %v1007 = vsel %vm110, %v907, 0
  %v1010 = vsel %vm110, %v908, 0
  %v1013 = vsel %vm110, %v909, 0
  %v1016 = vsel %vm110, %v910, 0
  %v1019 = vsel %vm110, %v911, 0
  %v1022 = vsel %vm110, %v912, 0
  %v1025 = vsel %vm110, %v913, 0
  %v1028 = vsel %vm110, %v914, 0
  %v1031 = vsel %vm110, %v915, 0
  %v1034 = vsel %vm110, %v916, 0
  %v1037 = vsel %vm110, %v917, 0
  %v1040 = vsel %vm110, %v918, 0
  %v1043 = vsel %vm110, %v919, 0
  %v1046 = vsel %vm110, %v920, 0
  %v1049 = vsel %vm110, %v921, 0
  %v1052 = vsel %vm110, %v922, 0
  %v1055 = vsel %vm110, %v923, 0
  %v1058 = vsel %vm110, %v924, 0
  %v1061 = vsel %vm110, %v925, 0
  %v1064 = vsel %vm110, %v926, 0
  %v1067 = vsel %vm110, %v927, 0
  %v1070 = vsel %vm110, %v928, 0
  %v1073 = vsel %vm110, %v929, 0
  %v1076 = vsel %vm110, %v930, 0
  %v1079 = vsel %vm110, %v931, 0
  %v1082 = vsel %vm110, %v932, 0
  %v1085 = vsel %vm110, %v933, 0
  %v1088 = vsel %vm110, %v934, 0
  %v1091 = vsel %vm110, %v935, 0
  %v1094 = vsel %vm110, %v936, 0
  %v1097 = vsel %vm110, %v937, 0
  %v1100 = vsel %vm110, %v938, 0
  %v1103 = vsel %vm110, %v939, 0
  %v1106 = vsel %vm110, %v940, 0
  %v1109 = vsel %vm110, %v941, 0
  %v1112 = vsel %vm110, %v942, 0
  %v1115 = vsel %vm110, %v943, 0
  %v1118 = vsel %vm110, %v944, 0
  %v1121 = vsel %vm110, %v945, 0
  %v1124 = vsel %vm110, %v946, 0
  %v1127 = vsel %vm110, %v947, 0
  %v1130 = vsel %vm110, %v948, 0
  %v1133 = vsel %vm110, %v949, 0
  %v1136 = vsel %vm110, %v950, 0
  %v1139 = vsel %vm110, %v951, 0
  %v1142 = vsel %vm110, %v952, 0
  %v1145 = vsel %vm110, %v953, 0
  %v1148 = vsel %vm110, %v954, 0
  %v1151 = vsel %vm110, %v955, 0
  %v1154 = vsel %vm110, %v956, 0
  %v1157 = vsel %vm110, %v957, 0
  %1159 = vmatprep.subr.mxu0 0.0
  %1160 = vmatpush1.msra.mxu0 0.0
  %1161 = vmatprep.subr.mxu0 0.0
  %1162 = vmatpush1.msra.mxu0 0.0
  %1163 = vmatprep.subr.mxu0 0.0
  %1164 = vmatpush1.msra.mxu0 0.0
  %1165 = vmatprep.subr.mxu0 0.0
  %1166 = vmatpush1.msra.mxu0 0.0
  %1167 = vmatprep.subr.mxu0 0.0
  %1168 = vmatpush1.msra.mxu0 0.0
  %1169 = vmatprep.subr.mxu0 0.0
  %1170 = vmatpush1.msra.mxu0 0.0
  %1171 = vmatprep.subr.mxu0 0.0
  %1172 = vmatpush1.msra.mxu0 0.0
  %1173 = vmatprep.subr.mxu0 0.0
  %1174 = vmatpush1.msra.mxu0 0.0
  %1175 = vmatprep.subr.mxu0 0.0
  %1176 = vmatpush1.msra.mxu0 0.0
  %1177 = vmatprep.subr.mxu0 0.0
  %1178 = vmatpush1.msra.mxu0 0.0
  %1179 = vmatprep.subr.mxu0 0.0
  %1180 = vmatpush1.msra.mxu0 0.0
  %1181 = vmatprep.subr.mxu0 0.0
  %1182 = vmatpush1.msra.mxu0 0.0
  %1183 = vmatprep.subr.mxu0 0.0
  %1184 = vmatpush1.msra.mxu0 0.0
  %1185 = vmatprep.subr.mxu0 0.0
  %1186 = vmatpush1.msra.mxu0 0.0
  %1187 = vmatprep.subr.mxu0 0.0
  %1188 = vmatpush1.msra.mxu0 %v959
  %1189 = vmatprep.subr.mxu0 0.0
  %1190 = vmatpush1.msra.mxu0 %v958
  %1191 = vmatprep.subr.mxu0 0.0
  %1192 = vmatpush2.msra.mxu0 0.0
  %1193 = vmatprep.subr.mxu0 0.0
  %1194 = vmatpush2.msra.mxu0 0.0
  %1195 = vmatprep.subr.mxu0 0.0
  %1196 = vmatpush2.msra.mxu0 0.0
  %1197 = vmatprep.subr.mxu0 0.0
  %1198 = vmatpush2.msra.mxu0 0.0
  %1199 = vmatprep.subr.mxu0 0.0
  %1200 = vmatpush2.msra.mxu0 0.0
  %1201 = vmatprep.subr.mxu0 0.0
  %1202 = vmatpush2.msra.mxu0 0.0
  %1203 = vmatprep.subr.mxu0 0.0
  %1204 = vmatpush2.msra.mxu0 0.0
  %1205 = vmatprep.subr.mxu0 0.0
  %1206 = vmatpush2.msra.mxu0 0.0
  %1207 = vmatprep.subr.mxu0 0.0
  %1208 = vmatpush2.msra.mxu0 0.0
  %1209 = vmatprep.subr.mxu0 0.0
  %1210 = vmatpush2.msra.mxu0 0.0
  %1211 = vmatprep.subr.mxu0 0.0
  %1212 = vmatpush2.msra.mxu0 0.0
  %1213 = vmatprep.subr.mxu0 0.0
  %1214 = vmatpush2.msra.mxu0 0.0
  %1215 = vmatprep.subr.mxu0 0.0
  %1216 = vmatpush2.msra.mxu0 0.0
  %1217 = vmatprep.subr.mxu0 0.0
  %1218 = vmatpush2.msra.mxu0 0.0
  %1219 = vmatprep.subr.mxu0 0.0
  %1220 = vmatpush2.msra.mxu0 0.0
  %1221 = vmatprep.subr.mxu0 0.0
  %1222 = vmatpush2.msra.mxu0 0.0
  %1223 = vmatprep.mubr.f32.mxu0 0.0
  %1224 = vmatmul.mubr.f32.gmra.mxu0 %v968
  %v1225 = vpop.f32.mrf.mxu0
  %v1226 = vadd.f32 %v965, %v1225
  %v1227 = vpop.f32.mrf.mxu0
  %1228 = vmatprep.mubr.f32.mxu0 0.0
  %1229 = vmatmul.mubr.f32.gmra.mxu0 %v971
  %v1230 = vpop.f32.mrf.mxu0
  %v1231 = vadd.f32 %v965, %v1230
  %v1232 = vpop.f32.mrf.mxu0
  %1233 = vmatprep.mubr.f32.mxu0 0.0
  %1234 = vmatmul.mubr.f32.gmra.mxu0 %v974
  %v1235 = vpop.f32.mrf.mxu0
  %v1236 = vadd.f32 %v965, %v1235
  %v1237 = vpop.f32.mrf.mxu0
  %1238 = vmatprep.mubr.f32.mxu0 0.0
  %1239 = vmatmul.mubr.f32.gmra.mxu0 %v977
  %v1240 = vpop.f32.mrf.mxu0
  %v1241 = vadd.f32 %v965, %v1240
  %v1242 = vpop.f32.mrf.mxu0
  %1243 = vmatprep.mubr.f32.mxu0 0.0
  %1244 = vmatmul.mubr.f32.gmra.mxu0 %v980
  %v1245 = vpop.f32.mrf.mxu0
  %v1246 = vadd.f32 %v965, %v1245
  %v1247 = vpop.f32.mrf.mxu0
  %1248 = vmatprep.mubr.f32.mxu0 0.0
  %1249 = vmatmul.mubr.f32.gmra.mxu0 %v983
  %v1250 = vpop.f32.mrf.mxu0
  %v1251 = vadd.f32 %v965, %v1250
  %v1252 = vpop.f32.mrf.mxu0
  %1253 = vmatprep.mubr.f32.mxu0 0.0
  %1254 = vmatmul.mubr.f32.gmra.mxu0 %v986
  %v1255 = vpop.f32.mrf.mxu0
  %v1256 = vadd.f32 %v965, %v1255
  %v1257 = vpop.f32.mrf.mxu0
  %1258 = vmatprep.mubr.f32.mxu0 0.0
  %1259 = vmatmul.mubr.f32.gmra.mxu0 %v989
  %v1260 = vpop.f32.mrf.mxu0
  %v1261 = vadd.f32 %v965, %v1260
  %v1262 = vpop.f32.mrf.mxu0
  %1263 = vmatprep.mubr.f32.mxu0 0.0
  %1264 = vmatmul.mubr.f32.gmra.mxu0 %v992
  %v1265 = vpop.f32.mrf.mxu0
  %v1266 = vadd.f32 %v965, %v1265
  %v1267 = vpop.f32.mrf.mxu0
  %1268 = vmatprep.mubr.f32.mxu0 0.0
  %1269 = vmatmul.mubr.f32.gmra.mxu0 %v995
  %v1270 = vpop.f32.mrf.mxu0
  %v1271 = vadd.f32 %v965, %v1270
  %v1272 = vpop.f32.mrf.mxu0
  %1273 = vmatprep.mubr.f32.mxu0 0.0
  %1274 = vmatmul.mubr.f32.gmra.mxu0 %v998
  %v1275 = vpop.f32.mrf.mxu0
  %v1276 = vadd.f32 %v965, %v1275
  %v1277 = vpop.f32.mrf.mxu0
  %1278 = vmatprep.mubr.f32.mxu0 0.0
  %1279 = vmatmul.mubr.f32.gmra.mxu0 %v1001
  %v1280 = vpop.f32.mrf.mxu0
  %v1281 = vadd.f32 %v965, %v1280
  %v1282 = vpop.f32.mrf.mxu0
  %1283 = vmatprep.mubr.f32.mxu0 0.0
  %1284 = vmatmul.mubr.f32.gmra.mxu0 %v1004
  %v1285 = vpop.f32.mrf.mxu0
  %v1286 = vadd.f32 %v965, %v1285
  %v1287 = vpop.f32.mrf.mxu0
  %1288 = vmatprep.mubr.f32.mxu0 0.0
  %1289 = vmatmul.mubr.f32.gmra.mxu0 %v1007
  %v1290 = vpop.f32.mrf.mxu0
  %v1291 = vadd.f32 %v965, %v1290
  %v1292 = vpop.f32.mrf.mxu0
  %1293 = vmatprep.mubr.f32.mxu0 0.0
  %1294 = vmatmul.mubr.f32.gmra.mxu0 %v1010
  %v1295 = vpop.f32.mrf.mxu0
  %v1296 = vadd.f32 %v965, %v1295
  %v1297 = vpop.f32.mrf.mxu0
  %1298 = vmatprep.mubr.f32.mxu0 0.0
  %1299 = vmatmul.mubr.f32.gmra.mxu0 %v1013
  %v1300 = vpop.f32.mrf.mxu0
  %v1301 = vadd.f32 %v965, %v1300
  %v1302 = vpop.f32.mrf.mxu0
  %1303 = vmatprep.mubr.f32.mxu0 0.0
  %1304 = vmatmul.mubr.f32.gmra.mxu0 %v1016
  %v1305 = vpop.f32.mrf.mxu0
  %v1306 = vadd.f32 %v965, %v1305
  %v1307 = vpop.f32.mrf.mxu0
  %1308 = vmatprep.mubr.f32.mxu0 0.0
  %1309 = vmatmul.mubr.f32.gmra.mxu0 %v1019
  %v1310 = vpop.f32.mrf.mxu0
  %v1311 = vadd.f32 %v965, %v1310
  %v1312 = vpop.f32.mrf.mxu0
  %1313 = vmatprep.mubr.f32.mxu0 0.0
  %1314 = vmatmul.mubr.f32.gmra.mxu0 %v1022
  %v1315 = vpop.f32.mrf.mxu0
  %v1316 = vadd.f32 %v965, %v1315
  %v1317 = vpop.f32.mrf.mxu0
  %1318 = vmatprep.mubr.f32.mxu0 0.0
  %1319 = vmatmul.mubr.f32.gmra.mxu0 %v1025
  %v1320 = vpop.f32.mrf.mxu0
  %v1321 = vadd.f32 %v965, %v1320
  %v1322 = vpop.f32.mrf.mxu0
  %1323 = vmatprep.mubr.f32.mxu0 0.0
  %1324 = vmatmul.mubr.f32.gmra.mxu0 %v1028
  %v1325 = vpop.f32.mrf.mxu0
  %v1326 = vadd.f32 %v965, %v1325
  %v1327 = vpop.f32.mrf.mxu0
  %1328 = vmatprep.mubr.f32.mxu0 0.0
  %1329 = vmatmul.mubr.f32.gmra.mxu0 %v1031
  %v1330 = vpop.f32.mrf.mxu0
  %v1331 = vadd.f32 %v965, %v1330
  %v1332 = vpop.f32.mrf.mxu0
  %1333 = vmatprep.mubr.f32.mxu0 0.0
  %1334 = vmatmul.mubr.f32.gmra.mxu0 %v1034
  %v1335 = vpop.f32.mrf.mxu0
  %v1336 = vadd.f32 %v965, %v1335
  %v1337 = vpop.f32.mrf.mxu0
  %1338 = vmatprep.mubr.f32.mxu0 0.0
  %1339 = vmatmul.mubr.f32.gmra.mxu0 %v1037
  %v1340 = vpop.f32.mrf.mxu0
  %v1341 = vadd.f32 %v965, %v1340
  %v1342 = vpop.f32.mrf.mxu0
  %1343 = vmatprep.mubr.f32.mxu0 0.0
  %1344 = vmatmul.mubr.f32.gmra.mxu0 %v1040
  %v1345 = vpop.f32.mrf.mxu0
  %v1346 = vadd.f32 %v965, %v1345
  %v1347 = vpop.f32.mrf.mxu0
  %1348 = vmatprep.mubr.f32.mxu0 0.0
  %1349 = vmatmul.mubr.f32.gmra.mxu0 %v1043
  %v1350 = vpop.f32.mrf.mxu0
  %v1351 = vadd.f32 %v965, %v1350
  %v1352 = vpop.f32.mrf.mxu0
  %1353 = vmatprep.mubr.f32.mxu0 0.0
  %1354 = vmatmul.mubr.f32.gmra.mxu0 %v1046
  %v1355 = vpop.f32.mrf.mxu0
  %v1356 = vadd.f32 %v965, %v1355
  %v1357 = vpop.f32.mrf.mxu0
  %1358 = vmatprep.mubr.f32.mxu0 0.0
  %1359 = vmatmul.mubr.f32.gmra.mxu0 %v1049
  %v1360 = vpop.f32.mrf.mxu0
  %v1361 = vadd.f32 %v965, %v1360
  %v1362 = vpop.f32.mrf.mxu0
  %1363 = vmatprep.mubr.f32.mxu0 0.0
  %1364 = vmatmul.mubr.f32.gmra.mxu0 %v1052
  %v1365 = vpop.f32.mrf.mxu0
  %v1366 = vadd.f32 %v965, %v1365
  %v1367 = vpop.f32.mrf.mxu0
  %1368 = vmatprep.mubr.f32.mxu0 0.0
  %1369 = vmatmul.mubr.f32.gmra.mxu0 %v1055
  %v1370 = vpop.f32.mrf.mxu0
  %v1371 = vadd.f32 %v965, %v1370
  %v1372 = vpop.f32.mrf.mxu0
  %1373 = vmatprep.mubr.f32.mxu0 0.0
  %1374 = vmatmul.mubr.f32.gmra.mxu0 %v1058
  %v1375 = vpop.f32.mrf.mxu0
  %v1376 = vadd.f32 %v965, %v1375
  %v1377 = vpop.f32.mrf.mxu0
  %1378 = vmatprep.mubr.f32.mxu0 0.0
  %1379 = vmatmul.mubr.f32.gmra.mxu0 %v1061
  %v1380 = vpop.f32.mrf.mxu0
  %v1381 = vadd.f32 %v965, %v1380
  %v1382 = vpop.f32.mrf.mxu0
  %1383 = vmatprep.mubr.f32.mxu0 0.0
  %1384 = vmatmul.mubr.f32.gmra.mxu0 %v1064
  %v1385 = vpop.f32.mrf.mxu0
  %v1386 = vadd.f32 %v965, %v1385
  %v1387 = vpop.f32.mrf.mxu0
  %1388 = vmatprep.mubr.f32.mxu0 0.0
  %1389 = vmatmul.mubr.f32.gmra.mxu0 %v1067
  %v1390 = vpop.f32.mrf.mxu0
  %v1391 = vadd.f32 %v965, %v1390
  %v1392 = vpop.f32.mrf.mxu0
  %1393 = vmatprep.mubr.f32.mxu0 0.0
  %1394 = vmatmul.mubr.f32.gmra.mxu0 %v1070
  %v1395 = vpop.f32.mrf.mxu0
  %v1396 = vadd.f32 %v965, %v1395
  %v1397 = vpop.f32.mrf.mxu0
  %1398 = vmatprep.mubr.f32.mxu0 0.0
  %1399 = vmatmul.mubr.f32.gmra.mxu0 %v1073
  %v1400 = vpop.f32.mrf.mxu0
  %v1401 = vadd.f32 %v965, %v1400
  %v1402 = vpop.f32.mrf.mxu0
  %1403 = vmatprep.mubr.f32.mxu0 0.0
  %1404 = vmatmul.mubr.f32.gmra.mxu0 %v1076
  %v1405 = vpop.f32.mrf.mxu0
  %v1406 = vadd.f32 %v965, %v1405
  %v1407 = vpop.f32.mrf.mxu0
  %1408 = vmatprep.mubr.f32.mxu0 0.0
  %1409 = vmatmul.mubr.f32.gmra.mxu0 %v1079
  %v1410 = vpop.f32.mrf.mxu0
  %v1411 = vadd.f32 %v965, %v1410
  %v1412 = vpop.f32.mrf.mxu0
  %1413 = vmatprep.mubr.f32.mxu0 0.0
  %1414 = vmatmul.mubr.f32.gmra.mxu0 %v1082
  %v1415 = vpop.f32.mrf.mxu0
  %v1416 = vadd.f32 %v965, %v1415
  %v1417 = vpop.f32.mrf.mxu0
  %1418 = vmatprep.mubr.f32.mxu0 0.0
  %1419 = vmatmul.mubr.f32.gmra.mxu0 %v1085
  %v1420 = vpop.f32.mrf.mxu0
  %v1421 = vadd.f32 %v965, %v1420
  %v1422 = vpop.f32.mrf.mxu0
  %1423 = vmatprep.mubr.f32.mxu0 0.0
  %1424 = vmatmul.mubr.f32.gmra.mxu0 %v1088
  %v1425 = vpop.f32.mrf.mxu0
  %v1426 = vadd.f32 %v965, %v1425
  %v1427 = vpop.f32.mrf.mxu0
  %1428 = vmatprep.mubr.f32.mxu0 0.0
  %1429 = vmatmul.mubr.f32.gmra.mxu0 %v1091
  %v1430 = vpop.f32.mrf.mxu0
  %v1431 = vadd.f32 %v965, %v1430
  %v1432 = vpop.f32.mrf.mxu0
  %1433 = vmatprep.mubr.f32.mxu0 0.0
  %1434 = vmatmul.mubr.f32.gmra.mxu0 %v1094
  %v1435 = vpop.f32.mrf.mxu0
  %v1436 = vadd.f32 %v965, %v1435
  %v1437 = vpop.f32.mrf.mxu0
  %1438 = vmatprep.mubr.f32.mxu0 0.0
  %1439 = vmatmul.mubr.f32.gmra.mxu0 %v1097
  %v1440 = vpop.f32.mrf.mxu0
  %v1441 = vadd.f32 %v965, %v1440
  %v1442 = vpop.f32.mrf.mxu0
  %1443 = vmatprep.mubr.f32.mxu0 0.0
  %1444 = vmatmul.mubr.f32.gmra.mxu0 %v1100
  %v1445 = vpop.f32.mrf.mxu0
  %v1446 = vadd.f32 %v965, %v1445
  %v1447 = vpop.f32.mrf.mxu0
  %1448 = vmatprep.mubr.f32.mxu0 0.0
  %1449 = vmatmul.mubr.f32.gmra.mxu0 %v1103
  %v1450 = vpop.f32.mrf.mxu0
  %v1451 = vadd.f32 %v965, %v1450
  %v1452 = vpop.f32.mrf.mxu0
  %1453 = vmatprep.mubr.f32.mxu0 0.0
  %1454 = vmatmul.mubr.f32.gmra.mxu0 %v1106
  %v1455 = vpop.f32.mrf.mxu0
  %v1456 = vadd.f32 %v965, %v1455
  %v1457 = vpop.f32.mrf.mxu0
  %1458 = vmatprep.mubr.f32.mxu0 0.0
  %1459 = vmatmul.mubr.f32.gmra.mxu0 %v1109
  %v1460 = vpop.f32.mrf.mxu0
  %v1461 = vadd.f32 %v965, %v1460
  %v1462 = vpop.f32.mrf.mxu0
  %1463 = vmatprep.mubr.f32.mxu0 0.0
  %1464 = vmatmul.mubr.f32.gmra.mxu0 %v1112
  %v1465 = vpop.f32.mrf.mxu0
  %v1466 = vadd.f32 %v965, %v1465
  %v1467 = vpop.f32.mrf.mxu0
  %1468 = vmatprep.mubr.f32.mxu0 0.0
  %1469 = vmatmul.mubr.f32.gmra.mxu0 %v1115
  %v1470 = vpop.f32.mrf.mxu0
  %v1471 = vadd.f32 %v965, %v1470
  %v1472 = vpop.f32.mrf.mxu0
  %1473 = vmatprep.mubr.f32.mxu0 0.0
  %1474 = vmatmul.mubr.f32.gmra.mxu0 %v1118
  %v1475 = vpop.f32.mrf.mxu0
  %v1476 = vadd.f32 %v965, %v1475
  %v1477 = vpop.f32.mrf.mxu0
  %1478 = vmatprep.mubr.f32.mxu0 0.0
  %1479 = vmatmul.mubr.f32.gmra.mxu0 %v1121
  %v1480 = vpop.f32.mrf.mxu0
  %v1481 = vadd.f32 %v965, %v1480
  %v1482 = vpop.f32.mrf.mxu0
  %1483 = vmatprep.mubr.f32.mxu0 0.0
  %1484 = vmatmul.mubr.f32.gmra.mxu0 %v1124
  %v1485 = vpop.f32.mrf.mxu0
  %v1486 = vadd.f32 %v965, %v1485
  %v1487 = vpop.f32.mrf.mxu0
  %1488 = vmatprep.mubr.f32.mxu0 0.0
  %1489 = vmatmul.mubr.f32.gmra.mxu0 %v1127
  %v1490 = vpop.f32.mrf.mxu0
  %v1491 = vadd.f32 %v965, %v1490
  %v1492 = vpop.f32.mrf.mxu0
  %1493 = vmatprep.mubr.f32.mxu0 0.0
  %1494 = vmatmul.mubr.f32.gmra.mxu0 %v1130
  %v1495 = vpop.f32.mrf.mxu0
  %v1496 = vadd.f32 %v965, %v1495
  %v1497 = vpop.f32.mrf.mxu0
  %1498 = vmatprep.mubr.f32.mxu0 0.0
  %1499 = vmatmul.mubr.f32.gmra.mxu0 %v1133
  %v1500 = vpop.f32.mrf.mxu0
  %v1501 = vadd.f32 %v965, %v1500
  %v1502 = vpop.f32.mrf.mxu0
  %1503 = vmatprep.mubr.f32.mxu0 0.0
  %1504 = vmatmul.mubr.f32.gmra.mxu0 %v1136
  %v1505 = vpop.f32.mrf.mxu0
  %v1506 = vadd.f32 %v965, %v1505
  %v1507 = vpop.f32.mrf.mxu0
  %1508 = vmatprep.mubr.f32.mxu0 0.0
  %1509 = vmatmul.mubr.f32.gmra.mxu0 %v1139
  %v1510 = vpop.f32.mrf.mxu0
  %v1511 = vadd.f32 %v965, %v1510
  %v1512 = vpop.f32.mrf.mxu0
  %1513 = vmatprep.mubr.f32.mxu0 0.0
  %1514 = vmatmul.mubr.f32.gmra.mxu0 %v1142
  %v1515 = vpop.f32.mrf.mxu0
  %v1516 = vadd.f32 %v965, %v1515
  %v1517 = vpop.f32.mrf.mxu0
  %1518 = vmatprep.mubr.f32.mxu0 0.0
  %1519 = vmatmul.mubr.f32.gmra.mxu0 %v1145
  %v1520 = vpop.f32.mrf.mxu0
  %v1521 = vadd.f32 %v965, %v1520
  %v1522 = vpop.f32.mrf.mxu0
  %1523 = vmatprep.mubr.f32.mxu0 0.0
  %1524 = vmatmul.mubr.f32.gmra.mxu0 %v1148
  %v1525 = vpop.f32.mrf.mxu0
  %v1526 = vadd.f32 %v965, %v1525
  %v1527 = vpop.f32.mrf.mxu0
  %1528 = vmatprep.mubr.f32.mxu0 0.0
  %1529 = vmatmul.mubr.f32.gmra.mxu0 %v1151
  %v1530 = vpop.f32.mrf.mxu0
  %v1531 = vadd.f32 %v965, %v1530
  %v1532 = vpop.f32.mrf.mxu0
  %1533 = vmatprep.mubr.f32.mxu0 0.0
  %1534 = vmatmul.mubr.f32.gmra.mxu0 %v1154
  %v1535 = vpop.f32.mrf.mxu0
  %v1536 = vadd.f32 %v965, %v1535
  %v1537 = vpop.f32.mrf.mxu0
  %1538 = vmatprep.mubr.f32.mxu0 0.0
  %1539 = vmatmul.mubr.f32.gmra.mxu0 %v1157
  %v1540 = vpop.f32.mrf.mxu0
  %v1541 = vadd.f32 %v965, %v1540
  %v1542 = vpop.f32.mrf.mxu0
  %1543 = vdwg.mxu0
  %v1544 = vmax.f32 %v1226, 0.0
  %v1545 = vmax.f32 %v1231, 0.0
  %v1546 = vmax.f32 %v1236, 0.0
  %v1547 = vmax.f32 %v1241, 0.0
  %v1548 = vmax.f32 %v1246, 0.0
  %v1549 = vmax.f32 %v1251, 0.0
  %v1550 = vmax.f32 %v1256, 0.0
  %v1551 = vmax.f32 %v1261, 0.0
  %v1552 = vmax.f32 %v1266, 0.0
  %v1553 = vmax.f32 %v1271, 0.0
  %v1554 = vmax.f32 %v1276, 0.0
  %v1555 = vmax.f32 %v1281, 0.0
  %v1556 = vmax.f32 %v1286, 0.0
  %v1557 = vmax.f32 %v1291, 0.0
  %v1558 = vmax.f32 %v1296, 0.0
  %v1559 = vmax.f32 %v1301, 0.0
  %v1560 = vmax.f32 %v1306, 0.0
  %v1561 = vmax.f32 %v1311, 0.0
  %v1562 = vmax.f32 %v1316, 0.0
  %v1563 = vmax.f32 %v1321, 0.0
  %v1564 = vmax.f32 %v1326, 0.0
  %v1565 = vmax.f32 %v1331, 0.0
  %v1566 = vmax.f32 %v1336, 0.0
  %v1567 = vmax.f32 %v1341, 0.0
  %v1568 = vmax.f32 %v1346, 0.0
  %v1569 = vmax.f32 %v1351, 0.0
  %v1570 = vmax.f32 %v1356, 0.0
  %v1571 = vmax.f32 %v1361, 0.0
  %v1572 = vmax.f32 %v1366, 0.0
  %v1573 = vmax.f32 %v1371, 0.0
  %v1574 = vmax.f32 %v1376, 0.0
  %v1575 = vmax.f32 %v1381, 0.0
  %v1576 = vmax.f32 %v1386, 0.0
  %v1577 = vmax.f32 %v1391, 0.0
  %v1578 = vmax.f32 %v1396, 0.0
  %v1579 = vmax.f32 %v1401, 0.0
  %v1580 = vmax.f32 %v1406, 0.0
  %v1581 = vmax.f32 %v1411, 0.0
  %v1582 = vmax.f32 %v1416, 0.0
  %v1583 = vmax.f32 %v1421, 0.0
  %v1584 = vmax.f32 %v1426, 0.0
  %v1585 = vmax.f32 %v1431, 0.0
  %v1586 = vmax.f32 %v1436, 0.0
  %v1587 = vmax.f32 %v1441, 0.0
  %v1588 = vmax.f32 %v1446, 0.0
  %v1589 = vmax.f32 %v1451, 0.0
  %v1590 = vmax.f32 %v1456, 0.0
  %v1591 = vmax.f32 %v1461, 0.0
  %v1592 = vmax.f32 %v1466, 0.0
  %v1593 = vmax.f32 %v1471, 0.0
  %v1594 = vmax.f32 %v1476, 0.0
  %v1595 = vmax.f32 %v1481, 0.0
  %v1596 = vmax.f32 %v1486, 0.0
  %v1597 = vmax.f32 %v1491, 0.0
  %v1598 = vmax.f32 %v1496, 0.0
  %v1599 = vmax.f32 %v1501, 0.0
  %v1600 = vmax.f32 %v1506, 0.0
  %v1601 = vmax.f32 %v1511, 0.0
  %v1602 = vmax.f32 %v1516, 0.0
  %v1603 = vmax.f32 %v1521, 0.0
  %v1604 = vmax.f32 %v1526, 0.0
  %v1605 = vmax.f32 %v1531, 0.0
  %v1606 = vmax.f32 %v1536, 0.0
  %v1607 = vmax.f32 %v1541, 0.0
  %v1608 = vld [vmem:[%s8] sm:$0x1]
  %v1609 = vld [vmem:[#allocation2] sm:$0x1]
  %1611 = vset.pattern.permute.xlu0 0
  %1612 = vperm.xlu0 %1611, %v1609
  %v1613 = vpop.permute.xlu0 %1612
  %v1615 = vlaneseq
  %v1616 = vshrl.u32 %v1615, 7
  %v1617 = vsub.s32 0, %v1616
  %v1618 = vrot.slane %v1613, %v1617
  %1619 = vmatprep.subr.mxu0 0.0
  %1620 = vmatpush1.xpose.msra.mxu0 %v1559
  %1621 = vmatprep.subr.mxu0 0.0
  %1622 = vmatpush1.xpose.msra.mxu0 %v1558
  %1623 = vmatprep.subr.mxu0 0.0
  %1624 = vmatpush1.xpose.msra.mxu0 %v1557
  %1625 = vmatprep.subr.mxu0 0.0
  %1626 = vmatpush1.xpose.msra.mxu0 %v1556
  %1627 = vmatprep.subr.mxu0 0.0
  %1628 = vmatpush1.xpose.msra.mxu0 %v1555
  %1629 = vmatprep.subr.mxu0 0.0
  %1630 = vmatpush1.xpose.msra.mxu0 %v1554
  %1631 = vmatprep.subr.mxu0 0.0
  %1632 = vmatpush1.xpose.msra.mxu0 %v1553
  %1633 = vmatprep.subr.mxu0 0.0
  %1634 = vmatpush1.xpose.msra.mxu0 %v1552
  %1635 = vmatprep.subr.mxu0 0.0
  %1636 = vmatpush1.xpose.msra.mxu0 %v1551
  %1637 = vmatprep.subr.mxu0 0.0
  %1638 = vmatpush1.xpose.msra.mxu0 %v1550
  %1639 = vmatprep.subr.mxu0 0.0
  %1640 = vmatpush1.xpose.msra.mxu0 %v1549
  %1641 = vmatprep.subr.mxu0 0.0
  %1642 = vmatpush1.xpose.msra.mxu0 %v1548
  %1643 = vmatprep.subr.mxu0 0.0
  %1644 = vmatpush1.xpose.msra.mxu0 %v1547
  %1645 = vmatprep.subr.mxu0 0.0
  %1646 = vmatpush1.xpose.msra.mxu0 %v1546
  %1647 = vmatprep.subr.mxu0 0.0
  %1648 = vmatpush1.xpose.msra.mxu0 %v1545
  %1649 = vmatprep.subr.mxu0 0.0
  %1650 = vmatpush1.xpose.msra.mxu0 %v1544
  %1651 = vmatprep.subr.mxu0 0.0
  %1652 = vmatpush2.xpose.msra.mxu0 %v1575
  %1653 = vmatprep.subr.mxu0 0.0
  %1654 = vmatpush2.xpose.msra.mxu0 %v1574
  %1655 = vmatprep.subr.mxu0 0.0
  %1656 = vmatpush2.xpose.msra.mxu0 %v1573
  %1657 = vmatprep.subr.mxu0 0.0
  %1658 = vmatpush2.xpose.msra.mxu0 %v1572
  %1659 = vmatprep.subr.mxu0 0.0
  %1660 = vmatpush2.xpose.msra.mxu0 %v1571
  %1661 = vmatprep.subr.mxu0 0.0
  %1662 = vmatpush2.xpose.msra.mxu0 %v1570
  %1663 = vmatprep.subr.mxu0 0.0
  %1664 = vmatpush2.xpose.msra.mxu0 %v1569
  %1665 = vmatprep.subr.mxu0 0.0
  %1666 = vmatpush2.xpose.msra.mxu0 %v1568
  %1667 = vmatprep.subr.mxu0 0.0
  %1668 = vmatpush2.xpose.msra.mxu0 %v1567
  %1669 = vmatprep.subr.mxu0 0.0
  %1670 = vmatpush2.xpose.msra.mxu0 %v1566
  %1671 = vmatprep.subr.mxu0 0.0
  %1672 = vmatpush2.xpose.msra.mxu0 %v1565
  %1673 = vmatprep.subr.mxu0 0.0
  %1674 = vmatpush2.xpose.msra.mxu0 %v1564
  %1675 = vmatprep.subr.mxu0 0.0
  %1676 = vmatpush2.xpose.msra.mxu0 %v1563
  %1677 = vmatprep.subr.mxu0 0.0
  %1678 = vmatpush2.xpose.msra.mxu0 %v1562
  %1679 = vmatprep.subr.mxu0 0.0
  %1680 = vmatpush2.xpose.msra.mxu0 %v1561
  %1681 = vmatprep.subr.mxu0 0.0
  %1682 = vmatpush2.xpose.msra.mxu0 %v1560
  %1683 = vmatprep.mubr.f32.mxu0 0.0
  %1684 = vmatmul.mubr.f32.gmra.mxu0 %v1608
  %v1685 = vpop.f32.mrf.mxu0
  %v1686 = vadd.f32 %v1618, %v1685
  %v1687 = vpop.f32.mrf.mxu0
  %v1688 = vadd.f32 %v1618, %v1687
  %1689 = vdwg.mxu0
  %1690 = vmatprep.subr.mxu0 0.0
  %1691 = vmatpush1.xpose.msra.mxu0 %v1591
  %1692 = vmatprep.subr.mxu0 0.0
  %1693 = vmatpush1.xpose.msra.mxu0 %v1590
  %1694 = vmatprep.subr.mxu0 0.0
  %1695 = vmatpush1.xpose.msra.mxu0 %v1589
  %1696 = vmatprep.subr.mxu0 0.0
  %1697 = vmatpush1.xpose.msra.mxu0 %v1588
  %1698 = vmatprep.subr.mxu0 0.0
  %1699 = vmatpush1.xpose.msra.mxu0 %v1587
  %1700 = vmatprep.subr.mxu0 0.0
  %1701 = vmatpush1.xpose.msra.mxu0 %v1586
  %1702 = vmatprep.subr.mxu0 0.0
  %1703 = vmatpush1.xpose.msra.mxu0 %v1585
  %1704 = vmatprep.subr.mxu0 0.0
  %1705 = vmatpush1.xpose.msra.mxu0 %v1584
  %1706 = vmatprep.subr.mxu0 0.0
  %1707 = vmatpush1.xpose.msra.mxu0 %v1583
  %1708 = vmatprep.subr.mxu0 0.0
  %1709 = vmatpush1.xpose.msra.mxu0 %v1582
  %1710 = vmatprep.subr.mxu0 0.0
  %1711 = vmatpush1.xpose.msra.mxu0 %v1581
  %1712 = vmatprep.subr.mxu0 0.0
  %1713 = vmatpush1.xpose.msra.mxu0 %v1580
  %1714 = vmatprep.subr.mxu0 0.0
  %1715 = vmatpush1.xpose.msra.mxu0 %v1579
  %1716 = vmatprep.subr.mxu0 0.0
  %1717 = vmatpush1.xpose.msra.mxu0 %v1578
  %1718 = vmatprep.subr.mxu0 0.0
  %1719 = vmatpush1.xpose.msra.mxu0 %v1577
  %1720 = vmatprep.subr.mxu0 0.0
  %1721 = vmatpush1.xpose.msra.mxu0 %v1576
  %1722 = vmatprep.subr.mxu0 0.0
  %1723 = vmatpush2.xpose.msra.mxu0 %v1607
  %1724 = vmatprep.subr.mxu0 0.0
  %1725 = vmatpush2.xpose.msra.mxu0 %v1606
  %1726 = vmatprep.subr.mxu0 0.0
  %1727 = vmatpush2.xpose.msra.mxu0 %v1605
  %1728 = vmatprep.subr.mxu0 0.0
  %1729 = vmatpush2.xpose.msra.mxu0 %v1604
  %1730 = vmatprep.subr.mxu0 0.0
  %1731 = vmatpush2.xpose.msra.mxu0 %v1603
  %1732 = vmatprep.subr.mxu0 0.0
  %1733 = vmatpush2.xpose.msra.mxu0 %v1602
  %1734 = vmatprep.subr.mxu0 0.0
  %1735 = vmatpush2.xpose.msra.mxu0 %v1601
  %1736 = vmatprep.subr.mxu0 0.0
  %1737 = vmatpush2.xpose.msra.mxu0 %v1600
  %1738 = vmatprep.subr.mxu0 0.0
  %1739 = vmatpush2.xpose.msra.mxu0 %v1599
  %1740 = vmatprep.subr.mxu0 0.0
  %1741 = vmatpush2.xpose.msra.mxu0 %v1598
  %1742 = vmatprep.subr.mxu0 0.0
  %1743 = vmatpush2.xpose.msra.mxu0 %v1597
  %1744 = vmatprep.subr.mxu0 0.0
  %1745 = vmatpush2.xpose.msra.mxu0 %v1596
  %1746 = vmatprep.subr.mxu0 0.0
  %1747 = vmatpush2.xpose.msra.mxu0 %v1595
  %1748 = vmatprep.subr.mxu0 0.0
  %1749 = vmatpush2.xpose.msra.mxu0 %v1594
  %1750 = vmatprep.subr.mxu0 0.0
  %1751 = vmatpush2.xpose.msra.mxu0 %v1593
  %1752 = vmatprep.subr.mxu0 0.0
  %1753 = vmatpush2.xpose.msra.mxu0 %v1592
  %1754 = vmatprep.mubr.f32.mxu0 0.0
  %1755 = vmatmul.mubr.f32.gmra.mxu0 %v1608
  %v1756 = vpop.f32.mrf.mxu0
  %v1757 = vadd.f32 %v1618, %v1756
  %v1758 = vpop.f32.mrf.mxu0
  %v1759 = vadd.f32 %v1618, %v1758
  %1760 = vdwg.mxu0
  %v1765 = vcombine.low %v1686, %v1688
  %v1766 = vcombine.low %v1757, %v1759
  %v1768 = vunpack.c.l.s4 1966171168
  %v1769 = vunpack.c.0.s8 %v1768
  %v1770 = vlaneseq
  %v1771 = vshrl.u32 %v1770, 7
  %v1772 = vsub.s32 %v1769, %v1771
  %v1773 = vrot.slane %v1765, %v1772
  %v1775 = vunpack.c.l.s4 1966171168
  %v1776 = vunpack.c.0.s8 %v1775
  %v1777 = vlaneseq
  %v1778 = vshrl.u32 %v1777, 7
  %v1779 = vsub.s32 %v1776, %v1778
  %v1780 = vrot.slane %v1766, %v1779
  %v1781 = vcombine.low %v1773, %v1780
  %v1783 = vunpack.c.l.s4 1966171168
  %v1784 = vunpack.c.0.s8 %v1783
  %v1785 = vlaneseq
  %v1786 = vshrl.u32 %v1785, 7
  %v1787 = vsub.s32 %v1784, %v1786
  %v1788 = vrot.slane %v1781, %v1787
  %v1790 = vlaneseq
  %vm1791 = vcmp.ge.s32.totalorder %v1790, 0
  %vm1792 = vcmp.lt.s32.totalorder %v1790, 512
  %vm1793 = vmand %vm1791, %vm1792
  %1794 = vst.msk [vmem:[%s10] sm:$0xf] %vm1793, %v1788
  // Predicated region
  $region42: #{simple_block2d.17} parent=0 // pred_check
    _
  $region43: #{simple_block2d.17} parent=0 // pred_check_branch
    %1796 = sbr.rel (0) target = $region45
  $region44: #{simple_block2d.17} parent=0 // pred_region
    _
  $region45: #{simple_block2d.17} parent=0 // pred_fallthru
    _
  // Predicated region
  $region46: #{simple_block2d.17} parent=0 // pred_check
    _
  $region47: #{simple_block2d.17} parent=0 // pred_check_branch
    %1798 = sbr.rel (0) target = $region49
  $region48: #{simple_block2d.17} parent=0 // pred_region
    _
  $region49: #{simple_block2d.17} parent=0 // pred_fallthru
    _

</llo_original>
